<compile_context>
chip_gen: v7x
topology: tpu7x:2x2x1
jax: 0.10.0
libtpu: 0.0.40
codegen_flags: <defaults>
</compile_context>

<pallas_src>
import jax
import jax.numpy as jnp
from jax.experimental import pallas as pl
from jax.experimental.pallas import tpu as pltpu

NEG_SLOPE = 0.01  # nn.LeakyReLU default


def _leaky(z):
    return jnp.where(z > 0, z, NEG_SLOPE * z)


def transformer_classifier_kernel(
    x_ref,        # (B, L, E)   batch block (batch-major)
    wqkv_ref,     # (E, 3E)     fused, pre-transposed in_proj weight
    bqkv_ref,     # (1, 3E)     fused in_proj bias
    wsq_ref,      # (3, E, E)   pre-transposed [out_proj, mlp0, mlp1] weights
    bsq_ref,      # (3, 1, E)   [out_proj, mlp0, mlp1] biases
    w3_ref,       # (E, H)      pre-transposed mlp2 weight
    b3_ref,       # (1, H)      mlp2 bias
    w4_ref,       # (1, H)      final Linear(H -> 1) weight (as a row)
    scal_ref,     # SMEM (3,)   [a, b, b4]
    out_ref,      # (B, L)
):
    B, L, E = x_ref.shape
    H = w3_ref.shape[1]

    # ---- fused Q/K/V projection over all B*L rows at once ----
    x = x_ref[...].reshape(B * L, E)
    qkv = jnp.dot(x, wqkv_ref[...], preferred_element_type=jnp.float32) + bqkv_ref[...]

    # ---- per-batch attention: num_heads = E, head_dim = 1, scale = 1/sqrt(1) = 1 ----
    # s[i, j, h] = q[i, h] * k[j, h]; softmax over keys; normalize AFTER the value
    # reduction so only an (L, E) tensor is divided (not (L, L, E)).
    att_rows = []
    for b in range(B):  # B is a small static constant — unrolled
        qkv_b = qkv[b * L:(b + 1) * L]          # (L, 3E)
        q = qkv_b[:, :E]
        k = qkv_b[:, E:2 * E]
        v = qkv_b[:, 2 * E:]
        s = q[:, None, :] * k[None, :, :]        # (L, L, E)
        m = jnp.max(s, axis=1, keepdims=True)
        e = jnp.exp(s - m)                       # (L, L, E)
        denom = jnp.sum(e, axis=1)               # (L, E)
        att_un = jnp.sum(e * v[None, :, :], axis=1)   # (L, E) unnormalized
        att_rows.append(att_un / denom)
    att = jnp.concatenate(att_rows, axis=0)      # (B*L, E)

    # ---- out_proj + MLP on all B*L rows in single matmuls (weights pre-transposed) ----
    att = jnp.dot(att, wsq_ref[0], preferred_element_type=jnp.float32) + bsq_ref[0]
    h = _leaky(jnp.dot(att, wsq_ref[1], preferred_element_type=jnp.float32) + bsq_ref[1])
    h = _leaky(jnp.dot(h, wsq_ref[2], preferred_element_type=jnp.float32) + bsq_ref[2])
    h = _leaky(jnp.dot(h, w3_ref[...], preferred_element_type=jnp.float32) + b3_ref[...])

    # ---- final Linear(H -> 1) as a lane reduction so the stored output is (B, L) ----
    y = jnp.sum(h.reshape(B, L, H) * w4_ref[...], axis=-1)   # (B, L)

    a_s = scal_ref[0]    # self.a
    b_s = scal_ref[1]    # self.b
    b4_s = scal_ref[2]   # final linear bias
    out_ref[...] = jax.nn.sigmoid(b_s * ((y + b4_s) - a_s))


def transformer_classifier(x, params, *, batch_block=None):
    """x: (L, N, E) float32 (PyTorch MultiheadAttention layout).  Returns (L*N, 1)."""
    (wq, wk, wv, bq, bk, bv, wo, bo,
     w1, b1, w2, b2, w3, b3, w4, b4, a, bb) = params
    L, N, E = x.shape
    H = w3.shape[0]

    if batch_block is None:
        # Prefer 2 parallel grid steps (v7x has 2 TensorCores) when the batch splits into
        # sublane-aligned blocks; otherwise fully collapse to one invocation (v5e/v6e).
        batch_block = N // 2 if (N % 16 == 0) else N
    assert N % batch_block == 0, "batch must divide evenly into batch blocks"
    assert batch_block == N or batch_block % 8 == 0, "batch block must be sublane-aligned"
    B = batch_block

    # ---- host-side parameter packing (free; removes in-kernel transposes / extra DMAs) ----
    wqkv_t = jnp.concatenate([wq.T, wk.T, wv.T], axis=1)        # (E, 3E)
    bqkv = jnp.concatenate([bq, bk, bv], axis=1)                # (1, 3E)
    wsq_t = jnp.stack([wo.T, w1.T, w2.T], axis=0)               # (3, E, E)
    bsq = jnp.stack([bo, b1, b2], axis=0)                       # (3, 1, E)
    w3_t = w3.T                                                 # (E, H)
    w4_row = w4                                                 # (1, H)
    scal = jnp.concatenate(
        [a.reshape(1), bb.reshape(1), b4.reshape(1)]).astype(jnp.float32)  # (3,) -> SMEM

    xk = jnp.transpose(x, (1, 0, 2))  # (N, L, E) — batch-major for the kernel grid

    grid_spec = pltpu.PrefetchScalarGridSpec(
        num_scalar_prefetch=0,
        grid=(N // B,),
        in_specs=[
            pl.BlockSpec((B, L, E), lambda n: (n, 0, 0)),
            pl.BlockSpec((E, 3 * E), lambda n: (0, 0)),
            pl.BlockSpec((1, 3 * E), lambda n: (0, 0)),
            pl.BlockSpec((3, E, E), lambda n: (0, 0, 0)),
            pl.BlockSpec((3, 1, E), lambda n: (0, 0, 0)),
            pl.BlockSpec((E, H), lambda n: (0, 0)),
            pl.BlockSpec((1, H), lambda n: (0, 0)),
            pl.BlockSpec((1, H), lambda n: (0, 0)),
            pl.BlockSpec(memory_space=pltpu.SMEM),              # [a, b, b4] scalars
        ],
        out_specs=pl.BlockSpec((B, L), lambda n: (n, 0)),
    )

    out = pl.pallas_call(
        transformer_classifier_kernel,
        out_shape=jax.ShapeDtypeStruct((N, L), jnp.float32),
        grid_spec=grid_spec,
        compiler_params=pltpu.CompilerParams(dimension_semantics=("parallel",)),
    )(xk, wqkv_t, bqkv, wsq_t, bsq, w3_t, b3, w4_row, scal)

    # back to PyTorch's att_out.view(-1, E) row ordering: row index = l * N + n
    return jnp.transpose(out, (1, 0)).reshape(L * N, 1)


def init_params(key, E, out_dim=1):
    """Deterministic synthetic parameters with PyTorch-Linear-like uniform scales."""
    H = E // 2
    ks = jax.random.split(key, 8)

    def lin(k, out_f, in_f):
        bound = 1.0 / (in_f ** 0.5)
        kw_, kb_ = jax.random.split(k)
        w = jax.random.uniform(kw_, (out_f, in_f), jnp.float32, -bound, bound)
        b = jax.random.uniform(kb_, (1, out_f), jnp.float32, -bound, bound)
        return w, b

    wq, bq = lin(ks[0], E, E)
    wk, bk = lin(ks[1], E, E)
    wv, bv = lin(ks[2], E, E)
    wo, bo = lin(ks[3], E, E)
    w1, b1 = lin(ks[4], E, E)
    w2, b2 = lin(ks[5], E, E)
    w3, b3 = lin(ks[6], H, E)
    w4, b4 = lin(ks[7], out_dim, H)
    a = jnp.array([[0.001]], jnp.float32)   # self.a
    bb = jnp.array([[0.999]], jnp.float32)  # self.b
    return (wq, wk, wv, bq, bk, bv, wo, bo, w1, b1, w2, b2, w3, b3, w4, b4, a, bb)


def reference(x, params):
    """Pure-JAX reference of the PyTorch forward (num_heads = E, head_dim = 1)."""
    (wq, wk, wv, bq, bk, bv, wo, bo,
     w1, b1, w2, b2, w3, b3, w4, b4, a, bb) = params
    L, N, E = x.shape
    q = x @ wq.T + bq
    k = x @ wk.T + bk
    v = x @ wv.T + bv
    s = jnp.einsum('ine,jne->nije', q, k)        # scale = 1/sqrt(head_dim) = 1
    p = jax.nn.softmax(s, axis=2)
    att = jnp.einsum('nije,jne->ine', p, v)
    att = att @ wo.T + bo                        # (L, N, E)
    h = att.reshape(L * N, E)
    h = _leaky(h @ w1.T + b1)
    h = _leaky(h @ w2.T + b2)
    h = _leaky(h @ w3.T + b3)
    y = h @ w4.T + b4
    return jax.nn.sigmoid(bb * (y - a))


if __name__ == "__main__":
    L, N, E = 8, 16, 16     # seq=8, batch=16, n_features=16 (E must be even)
    x = jax.random.normal(jax.random.PRNGKey(0), (L, N, E), jnp.float32)
    params = init_params(jax.random.PRNGKey(1), E, out_dim=1)

    out = transformer_classifier(x, params)      # default: 2 parallel grid steps of B=8
    out = jax.block_until_ready(out)

    ref = reference(x, params)
    assert out.shape == (L * N, 1)
    assert jnp.allclose(out, ref, rtol=1e-5, atol=1e-5), "kernel != reference"
    print("KERNEL_OK")
</pallas_src>

<mosaic_0001>
module attributes {stable_mosaic.version = 11 : i64} {
  func.func @transformer_classifier_kernel(%arg0: i32, %arg1: memref<8x8x16xf32, #tpu.memory_space<vmem>>, %arg2: memref<16x48xf32, #tpu.memory_space<vmem>>, %arg3: memref<1x48xf32, #tpu.memory_space<vmem>>, %arg4: memref<3x16x16xf32, #tpu.memory_space<vmem>>, %arg5: memref<3x1x16xf32, #tpu.memory_space<vmem>>, %arg6: memref<16x8xf32, #tpu.memory_space<vmem>>, %arg7: memref<1x8xf32, #tpu.memory_space<vmem>>, %arg8: memref<1x8xf32, #tpu.memory_space<vmem>>, %arg9: memref<3xf32, #tpu.memory_space<smem>>, %arg10: memref<8x8xf32, #tpu.memory_space<vmem>>) attributes {dimension_semantics = [#tpu.dimension_semantics<parallel>], iteration_bounds = array<i64: 2>, scalar_prefetch = 0 : i64, scratch_operands = 0 : i64, tpu.core_type = #tpu.core_type<tc>, window_params = [{transform_indices = @transform_0, window_bounds = array<i64: 8, 8, 16>}, {pipeline_mode = #tpu.pipeline_mode<synchronous>, transform_indices = @transform_1, window_bounds = array<i64: 16, 48>}, {pipeline_mode = #tpu.pipeline_mode<synchronous>, transform_indices = @transform_2, window_bounds = array<i64: 1, 48>}, {pipeline_mode = #tpu.pipeline_mode<synchronous>, transform_indices = @transform_3, window_bounds = array<i64: 3, 16, 16>}, {pipeline_mode = #tpu.pipeline_mode<synchronous>, transform_indices = @transform_4, window_bounds = array<i64: 3, 1, 16>}, {pipeline_mode = #tpu.pipeline_mode<synchronous>, transform_indices = @transform_5, window_bounds = array<i64: 16, 8>}, {pipeline_mode = #tpu.pipeline_mode<synchronous>, transform_indices = @transform_6, window_bounds = array<i64: 1, 8>}, {pipeline_mode = #tpu.pipeline_mode<synchronous>, transform_indices = @transform_7, window_bounds = array<i64: 1, 8>}, {transform_indices = @transform_8, window_bounds = array<i64: 3>}, {transform_indices = @transform_9, window_bounds = array<i64: 8, 8>}]} {
    %c0 = arith.constant 0 : index
    %c0_0 = arith.constant 0 : index
    %c0_1 = arith.constant 0 : index
    %0 = vector.load %arg1[%c0, %c0_0, %c0_1] : memref<8x8x16xf32, #tpu.memory_space<vmem>>, vector<8x8x16xf32>
    %1 = vector.shape_cast %0 : vector<8x8x16xf32> to vector<64x16xf32>
    %c0_2 = arith.constant 0 : index
    %c0_3 = arith.constant 0 : index
    %2 = vector.load %arg2[%c0_2, %c0_3] : memref<16x48xf32, #tpu.memory_space<vmem>>, vector<16x48xf32>
    %cst = arith.constant dense<0.000000e+00> : vector<64x48xf32>
    %3 = tpu.matmul %1, %2, %cst {dimension_numbers = #tpu.dot_dimension_numbers<[1], [0], [0], [1], [0, 0, 1, 1], [], []>} : vector<64x16xf32>, vector<16x48xf32>, vector<64x48xf32> -> vector<64x48xf32>
    %c0_4 = arith.constant 0 : index
    %c0_5 = arith.constant 0 : index
    %4 = vector.load %arg3[%c0_4, %c0_5] : memref<1x48xf32, #tpu.memory_space<vmem>>, vector<1x48xf32>
    %5 = vector.broadcast %4 : vector<1x48xf32> to vector<64x48xf32>
    %6 = arith.addf %3, %5 : vector<64x48xf32>
    %7 = vector.extract_strided_slice %6 {offsets = [0, 0], sizes = [8, 48], strides = [1, 1]} : vector<64x48xf32> to vector<8x48xf32>
    %8 = vector.extract_strided_slice %7 {offsets = [0, 0], sizes = [8, 16], strides = [1, 1]} : vector<8x48xf32> to vector<8x16xf32>
    %9 = vector.extract_strided_slice %7 {offsets = [0, 16], sizes = [8, 16], strides = [1, 1]} : vector<8x48xf32> to vector<8x16xf32>
    %10 = vector.extract_strided_slice %7 {offsets = [0, 32], sizes = [8, 16], strides = [1, 1]} : vector<8x48xf32> to vector<8x16xf32>
    %11 = vector.shape_cast %8 : vector<8x16xf32> to vector<8x1x16xf32>
    %12 = vector.shape_cast %9 : vector<8x16xf32> to vector<1x8x16xf32>
    %13 = vector.broadcast %11 : vector<8x1x16xf32> to vector<8x8x16xf32>
    %14 = vector.broadcast %12 : vector<1x8x16xf32> to vector<8x8x16xf32>
    %15 = arith.mulf %13, %14 : vector<8x8x16xf32>
    %cst_6 = arith.constant dense<0xFF800000> : vector<8x16xf32>
    %16 = vector.multi_reduction <maximumf>, %15, %cst_6 [1] : vector<8x8x16xf32> to vector<8x16xf32>
    %17 = vector.shape_cast %16 : vector<8x16xf32> to vector<8x1x16xf32>
    %18 = vector.broadcast %17 : vector<8x1x16xf32> to vector<8x8x16xf32>
    %19 = arith.subf %15, %18 : vector<8x8x16xf32>
    %20 = math.exp %19 : vector<8x8x16xf32>
    %cst_7 = arith.constant dense<0.000000e+00> : vector<8x16xf32>
    %21 = vector.multi_reduction <add>, %20, %cst_7 [1] : vector<8x8x16xf32> to vector<8x16xf32>
    %22 = vector.shape_cast %10 : vector<8x16xf32> to vector<1x8x16xf32>
    %23 = vector.broadcast %22 : vector<1x8x16xf32> to vector<8x8x16xf32>
    %24 = arith.mulf %20, %23 : vector<8x8x16xf32>
    %cst_8 = arith.constant dense<0.000000e+00> : vector<8x16xf32>
    %25 = vector.multi_reduction <add>, %24, %cst_8 [1] : vector<8x8x16xf32> to vector<8x16xf32>
    %26 = arith.divf %25, %21 : vector<8x16xf32>
    %27 = vector.extract_strided_slice %6 {offsets = [8, 0], sizes = [8, 48], strides = [1, 1]} : vector<64x48xf32> to vector<8x48xf32>
    %28 = vector.extract_strided_slice %27 {offsets = [0, 0], sizes = [8, 16], strides = [1, 1]} : vector<8x48xf32> to vector<8x16xf32>
    %29 = vector.extract_strided_slice %27 {offsets = [0, 16], sizes = [8, 16], strides = [1, 1]} : vector<8x48xf32> to vector<8x16xf32>
    %30 = vector.extract_strided_slice %27 {offsets = [0, 32], sizes = [8, 16], strides = [1, 1]} : vector<8x48xf32> to vector<8x16xf32>
    %31 = vector.shape_cast %28 : vector<8x16xf32> to vector<8x1x16xf32>
    %32 = vector.shape_cast %29 : vector<8x16xf32> to vector<1x8x16xf32>
    %33 = vector.broadcast %31 : vector<8x1x16xf32> to vector<8x8x16xf32>
    %34 = vector.broadcast %32 : vector<1x8x16xf32> to vector<8x8x16xf32>
    %35 = arith.mulf %33, %34 : vector<8x8x16xf32>
    %cst_9 = arith.constant dense<0xFF800000> : vector<8x16xf32>
    %36 = vector.multi_reduction <maximumf>, %35, %cst_9 [1] : vector<8x8x16xf32> to vector<8x16xf32>
    %37 = vector.shape_cast %36 : vector<8x16xf32> to vector<8x1x16xf32>
    %38 = vector.broadcast %37 : vector<8x1x16xf32> to vector<8x8x16xf32>
    %39 = arith.subf %35, %38 : vector<8x8x16xf32>
    %40 = math.exp %39 : vector<8x8x16xf32>
    %cst_10 = arith.constant dense<0.000000e+00> : vector<8x16xf32>
    %41 = vector.multi_reduction <add>, %40, %cst_10 [1] : vector<8x8x16xf32> to vector<8x16xf32>
    %42 = vector.shape_cast %30 : vector<8x16xf32> to vector<1x8x16xf32>
    %43 = vector.broadcast %42 : vector<1x8x16xf32> to vector<8x8x16xf32>
    %44 = arith.mulf %40, %43 : vector<8x8x16xf32>
    %cst_11 = arith.constant dense<0.000000e+00> : vector<8x16xf32>
    %45 = vector.multi_reduction <add>, %44, %cst_11 [1] : vector<8x8x16xf32> to vector<8x16xf32>
    %46 = arith.divf %45, %41 : vector<8x16xf32>
    %47 = vector.extract_strided_slice %6 {offsets = [16, 0], sizes = [8, 48], strides = [1, 1]} : vector<64x48xf32> to vector<8x48xf32>
    %48 = vector.extract_strided_slice %47 {offsets = [0, 0], sizes = [8, 16], strides = [1, 1]} : vector<8x48xf32> to vector<8x16xf32>
    %49 = vector.extract_strided_slice %47 {offsets = [0, 16], sizes = [8, 16], strides = [1, 1]} : vector<8x48xf32> to vector<8x16xf32>
    %50 = vector.extract_strided_slice %47 {offsets = [0, 32], sizes = [8, 16], strides = [1, 1]} : vector<8x48xf32> to vector<8x16xf32>
    %51 = vector.shape_cast %48 : vector<8x16xf32> to vector<8x1x16xf32>
    %52 = vector.shape_cast %49 : vector<8x16xf32> to vector<1x8x16xf32>
    %53 = vector.broadcast %51 : vector<8x1x16xf32> to vector<8x8x16xf32>
    %54 = vector.broadcast %52 : vector<1x8x16xf32> to vector<8x8x16xf32>
    %55 = arith.mulf %53, %54 : vector<8x8x16xf32>
    %cst_12 = arith.constant dense<0xFF800000> : vector<8x16xf32>
    %56 = vector.multi_reduction <maximumf>, %55, %cst_12 [1] : vector<8x8x16xf32> to vector<8x16xf32>
    %57 = vector.shape_cast %56 : vector<8x16xf32> to vector<8x1x16xf32>
    %58 = vector.broadcast %57 : vector<8x1x16xf32> to vector<8x8x16xf32>
    %59 = arith.subf %55, %58 : vector<8x8x16xf32>
    %60 = math.exp %59 : vector<8x8x16xf32>
    %cst_13 = arith.constant dense<0.000000e+00> : vector<8x16xf32>
    %61 = vector.multi_reduction <add>, %60, %cst_13 [1] : vector<8x8x16xf32> to vector<8x16xf32>
    %62 = vector.shape_cast %50 : vector<8x16xf32> to vector<1x8x16xf32>
    %63 = vector.broadcast %62 : vector<1x8x16xf32> to vector<8x8x16xf32>
    %64 = arith.mulf %60, %63 : vector<8x8x16xf32>
    %cst_14 = arith.constant dense<0.000000e+00> : vector<8x16xf32>
    %65 = vector.multi_reduction <add>, %64, %cst_14 [1] : vector<8x8x16xf32> to vector<8x16xf32>
    %66 = arith.divf %65, %61 : vector<8x16xf32>
    %67 = vector.extract_strided_slice %6 {offsets = [24, 0], sizes = [8, 48], strides = [1, 1]} : vector<64x48xf32> to vector<8x48xf32>
    %68 = vector.extract_strided_slice %67 {offsets = [0, 0], sizes = [8, 16], strides = [1, 1]} : vector<8x48xf32> to vector<8x16xf32>
    %69 = vector.extract_strided_slice %67 {offsets = [0, 16], sizes = [8, 16], strides = [1, 1]} : vector<8x48xf32> to vector<8x16xf32>
    %70 = vector.extract_strided_slice %67 {offsets = [0, 32], sizes = [8, 16], strides = [1, 1]} : vector<8x48xf32> to vector<8x16xf32>
    %71 = vector.shape_cast %68 : vector<8x16xf32> to vector<8x1x16xf32>
    %72 = vector.shape_cast %69 : vector<8x16xf32> to vector<1x8x16xf32>
    %73 = vector.broadcast %71 : vector<8x1x16xf32> to vector<8x8x16xf32>
    %74 = vector.broadcast %72 : vector<1x8x16xf32> to vector<8x8x16xf32>
    %75 = arith.mulf %73, %74 : vector<8x8x16xf32>
    %cst_15 = arith.constant dense<0xFF800000> : vector<8x16xf32>
    %76 = vector.multi_reduction <maximumf>, %75, %cst_15 [1] : vector<8x8x16xf32> to vector<8x16xf32>
    %77 = vector.shape_cast %76 : vector<8x16xf32> to vector<8x1x16xf32>
    %78 = vector.broadcast %77 : vector<8x1x16xf32> to vector<8x8x16xf32>
    %79 = arith.subf %75, %78 : vector<8x8x16xf32>
    %80 = math.exp %79 : vector<8x8x16xf32>
    %cst_16 = arith.constant dense<0.000000e+00> : vector<8x16xf32>
    %81 = vector.multi_reduction <add>, %80, %cst_16 [1] : vector<8x8x16xf32> to vector<8x16xf32>
    %82 = vector.shape_cast %70 : vector<8x16xf32> to vector<1x8x16xf32>
    %83 = vector.broadcast %82 : vector<1x8x16xf32> to vector<8x8x16xf32>
    %84 = arith.mulf %80, %83 : vector<8x8x16xf32>
    %cst_17 = arith.constant dense<0.000000e+00> : vector<8x16xf32>
    %85 = vector.multi_reduction <add>, %84, %cst_17 [1] : vector<8x8x16xf32> to vector<8x16xf32>
    %86 = arith.divf %85, %81 : vector<8x16xf32>
    %87 = vector.extract_strided_slice %6 {offsets = [32, 0], sizes = [8, 48], strides = [1, 1]} : vector<64x48xf32> to vector<8x48xf32>
    %88 = vector.extract_strided_slice %87 {offsets = [0, 0], sizes = [8, 16], strides = [1, 1]} : vector<8x48xf32> to vector<8x16xf32>
    %89 = vector.extract_strided_slice %87 {offsets = [0, 16], sizes = [8, 16], strides = [1, 1]} : vector<8x48xf32> to vector<8x16xf32>
    %90 = vector.extract_strided_slice %87 {offsets = [0, 32], sizes = [8, 16], strides = [1, 1]} : vector<8x48xf32> to vector<8x16xf32>
    %91 = vector.shape_cast %88 : vector<8x16xf32> to vector<8x1x16xf32>
    %92 = vector.shape_cast %89 : vector<8x16xf32> to vector<1x8x16xf32>
    %93 = vector.broadcast %91 : vector<8x1x16xf32> to vector<8x8x16xf32>
    %94 = vector.broadcast %92 : vector<1x8x16xf32> to vector<8x8x16xf32>
    %95 = arith.mulf %93, %94 : vector<8x8x16xf32>
    %cst_18 = arith.constant dense<0xFF800000> : vector<8x16xf32>
    %96 = vector.multi_reduction <maximumf>, %95, %cst_18 [1] : vector<8x8x16xf32> to vector<8x16xf32>
    %97 = vector.shape_cast %96 : vector<8x16xf32> to vector<8x1x16xf32>
    %98 = vector.broadcast %97 : vector<8x1x16xf32> to vector<8x8x16xf32>
    %99 = arith.subf %95, %98 : vector<8x8x16xf32>
    %100 = math.exp %99 : vector<8x8x16xf32>
    %cst_19 = arith.constant dense<0.000000e+00> : vector<8x16xf32>
    %101 = vector.multi_reduction <add>, %100, %cst_19 [1] : vector<8x8x16xf32> to vector<8x16xf32>
    %102 = vector.shape_cast %90 : vector<8x16xf32> to vector<1x8x16xf32>
    %103 = vector.broadcast %102 : vector<1x8x16xf32> to vector<8x8x16xf32>
    %104 = arith.mulf %100, %103 : vector<8x8x16xf32>
    %cst_20 = arith.constant dense<0.000000e+00> : vector<8x16xf32>
    %105 = vector.multi_reduction <add>, %104, %cst_20 [1] : vector<8x8x16xf32> to vector<8x16xf32>
    %106 = arith.divf %105, %101 : vector<8x16xf32>
    %107 = vector.extract_strided_slice %6 {offsets = [40, 0], sizes = [8, 48], strides = [1, 1]} : vector<64x48xf32> to vector<8x48xf32>
    %108 = vector.extract_strided_slice %107 {offsets = [0, 0], sizes = [8, 16], strides = [1, 1]} : vector<8x48xf32> to vector<8x16xf32>
    %109 = vector.extract_strided_slice %107 {offsets = [0, 16], sizes = [8, 16], strides = [1, 1]} : vector<8x48xf32> to vector<8x16xf32>
    %110 = vector.extract_strided_slice %107 {offsets = [0, 32], sizes = [8, 16], strides = [1, 1]} : vector<8x48xf32> to vector<8x16xf32>
    %111 = vector.shape_cast %108 : vector<8x16xf32> to vector<8x1x16xf32>
    %112 = vector.shape_cast %109 : vector<8x16xf32> to vector<1x8x16xf32>
    %113 = vector.broadcast %111 : vector<8x1x16xf32> to vector<8x8x16xf32>
    %114 = vector.broadcast %112 : vector<1x8x16xf32> to vector<8x8x16xf32>
    %115 = arith.mulf %113, %114 : vector<8x8x16xf32>
    %cst_21 = arith.constant dense<0xFF800000> : vector<8x16xf32>
    %116 = vector.multi_reduction <maximumf>, %115, %cst_21 [1] : vector<8x8x16xf32> to vector<8x16xf32>
    %117 = vector.shape_cast %116 : vector<8x16xf32> to vector<8x1x16xf32>
    %118 = vector.broadcast %117 : vector<8x1x16xf32> to vector<8x8x16xf32>
    %119 = arith.subf %115, %118 : vector<8x8x16xf32>
    %120 = math.exp %119 : vector<8x8x16xf32>
    %cst_22 = arith.constant dense<0.000000e+00> : vector<8x16xf32>
    %121 = vector.multi_reduction <add>, %120, %cst_22 [1] : vector<8x8x16xf32> to vector<8x16xf32>
    %122 = vector.shape_cast %110 : vector<8x16xf32> to vector<1x8x16xf32>
    %123 = vector.broadcast %122 : vector<1x8x16xf32> to vector<8x8x16xf32>
    %124 = arith.mulf %120, %123 : vector<8x8x16xf32>
    %cst_23 = arith.constant dense<0.000000e+00> : vector<8x16xf32>
    %125 = vector.multi_reduction <add>, %124, %cst_23 [1] : vector<8x8x16xf32> to vector<8x16xf32>
    %126 = arith.divf %125, %121 : vector<8x16xf32>
    %127 = vector.extract_strided_slice %6 {offsets = [48, 0], sizes = [8, 48], strides = [1, 1]} : vector<64x48xf32> to vector<8x48xf32>
    %128 = vector.extract_strided_slice %127 {offsets = [0, 0], sizes = [8, 16], strides = [1, 1]} : vector<8x48xf32> to vector<8x16xf32>
    %129 = vector.extract_strided_slice %127 {offsets = [0, 16], sizes = [8, 16], strides = [1, 1]} : vector<8x48xf32> to vector<8x16xf32>
    %130 = vector.extract_strided_slice %127 {offsets = [0, 32], sizes = [8, 16], strides = [1, 1]} : vector<8x48xf32> to vector<8x16xf32>
    %131 = vector.shape_cast %128 : vector<8x16xf32> to vector<8x1x16xf32>
    %132 = vector.shape_cast %129 : vector<8x16xf32> to vector<1x8x16xf32>
    %133 = vector.broadcast %131 : vector<8x1x16xf32> to vector<8x8x16xf32>
    %134 = vector.broadcast %132 : vector<1x8x16xf32> to vector<8x8x16xf32>
    %135 = arith.mulf %133, %134 : vector<8x8x16xf32>
    %cst_24 = arith.constant dense<0xFF800000> : vector<8x16xf32>
    %136 = vector.multi_reduction <maximumf>, %135, %cst_24 [1] : vector<8x8x16xf32> to vector<8x16xf32>
    %137 = vector.shape_cast %136 : vector<8x16xf32> to vector<8x1x16xf32>
    %138 = vector.broadcast %137 : vector<8x1x16xf32> to vector<8x8x16xf32>
    %139 = arith.subf %135, %138 : vector<8x8x16xf32>
    %140 = math.exp %139 : vector<8x8x16xf32>
    %cst_25 = arith.constant dense<0.000000e+00> : vector<8x16xf32>
    %141 = vector.multi_reduction <add>, %140, %cst_25 [1] : vector<8x8x16xf32> to vector<8x16xf32>
    %142 = vector.shape_cast %130 : vector<8x16xf32> to vector<1x8x16xf32>
    %143 = vector.broadcast %142 : vector<1x8x16xf32> to vector<8x8x16xf32>
    %144 = arith.mulf %140, %143 : vector<8x8x16xf32>
    %cst_26 = arith.constant dense<0.000000e+00> : vector<8x16xf32>
    %145 = vector.multi_reduction <add>, %144, %cst_26 [1] : vector<8x8x16xf32> to vector<8x16xf32>
    %146 = arith.divf %145, %141 : vector<8x16xf32>
    %147 = vector.extract_strided_slice %6 {offsets = [56, 0], sizes = [8, 48], strides = [1, 1]} : vector<64x48xf32> to vector<8x48xf32>
    %148 = vector.extract_strided_slice %147 {offsets = [0, 0], sizes = [8, 16], strides = [1, 1]} : vector<8x48xf32> to vector<8x16xf32>
    %149 = vector.extract_strided_slice %147 {offsets = [0, 16], sizes = [8, 16], strides = [1, 1]} : vector<8x48xf32> to vector<8x16xf32>
    %150 = vector.extract_strided_slice %147 {offsets = [0, 32], sizes = [8, 16], strides = [1, 1]} : vector<8x48xf32> to vector<8x16xf32>
    %151 = vector.shape_cast %148 : vector<8x16xf32> to vector<8x1x16xf32>
    %152 = vector.shape_cast %149 : vector<8x16xf32> to vector<1x8x16xf32>
    %153 = vector.broadcast %151 : vector<8x1x16xf32> to vector<8x8x16xf32>
    %154 = vector.broadcast %152 : vector<1x8x16xf32> to vector<8x8x16xf32>
    %155 = arith.mulf %153, %154 : vector<8x8x16xf32>
    %cst_27 = arith.constant dense<0xFF800000> : vector<8x16xf32>
    %156 = vector.multi_reduction <maximumf>, %155, %cst_27 [1] : vector<8x8x16xf32> to vector<8x16xf32>
    %157 = vector.shape_cast %156 : vector<8x16xf32> to vector<8x1x16xf32>
    %158 = vector.broadcast %157 : vector<8x1x16xf32> to vector<8x8x16xf32>
    %159 = arith.subf %155, %158 : vector<8x8x16xf32>
    %160 = math.exp %159 : vector<8x8x16xf32>
    %cst_28 = arith.constant dense<0.000000e+00> : vector<8x16xf32>
    %161 = vector.multi_reduction <add>, %160, %cst_28 [1] : vector<8x8x16xf32> to vector<8x16xf32>
    %162 = vector.shape_cast %150 : vector<8x16xf32> to vector<1x8x16xf32>
    %163 = vector.broadcast %162 : vector<1x8x16xf32> to vector<8x8x16xf32>
    %164 = arith.mulf %160, %163 : vector<8x8x16xf32>
    %cst_29 = arith.constant dense<0.000000e+00> : vector<8x16xf32>
    %165 = vector.multi_reduction <add>, %164, %cst_29 [1] : vector<8x8x16xf32> to vector<8x16xf32>
    %166 = arith.divf %165, %161 : vector<8x16xf32>
    %167 = tpu.concatenate %26, %46, %66, %86, %106, %126, %146, %166 in 0 : vector<8x16xf32>, vector<8x16xf32>, vector<8x16xf32>, vector<8x16xf32>, vector<8x16xf32>, vector<8x16xf32>, vector<8x16xf32>, vector<8x16xf32> -> vector<64x16xf32>
    %c0_30 = arith.constant 0 : index
    %c0_31 = arith.constant 0 : index
    %c0_32 = arith.constant 0 : index
    %168 = vector.load %arg4[%c0_30, %c0_31, %c0_32] : memref<3x16x16xf32, #tpu.memory_space<vmem>>, vector<1x16x16xf32>
    %169 = vector.shape_cast %168 : vector<1x16x16xf32> to vector<16x16xf32>
    %cst_33 = arith.constant dense<0.000000e+00> : vector<64x16xf32>
    %170 = tpu.matmul %167, %169, %cst_33 {dimension_numbers = #tpu.dot_dimension_numbers<[1], [0], [0], [1], [0, 0, 1, 1], [], []>} : vector<64x16xf32>, vector<16x16xf32>, vector<64x16xf32> -> vector<64x16xf32>
    %c0_34 = arith.constant 0 : index
    %c0_35 = arith.constant 0 : index
    %c0_36 = arith.constant 0 : index
    %171 = vector.load %arg5[%c0_34, %c0_35, %c0_36] : memref<3x1x16xf32, #tpu.memory_space<vmem>>, vector<1x1x16xf32>
    %172 = vector.shape_cast %171 : vector<1x1x16xf32> to vector<1x16xf32>
    %173 = vector.broadcast %172 : vector<1x16xf32> to vector<64x16xf32>
    %174 = arith.addf %170, %173 : vector<64x16xf32>
    %c1 = arith.constant 1 : index
    %c0_37 = arith.constant 0 : index
    %c0_38 = arith.constant 0 : index
    %175 = vector.load %arg4[%c1, %c0_37, %c0_38] : memref<3x16x16xf32, #tpu.memory_space<vmem>>, vector<1x16x16xf32>
    %176 = vector.shape_cast %175 : vector<1x16x16xf32> to vector<16x16xf32>
    %cst_39 = arith.constant dense<0.000000e+00> : vector<64x16xf32>
    %177 = tpu.matmul %174, %176, %cst_39 {dimension_numbers = #tpu.dot_dimension_numbers<[1], [0], [0], [1], [0, 0, 1, 1], [], []>} : vector<64x16xf32>, vector<16x16xf32>, vector<64x16xf32> -> vector<64x16xf32>
    %c1_40 = arith.constant 1 : index
    %c0_41 = arith.constant 0 : index
    %c0_42 = arith.constant 0 : index
    %178 = vector.load %arg5[%c1_40, %c0_41, %c0_42] : memref<3x1x16xf32, #tpu.memory_space<vmem>>, vector<1x1x16xf32>
    %179 = vector.shape_cast %178 : vector<1x1x16xf32> to vector<1x16xf32>
    %180 = vector.broadcast %179 : vector<1x16xf32> to vector<64x16xf32>
    %181 = arith.addf %177, %180 : vector<64x16xf32>
    %cst_43 = arith.constant 0.000000e+00 : f32
    %182 = vector.broadcast %cst_43 : f32 to vector<64x16xf32>
    %183 = arith.cmpf ogt, %181, %182 : vector<64x16xf32>
    %cst_44 = arith.constant 0.00999999977 : f32
    %184 = vector.broadcast %cst_44 : f32 to vector<64x16xf32>
    %185 = arith.mulf %184, %181 : vector<64x16xf32>
    %186 = arith.select %183, %181, %185 : vector<64x16xi1>, vector<64x16xf32>
    %c2 = arith.constant 2 : index
    %c0_45 = arith.constant 0 : index
    %c0_46 = arith.constant 0 : index
    %187 = vector.load %arg4[%c2, %c0_45, %c0_46] : memref<3x16x16xf32, #tpu.memory_space<vmem>>, vector<1x16x16xf32>
    %188 = vector.shape_cast %187 : vector<1x16x16xf32> to vector<16x16xf32>
    %cst_47 = arith.constant dense<0.000000e+00> : vector<64x16xf32>
    %189 = tpu.matmul %186, %188, %cst_47 {dimension_numbers = #tpu.dot_dimension_numbers<[1], [0], [0], [1], [0, 0, 1, 1], [], []>} : vector<64x16xf32>, vector<16x16xf32>, vector<64x16xf32> -> vector<64x16xf32>
    %c2_48 = arith.constant 2 : index
    %c0_49 = arith.constant 0 : index
    %c0_50 = arith.constant 0 : index
    %190 = vector.load %arg5[%c2_48, %c0_49, %c0_50] : memref<3x1x16xf32, #tpu.memory_space<vmem>>, vector<1x1x16xf32>
    %191 = vector.shape_cast %190 : vector<1x1x16xf32> to vector<1x16xf32>
    %192 = vector.broadcast %191 : vector<1x16xf32> to vector<64x16xf32>
    %193 = arith.addf %189, %192 : vector<64x16xf32>
    %cst_51 = arith.constant 0.000000e+00 : f32
    %194 = vector.broadcast %cst_51 : f32 to vector<64x16xf32>
    %195 = arith.cmpf ogt, %193, %194 : vector<64x16xf32>
    %cst_52 = arith.constant 0.00999999977 : f32
    %196 = vector.broadcast %cst_52 : f32 to vector<64x16xf32>
    %197 = arith.mulf %196, %193 : vector<64x16xf32>
    %198 = arith.select %195, %193, %197 : vector<64x16xi1>, vector<64x16xf32>
    %c0_53 = arith.constant 0 : index
    %c0_54 = arith.constant 0 : index
    %199 = vector.load %arg6[%c0_53, %c0_54] : memref<16x8xf32, #tpu.memory_space<vmem>>, vector<16x8xf32>
    %cst_55 = arith.constant dense<0.000000e+00> : vector<64x8xf32>
    %200 = tpu.matmul %198, %199, %cst_55 {dimension_numbers = #tpu.dot_dimension_numbers<[1], [0], [0], [1], [0, 0, 1, 1], [], []>} : vector<64x16xf32>, vector<16x8xf32>, vector<64x8xf32> -> vector<64x8xf32>
    %c0_56 = arith.constant 0 : index
    %c0_57 = arith.constant 0 : index
    %201 = vector.load %arg7[%c0_56, %c0_57] : memref<1x8xf32, #tpu.memory_space<vmem>>, vector<1x8xf32>
    %202 = vector.broadcast %201 : vector<1x8xf32> to vector<64x8xf32>
    %203 = arith.addf %200, %202 : vector<64x8xf32>
    %cst_58 = arith.constant 0.000000e+00 : f32
    %204 = vector.broadcast %cst_58 : f32 to vector<64x8xf32>
    %205 = arith.cmpf ogt, %203, %204 : vector<64x8xf32>
    %cst_59 = arith.constant 0.00999999977 : f32
    %206 = vector.broadcast %cst_59 : f32 to vector<64x8xf32>
    %207 = arith.mulf %206, %203 : vector<64x8xf32>
    %208 = arith.select %205, %203, %207 : vector<64x8xi1>, vector<64x8xf32>
    %209 = vector.shape_cast %208 : vector<64x8xf32> to vector<8x8x8xf32>
    %c0_60 = arith.constant 0 : index
    %c0_61 = arith.constant 0 : index
    %210 = vector.load %arg8[%c0_60, %c0_61] : memref<1x8xf32, #tpu.memory_space<vmem>>, vector<1x8xf32>
    %211 = vector.shape_cast %210 : vector<1x8xf32> to vector<1x1x8xf32>
    %212 = vector.broadcast %211 : vector<1x1x8xf32> to vector<8x8x8xf32>
    %213 = arith.mulf %209, %212 : vector<8x8x8xf32>
    %cst_62 = arith.constant dense<0.000000e+00> : vector<8x8xf32>
    %214 = vector.multi_reduction <add>, %213, %cst_62 [2] : vector<8x8x8xf32> to vector<8x8xf32>
    %c0_63 = arith.constant 0 : index
    %215 = memref.load %arg9[%c0_63] : memref<3xf32, #tpu.memory_space<smem>>
    %c1_64 = arith.constant 1 : index
    %216 = memref.load %arg9[%c1_64] : memref<3xf32, #tpu.memory_space<smem>>
    %c2_65 = arith.constant 2 : index
    %217 = memref.load %arg9[%c2_65] : memref<3xf32, #tpu.memory_space<smem>>
    %218 = vector.broadcast %217 : f32 to vector<8x8xf32>
    %219 = arith.addf %214, %218 : vector<8x8xf32>
    %220 = vector.broadcast %215 : f32 to vector<8x8xf32>
    %221 = arith.subf %219, %220 : vector<8x8xf32>
    %222 = vector.broadcast %216 : f32 to vector<8x8xf32>
    %223 = arith.mulf %222, %221 : vector<8x8xf32>
    %224 = arith.negf %223 : vector<8x8xf32>
    %225 = math.exp %224 : vector<8x8xf32>
    %cst_66 = arith.constant 1.000000e+00 : f32
    %226 = vector.broadcast %cst_66 : f32 to vector<8x8xf32>
    %227 = arith.addf %226, %225 : vector<8x8xf32>
    %228 = arith.divf %226, %227 : vector<8x8xf32>
    %c0_67 = arith.constant 0 : index
    %c0_68 = arith.constant 0 : index
    %229 = vector.load %arg10[%c0_67, %c0_68] : memref<8x8xf32, #tpu.memory_space<vmem>>, vector<8x8xf32>
    tpu.vector_store %arg10[%c0_67, %c0_68], %228 {strides = array<i32>} : memref<8x8xf32, #tpu.memory_space<vmem>>, vector<8x8xf32>,
    return
  }
  func.func @transform_0(%arg0: i32) -> (i32, i32, i32) {
    %c0_i32 = arith.constant 0 : i32
    %c0_i32_0 = arith.constant 0 : i32
    %c0_i32_1 = arith.constant 0 : i32
    return %arg0, %c0_i32, %c0_i32_0 : i32, i32, i32
  }
  func.func @transform_1(%arg0: i32) -> (i32, i32) {
    %c0_i32 = arith.constant 0 : i32
    %c0_i32_0 = arith.constant 0 : i32
    %c0_i32_1 = arith.constant 0 : i32
    return %c0_i32, %c0_i32_0 : i32, i32
  }
  func.func @transform_2(%arg0: i32) -> (i32, i32) {
    %c0_i32 = arith.constant 0 : i32
    %c0_i32_0 = arith.constant 0 : i32
    %c0_i32_1 = arith.constant 0 : i32
    return %c0_i32, %c0_i32_0 : i32, i32
  }
  func.func @transform_3(%arg0: i32) -> (i32, i32, i32) {
    %c0_i32 = arith.constant 0 : i32
    %c0_i32_0 = arith.constant 0 : i32
    %c0_i32_1 = arith.constant 0 : i32
    %c0_i32_2 = arith.constant 0 : i32
    return %c0_i32, %c0_i32_0, %c0_i32_1 : i32, i32, i32
  }
  func.func @transform_4(%arg0: i32) -> (i32, i32, i32) {
    %c0_i32 = arith.constant 0 : i32
    %c0_i32_0 = arith.constant 0 : i32
    %c0_i32_1 = arith.constant 0 : i32
    %c0_i32_2 = arith.constant 0 : i32
    return %c0_i32, %c0_i32_0, %c0_i32_1 : i32, i32, i32
  }
  func.func @transform_5(%arg0: i32) -> (i32, i32) {
    %c0_i32 = arith.constant 0 : i32
    %c0_i32_0 = arith.constant 0 : i32
    %c0_i32_1 = arith.constant 0 : i32
    return %c0_i32, %c0_i32_0 : i32, i32
  }
  func.func @transform_6(%arg0: i32) -> (i32, i32) {
    %c0_i32 = arith.constant 0 : i32
    %c0_i32_0 = arith.constant 0 : i32
    %c0_i32_1 = arith.constant 0 : i32
    return %c0_i32, %c0_i32_0 : i32, i32
  }
  func.func @transform_7(%arg0: i32) -> (i32, i32) {
    %c0_i32 = arith.constant 0 : i32
    %c0_i32_0 = arith.constant 0 : i32
    %c0_i32_1 = arith.constant 0 : i32
    return %c0_i32, %c0_i32_0 : i32, i32
  }
  func.func @transform_8(%arg0: i32) -> i32 {
    %c0_i32 = arith.constant 0 : i32
    %c0_i32_0 = arith.constant 0 : i32
    return %c0_i32 : i32
  }
  func.func @transform_9(%arg0: i32) -> (i32, i32) {
    %c0_i32 = arith.constant 0 : i32
    %c0_i32_0 = arith.constant 0 : i32
    return %arg0, %c0_i32 : i32, i32
  }
}

</mosaic_0001>

<llo_original>
// kernel: tpu_custom_call.1
$region0: #{tpu_custom_call.1}
  #allocation0 [shape = 'u32[]', space=smem, size = 0x4, offset = 0x4, fixed_abs, tag = 'smem constant byte address 0x4 - core index']
  #allocation1 [shape = 'u32[144,128]{1,0:T(1,128)}', space=vmem, size = 0x12000, scoped, tag = 'internal scratch']
  %s0 = inlined_call_operand.hbm [shape: f32[16,8,16], index: 0, kind: input, shape index: {}]
  %s1 = inlined_call_operand.vmem [shape: f32[16,48], index: 1, kind: input, shape index: {}]
  %s2 = inlined_call_operand.vmem [shape: f32[1,48], index: 2, kind: input, shape index: {}]
  %s3 = inlined_call_operand.hbm [shape: f32[3,16,16], index: 3, kind: input, shape index: {}]
  %s4 = inlined_call_operand.vmem [shape: f32[3,1,16], index: 4, kind: input, shape index: {}]
  %s5 = inlined_call_operand.vmem [shape: f32[16,8], index: 5, kind: input, shape index: {}]
  %s6 = inlined_call_operand.vmem [shape: f32[1,8], index: 6, kind: input, shape index: {}]
  %s7 = inlined_call_operand.vmem [shape: f32[1,8], index: 7, kind: input, shape index: {}]
  %s8 = inlined_call_operand.vmem [shape: f32[3], index: 8, kind: input, shape index: {}]
  %s9 = inlined_call_operand.vmem [shape: f32[16,8], index: 9, kind: output, shape index: {}]
  %s10 = sld [smem:[#allocation0]]
  $region81: #{tpu_custom_call.1} parent=0
    _
  %s12 = ssub.s32 1, %s10
  %s13 = scalar_select 0, %s12, %s10
  $region1: #{tpu_custom_call.1} parent=0
    #allocation2 [shape = 'u8[65536]{0}', space=vmem, size = 0x10000, scoped, tag = 'input window, operand 0']
    #allocation3 [shape = 's32[2]{0}', space=sflag, size = 0x8, scoped, tag = 'scoped memory for tpu_custom_call.1']
    #allocation4 [shape = 's32[2]{0}', space=sflag, size = 0x8, scoped, tag = 'scoped memory for tpu_custom_call.1']
    #allocation5 [shape = 'u8[24576]{0}', space=vmem, size = 0x6000, scoped, tag = 'input window, operand 3, single buffered']
    #allocation6 [shape = 's32[1]{0}', space=sflag, size = 0x4, scoped, tag = 'scoped memory for tpu_custom_call.1']
    #allocation7 [shape = 'u8[512]{0}', space=smem, size = 0x200, scoped, tag = 'input window, operand 8, single buffered']
    %14 = vsyncpa [#allocation3], 0
    %s15 = scalar_lea.sflag [#allocation3], 1
    %16 = vsyncpa %s15, 0
    %17 = vsyncpa [#allocation6], 0
    %18 = vsyncpa [#allocation4], 0
    loop: start=0, step=1, limit=4
    $region2: #{tpu_custom_call.1} parent=1 // loop_pre_header
      _
    $region3: #{tpu_custom_call.1} parent=1 // loop_header
      %s20 = sphi 0, %s24
      %p21 = scmp.ge.s32.totalorder %s20, 4
      %s30 = sphi 0, %s32
      %s33 = sphi 0, %s30
      %s34 = sphi 0, %s33
      %s50 = sphi 0, %s34
      %s54 = sphi 0, %s54
      %s56 = sphi 0, %s54
      %s57 = sphi 0, %s56
      %s71 = sphi 0, %s57
      %s75 = sphi 0, %s75
      %s77 = sphi 0, %s75
      %s78 = sphi 0, %s77
      %s92 = sphi 0, %s78
      %s96 = sphi 0, %s96
      %s98 = sphi 0, %s96
      %s99 = sphi 0, %s98
      %s113 = sphi 0, %s99
      %s117 = sphi 0, %s117
      %s119 = sphi 0, %s117
      %s120 = sphi 0, %s119
      %s134 = sphi 0, %s120
      %s138 = sphi 0, %s138
      %s140 = sphi 0, %s138
      %s141 = sphi 0, %s140
      %s155 = sphi 0, %s141
      %s159 = sphi 0, %s159
      %s161 = sphi 0, %s159
      %s162 = sphi 0, %s161
      %s176 = sphi 0, %s162
      %s180 = sphi 0, %s180
      %s182 = sphi 0, %s180
      %s183 = sphi 0, %s182
      %s197 = sphi 0, %s183
      %s201 = sphi 0, %s201
      %s203 = sphi 0, %s201
      %s204 = sphi 0, %s203
      %s218 = sphi 0, %s204
      %s224 = sphi 0, %s226
      %s227 = sphi 0, %s224
      %s228 = sphi 0, %s227
      %s244 = sphi 0, %s228
    $region4: #{tpu_custom_call.1} parent=1 // loop_header_branch
      %23 = sbr.rel (%p21) target = $region8
    $region5: #{tpu_custom_call.1} parent=1 // loop_body
      %s25 = ssub.s32 %s20, 1
      %s26 = ssub.s32 %s20, 2
      %s27 = sadd.s32 %s20, 1
      %s28 = ssub.s32 %s20, %s27
      %p29 = scmp.eq.s32.totalorder %s28, 0
      %s31 = sadd.s32 %s30, 1
      %s32 = scalar_select %p29, %s30, %s31
      %p35 = pneg %p29
      %p36 = scmp.eq.s32.totalorder %s20, 1
      %p37 = por %p35, %p36
      %p38 = scmp.ne.s32.totalorder %s30, %s33
      %p39 = scmp.eq.s32.totalorder %s20, 0
      %p40 = por %p38, %p39
      %p41 = scmp.ne.s32.totalorder %s30, %s33
      %p42 = scmp.eq.s32.totalorder %s25, 1
      %p43 = por %p41, %p42
      %p44 = scmp.ne.s32.totalorder %s33, %s34
      %p45 = scmp.eq.s32.totalorder %s25, 0
      %p46 = por %p44, %p45
      %p47 = scmp.ne.s32.totalorder %s33, %s34
      %p48 = scmp.eq.s32.totalorder %s26, 1
      %p49 = por %p47, %p48
      %p51 = scmp.ne.s32.totalorder %s34, %s50
      %p52 = scmp.eq.s32.totalorder %s26, 0
      %p53 = por %p51, %p52
      %s55 = sadd.s32 %s54, 1
      %p58 = scmp.eq.s32.totalorder %s20, 1
      %p59 = scmp.ne.s32.totalorder %s54, %s56
      %p60 = scmp.eq.s32.totalorder %s20, 0
      %p61 = por %p59, %p60
      %p62 = scmp.ne.s32.totalorder %s54, %s56
      %p63 = scmp.eq.s32.totalorder %s25, 1
      %p64 = por %p62, %p63
      %p65 = scmp.ne.s32.totalorder %s56, %s57
      %p66 = scmp.eq.s32.totalorder %s25, 0
      %p67 = por %p65, %p66
      %p68 = scmp.ne.s32.totalorder %s56, %s57
      %p69 = scmp.eq.s32.totalorder %s26, 1
      %p70 = por %p68, %p69
      %p72 = scmp.ne.s32.totalorder %s57, %s71
      %p73 = scmp.eq.s32.totalorder %s26, 0
      %p74 = por %p72, %p73
      %s76 = sadd.s32 %s75, 1
      %p79 = scmp.eq.s32.totalorder %s20, 1
      %p80 = scmp.ne.s32.totalorder %s75, %s77
      %p81 = scmp.eq.s32.totalorder %s20, 0
      %p82 = por %p80, %p81
      %p83 = scmp.ne.s32.totalorder %s75, %s77
      %p84 = scmp.eq.s32.totalorder %s25, 1
      %p85 = por %p83, %p84
      %p86 = scmp.ne.s32.totalorder %s77, %s78
      %p87 = scmp.eq.s32.totalorder %s25, 0
      %p88 = por %p86, %p87
      %p89 = scmp.ne.s32.totalorder %s77, %s78
      %p90 = scmp.eq.s32.totalorder %s26, 1
      %p91 = por %p89, %p90
      %p93 = scmp.ne.s32.totalorder %s78, %s92
      %p94 = scmp.eq.s32.totalorder %s26, 0
      %p95 = por %p93, %p94
      %s97 = sadd.s32 %s96, 1
      %p100 = scmp.eq.s32.totalorder %s20, 1
      %p101 = scmp.ne.s32.totalorder %s96, %s98
      %p102 = scmp.eq.s32.totalorder %s20, 0
      %p103 = por %p101, %p102
      %p104 = scmp.ne.s32.totalorder %s96, %s98
      %p105 = scmp.eq.s32.totalorder %s25, 1
      %p106 = por %p104, %p105
      %p107 = scmp.ne.s32.totalorder %s98, %s99
      %p108 = scmp.eq.s32.totalorder %s25, 0
      %p109 = por %p107, %p108
      %p110 = scmp.ne.s32.totalorder %s98, %s99
      %p111 = scmp.eq.s32.totalorder %s26, 1
      %p112 = por %p110, %p111
      %p114 = scmp.ne.s32.totalorder %s99, %s113
      %p115 = scmp.eq.s32.totalorder %s26, 0
      %p116 = por %p114, %p115
      %s118 = sadd.s32 %s117, 1
      %p121 = scmp.eq.s32.totalorder %s20, 1
      %p122 = scmp.ne.s32.totalorder %s117, %s119
      %p123 = scmp.eq.s32.totalorder %s20, 0
      %p124 = por %p122, %p123
      %p125 = scmp.ne.s32.totalorder %s117, %s119
      %p126 = scmp.eq.s32.totalorder %s25, 1
      %p127 = por %p125, %p126
      %p128 = scmp.ne.s32.totalorder %s119, %s120
      %p129 = scmp.eq.s32.totalorder %s25, 0
      %p130 = por %p128, %p129
      %p131 = scmp.ne.s32.totalorder %s119, %s120
      %p132 = scmp.eq.s32.totalorder %s26, 1
      %p133 = por %p131, %p132
      %p135 = scmp.ne.s32.totalorder %s120, %s134
      %p136 = scmp.eq.s32.totalorder %s26, 0
      %p137 = por %p135, %p136
      %s139 = sadd.s32 %s138, 1
      %p142 = scmp.eq.s32.totalorder %s20, 1
      %p143 = scmp.ne.s32.totalorder %s138, %s140
      %p144 = scmp.eq.s32.totalorder %s20, 0
      %p145 = por %p143, %p144
      %p146 = scmp.ne.s32.totalorder %s138, %s140
      %p147 = scmp.eq.s32.totalorder %s25, 1
      %p148 = por %p146, %p147
      %p149 = scmp.ne.s32.totalorder %s140, %s141
      %p150 = scmp.eq.s32.totalorder %s25, 0
      %p151 = por %p149, %p150
      %p152 = scmp.ne.s32.totalorder %s140, %s141
      %p153 = scmp.eq.s32.totalorder %s26, 1
      %p154 = por %p152, %p153
      %p156 = scmp.ne.s32.totalorder %s141, %s155
      %p157 = scmp.eq.s32.totalorder %s26, 0
      %p158 = por %p156, %p157
      %s160 = sadd.s32 %s159, 1
      %p163 = scmp.eq.s32.totalorder %s20, 1
      %p164 = scmp.ne.s32.totalorder %s159, %s161
      %p165 = scmp.eq.s32.totalorder %s20, 0
      %p166 = por %p164, %p165
      %p167 = scmp.ne.s32.totalorder %s159, %s161
      %p168 = scmp.eq.s32.totalorder %s25, 1
      %p169 = por %p167, %p168
      %p170 = scmp.ne.s32.totalorder %s161, %s162
      %p171 = scmp.eq.s32.totalorder %s25, 0
      %p172 = por %p170, %p171
      %p173 = scmp.ne.s32.totalorder %s161, %s162
      %p174 = scmp.eq.s32.totalorder %s26, 1
      %p175 = por %p173, %p174
      %p177 = scmp.ne.s32.totalorder %s162, %s176
      %p178 = scmp.eq.s32.totalorder %s26, 0
      %p179 = por %p177, %p178
      %s181 = sadd.s32 %s180, 1
      %p184 = scmp.eq.s32.totalorder %s20, 1
      %p185 = scmp.ne.s32.totalorder %s180, %s182
      %p186 = scmp.eq.s32.totalorder %s20, 0
      %p187 = por %p185, %p186
      %p188 = scmp.ne.s32.totalorder %s180, %s182
      %p189 = scmp.eq.s32.totalorder %s25, 1
      %p190 = por %p188, %p189
      %p191 = scmp.ne.s32.totalorder %s182, %s183
      %p192 = scmp.eq.s32.totalorder %s25, 0
      %p193 = por %p191, %p192
      %p194 = scmp.ne.s32.totalorder %s182, %s183
      %p195 = scmp.eq.s32.totalorder %s26, 1
      %p196 = por %p194, %p195
      %p198 = scmp.ne.s32.totalorder %s183, %s197
      %p199 = scmp.eq.s32.totalorder %s26, 0
      %p200 = por %p198, %p199
      %s202 = sadd.s32 %s201, 1
      %p205 = scmp.eq.s32.totalorder %s20, 1
      %p206 = scmp.ne.s32.totalorder %s201, %s203
      %p207 = scmp.eq.s32.totalorder %s20, 0
      %p208 = por %p206, %p207
      %p209 = scmp.ne.s32.totalorder %s201, %s203
      %p210 = scmp.eq.s32.totalorder %s25, 1
      %p211 = por %p209, %p210
      %p212 = scmp.ne.s32.totalorder %s203, %s204
      %p213 = scmp.eq.s32.totalorder %s25, 0
      %p214 = por %p212, %p213
      %p215 = scmp.ne.s32.totalorder %s203, %s204
      %p216 = scmp.eq.s32.totalorder %s26, 1
      %p217 = por %p215, %p216
      %p219 = scmp.ne.s32.totalorder %s204, %s218
      %p220 = scmp.eq.s32.totalorder %s26, 0
      %p221 = por %p219, %p220
      %s222 = ssub.s32 %s20, %s27
      %p223 = scmp.eq.s32.totalorder %s222, 0
      %s225 = sadd.s32 %s224, 1
      %s226 = scalar_select %p223, %s224, %s225
      %p229 = pneg %p223
      %p230 = scmp.eq.s32.totalorder %s20, 1
      %p231 = por %p229, %p230
      %p232 = scmp.ne.s32.totalorder %s224, %s227
      %p233 = scmp.eq.s32.totalorder %s20, 0
      %p234 = por %p232, %p233
      %p235 = scmp.ne.s32.totalorder %s224, %s227
      %p236 = scmp.eq.s32.totalorder %s25, 1
      %p237 = por %p235, %p236
      %p238 = scmp.ne.s32.totalorder %s227, %s228
      %p239 = scmp.eq.s32.totalorder %s25, 0
      %p240 = por %p238, %p239
      %p241 = scmp.ne.s32.totalorder %s227, %s228
      %p242 = scmp.eq.s32.totalorder %s26, 1
      %p243 = por %p241, %p242
      %p245 = scmp.ne.s32.totalorder %s228, %s244
      %p246 = scmp.eq.s32.totalorder %s26, 0
      %p247 = por %p245, %p246
      %p248 = scmp.le.s32.totalorder 1, %s20
      %p249 = scmp.lt.s32.totalorder %s20, 3
      %p250 = pnand %p248, %p249
      %p251 = pneg %p250
      // Predicated region
      $region9: #{tpu_custom_call.1} parent=5 // pred_check
        _
      $region10: #{tpu_custom_call.1} parent=5 // pred_check_branch
        %253 = sbr.rel (%p250) target = $region12
      $region11: #{tpu_custom_call.1} parent=5 // pred_region
        %s254 = ssub.s32 %s20, 1
        // Predicated region
        $region13: #{tpu_custom_call.1} parent=11 // pred_check
          %p255 = pneg %p67
        $region14: #{tpu_custom_call.1} parent=11 // pred_check_branch
          %257 = sbr.rel (%p255) target = $region16
        $region15: #{tpu_custom_call.1} parent=11 // pred_region
          _
        $region16: #{tpu_custom_call.1} parent=11 // pred_fallthru
          _
        // Predicated region
        $region17: #{tpu_custom_call.1} parent=11 // pred_check
          %p258 = pneg %p88
        $region18: #{tpu_custom_call.1} parent=11 // pred_check_branch
          %260 = sbr.rel (%p258) target = $region20
        $region19: #{tpu_custom_call.1} parent=11 // pred_region
          _
        $region20: #{tpu_custom_call.1} parent=11 // pred_fallthru
          _
        // Predicated region
        $region21: #{tpu_custom_call.1} parent=11 // pred_check
          %p261 = pneg %p109
        $region22: #{tpu_custom_call.1} parent=11 // pred_check_branch
          %263 = sbr.rel (%p261) target = $region24
        $region23: #{tpu_custom_call.1} parent=11 // pred_region
          %s265 = ssub.s32 768, 768
          %266 = vsyncadd [#allocation6], %s265
          %s267 = sshll.u32 [#allocation5], 4
          %s268 = int_to_ptr.vmem [resolvable:$true] %s267
          %273 = dma.hbm_to_vmem [thread:$0]  %s3, 768, %s268, [#allocation6], 128, 128, 8
        $region24: #{tpu_custom_call.1} parent=11 // pred_fallthru
          _
        // Predicated region
        $region25: #{tpu_custom_call.1} parent=11 // pred_check
          %p274 = pneg %p130
        $region26: #{tpu_custom_call.1} parent=11 // pred_check_branch
          %276 = sbr.rel (%p274) target = $region28
        $region27: #{tpu_custom_call.1} parent=11 // pred_region
          _
        $region28: #{tpu_custom_call.1} parent=11 // pred_fallthru
          _
        // Predicated region
        $region29: #{tpu_custom_call.1} parent=11 // pred_check
          %p277 = pneg %p151
        $region30: #{tpu_custom_call.1} parent=11 // pred_check_branch
          %279 = sbr.rel (%p277) target = $region32
        $region31: #{tpu_custom_call.1} parent=11 // pred_region
          _
        $region32: #{tpu_custom_call.1} parent=11 // pred_fallthru
          _
        // Predicated region
        $region33: #{tpu_custom_call.1} parent=11 // pred_check
          %p280 = pneg %p172
        $region34: #{tpu_custom_call.1} parent=11 // pred_check_branch
          %282 = sbr.rel (%p280) target = $region36
        $region35: #{tpu_custom_call.1} parent=11 // pred_region
          _
        $region36: #{tpu_custom_call.1} parent=11 // pred_fallthru
          _
        // Predicated region
        $region37: #{tpu_custom_call.1} parent=11 // pred_check
          %p283 = pneg %p193
        $region38: #{tpu_custom_call.1} parent=11 // pred_check_branch
          %285 = sbr.rel (%p283) target = $region40
        $region39: #{tpu_custom_call.1} parent=11 // pred_region
          _
        $region40: #{tpu_custom_call.1} parent=11 // pred_fallthru
          _
        // Predicated region
        $region41: #{tpu_custom_call.1} parent=11 // pred_check
          %p286 = pneg %p214
        $region42: #{tpu_custom_call.1} parent=11 // pred_check_branch
          %288 = sbr.rel (%p286) target = $region44
        $region43: #{tpu_custom_call.1} parent=11 // pred_region
          %s290 = ssub.s32 16, 16
          %291 = vsyncadd [#allocation4], %s290
          %s293 = sshll.u32 %s8, 4
          %s294 = int_to_ptr.vmem [resolvable:$true] %s293
          %296 = dma.vmem_to_smem %s294, 16, [#allocation7], [#allocation4]
        $region44: #{tpu_custom_call.1} parent=11 // pred_fallthru
          _
      $region12: #{tpu_custom_call.1} parent=5 // pred_fallthru
        _
      %p297 = scmp.lt.s32.totalorder %s20, 2
      // Predicated region
      $region45: #{tpu_custom_call.1} parent=5 // pred_check
        %p298 = pneg %p297
      $region46: #{tpu_custom_call.1} parent=5 // pred_check_branch
        %300 = sbr.rel (%p298) target = $region48
      $region47: #{tpu_custom_call.1} parent=5 // pred_region
        // Predicated region
        $region49: #{tpu_custom_call.1} parent=47 // pred_check
          %p301 = pneg %p40
        $region50: #{tpu_custom_call.1} parent=47 // pred_check_branch
          %303 = sbr.rel (%p301) target = $region52
        $region51: #{tpu_custom_call.1} parent=47 // pred_region
          %s304 = sand.u32 %s30, 1
          %s305 = scalar_lea.sflag [#allocation3], %s304
          %s306 = sand.u32 %s30, 1
          %s307 = smul.addr %s306, 64
          %s308 = scalar_lea.vmem [#allocation2], %s307
          %s309 = smul.u32 8, %s20
          %s311 = ssub.s32 1024, 1024
          %312 = vsyncadd %s305, %s311
          %s313 = smul.addr %s309, 128
          %s314 = scalar_lea.hbm %s0, %s313
          %s315 = sshll.u32 %s308, 4
          %s316 = int_to_ptr.vmem [resolvable:$true] %s315
          %321 = dma.hbm_to_vmem [thread:$0]  %s314, 1024, %s316, %s305, 128, 128, 8
        $region52: #{tpu_custom_call.1} parent=47 // pred_fallthru
          _
      $region48: #{tpu_custom_call.1} parent=5 // pred_fallthru
        _
      %p322 = scmp.le.s32.totalorder 1, %s20
      %p323 = scmp.lt.s32.totalorder %s20, 3
      %p324 = pnand %p322, %p323
      %p325 = pneg %p324
      // Predicated region
      $region53: #{tpu_custom_call.1} parent=5 // pred_check
        _
      $region54: #{tpu_custom_call.1} parent=5 // pred_check_branch
        %327 = sbr.rel (%p324) target = $region56
      $region55: #{tpu_custom_call.1} parent=5 // pred_region
        %s328 = ssub.s32 %s20, 1
        %s329 = sand.u32 %s33, 1
        %s330 = scalar_lea.sflag [#allocation3], %s329
        %s331 = sand.u32 %s33, 1
        %s332 = smul.addr %s331, 64
        %s333 = scalar_lea.vmem [#allocation2], %s332
        // Predicated region
        $region57: #{tpu_custom_call.1} parent=55 // pred_check
          %p334 = pneg %p46
        $region58: #{tpu_custom_call.1} parent=55 // pred_check_branch
          %336 = sbr.rel (%p334) target = $region60
        $region59: #{tpu_custom_call.1} parent=55 // pred_region
          %337 = dma.done %s330, 1024
        $region60: #{tpu_custom_call.1} parent=55 // pred_fallthru
          _
        // Predicated region
        $region61: #{tpu_custom_call.1} parent=55 // pred_check
          %p338 = pneg %p109
        $region62: #{tpu_custom_call.1} parent=55 // pred_check_branch
          %340 = sbr.rel (%p338) target = $region64
        $region63: #{tpu_custom_call.1} parent=55 // pred_region
          %341 = dma.done [#allocation6], 768
        $region64: #{tpu_custom_call.1} parent=55 // pred_fallthru
          _
        // Predicated region
        $region65: #{tpu_custom_call.1} parent=55 // pred_check
          %p342 = pneg %p214
        $region66: #{tpu_custom_call.1} parent=55 // pred_check_branch
          %344 = sbr.rel (%p342) target = $region68
        $region67: #{tpu_custom_call.1} parent=55 // pred_region
          %345 = dma.done [#allocation4], 16
        $region68: #{tpu_custom_call.1} parent=55 // pred_fallthru
          _
        %346 = sfence
        %s347 = sand.u32 %s33, 1
        %s348 = scalar_lea.sflag [#allocation3], %s347
        %s349 = sand.u32 %s33, 1
        %s350 = smul.addr %s349, 64
        %s351 = scalar_lea.vmem [#allocation2], %s350
        %p352 = pneg %p46
        %p353 = pneg %p43
        %p354 = pneg %p67
        %p355 = pneg %p64
        %p356 = pneg %p88
        %p357 = pneg %p85
        %p358 = pneg %p109
        %p359 = pneg %p106
        %p360 = pneg %p130
        %p361 = pneg %p127
        %p362 = pneg %p151
        %p363 = pneg %p148
        %p364 = pneg %p172
        %p365 = pneg %p169
        %p366 = pneg %p193
        %p367 = pneg %p190
        %p368 = pneg %p214
        %p369 = pneg %p211
        %p370 = pneg %p240
        %p371 = pneg %p237
        %p372 = scmp.lt.s32.totalorder %s25, 1
        %s373 = scalar_select %p372, %s25, 1
        %s374 = smul.addr %s373, 8
        %s375 = scalar_lea.vmem %s9, %s374
        %s376 = smul.u32 8, %s25
        %p377 = scmp.lt.s32.totalorder %s25, 1
        %s378 = scalar_select %p377, %s25, 1
        %s379 = smul.addr %s378, 8
        %s380 = scalar_lea.vmem %s9, %s379
        %v381 = vld [vmem:[%s333] sm:$0xff]
        %v382 = vld [vmem:[%s333 + $0x8] sm:$0xff]
        %v383 = vld [vmem:[%s333 + $0x10] sm:$0xff]
        %v384 = vld [vmem:[%s333 + $0x18] sm:$0xff]
        %v385 = vld [vmem:[%s333 + $0x20] sm:$0xff]
        %v386 = vld [vmem:[%s333 + $0x28] sm:$0xff]
        %v387 = vld [vmem:[%s333 + $0x30] sm:$0xff]
        %v388 = vld [vmem:[%s333 + $0x38] sm:$0xff]
        %v389 = vld [vmem:[%s1] sm:$0xff]
        %v390 = vld [vmem:[%s1 + $0x8] sm:$0xff]
        %v391 = vld [vmem:[%s2] sm:$0x1]
        %v393 = vlaneseq
        %v394 = vshrl.u32 %v393, 7
        %v395 = vsub.s32 0, %v394
        %v396 = vrot.slane %v391, %v395
        %vm398 = vcmask 130048
        %v400 = vsel %vm398, %v381, 0
        %v403 = vsel %vm398, %v382, 0
        %v406 = vsel %vm398, %v383, 0
        %v409 = vsel %vm398, %v384, 0
        %v412 = vsel %vm398, %v385, 0
        %v415 = vsel %vm398, %v386, 0
        %v418 = vsel %vm398, %v387, 0
        %v421 = vsel %vm398, %v388, 0
        %423 = vmatprep.subr.mxu0 0.0
        %424 = vmatpush1.msra.mxu0 %v389
        %425 = vmatprep.subr.mxu0 0.0
        %426 = vmatpush1.msra.mxu0 %v390
        %427 = vmatprep.subr.mxu0 0.0
        %428 = vmatpush1.msra.mxu0 0.0
        %429 = vmatprep.subr.mxu0 0.0
        %430 = vmatpush1.msra.mxu0 0.0
        %431 = vmatprep.subr.mxu0 0.0
        %432 = vmatpush1.msra.mxu0 0.0
        %433 = vmatprep.subr.mxu0 0.0
        %434 = vmatpush1.msra.mxu0 0.0
        %435 = vmatprep.subr.mxu0 0.0
        %436 = vmatpush1.msra.mxu0 0.0
        %437 = vmatprep.subr.mxu0 0.0
        %438 = vmatpush1.msra.mxu0 0.0
        %439 = vmatprep.subr.mxu0 0.0
        %440 = vmatpush1.msra.mxu0 0.0
        %441 = vmatprep.subr.mxu0 0.0
        %442 = vmatpush1.msra.mxu0 0.0
        %443 = vmatprep.subr.mxu0 0.0
        %444 = vmatpush1.msra.mxu0 0.0
        %445 = vmatprep.subr.mxu0 0.0
        %446 = vmatpush1.msra.mxu0 0.0
        %447 = vmatprep.subr.mxu0 0.0
        %448 = vmatpush1.msra.mxu0 0.0
        %449 = vmatprep.subr.mxu0 0.0
        %450 = vmatpush1.msra.mxu0 0.0
        %451 = vmatprep.subr.mxu0 0.0
        %452 = vmatpush1.msra.mxu0 0.0
        %453 = vmatprep.subr.mxu0 0.0
        %454 = vmatpush1.msra.mxu0 0.0
        %455 = vmatprep.subr.mxu0 0.0
        %456 = vmatpush1.msra.mxu0 0.0
        %457 = vmatprep.subr.mxu0 0.0
        %458 = vmatpush1.msra.mxu0 0.0
        %459 = vmatprep.subr.mxu0 0.0
        %460 = vmatpush1.msra.mxu0 0.0
        %461 = vmatprep.subr.mxu0 0.0
        %462 = vmatpush1.msra.mxu0 0.0
        %463 = vmatprep.subr.mxu0 0.0
        %464 = vmatpush1.msra.mxu0 0.0
        %465 = vmatprep.subr.mxu0 0.0
        %466 = vmatpush1.msra.mxu0 0.0
        %467 = vmatprep.subr.mxu0 0.0
        %468 = vmatpush1.msra.mxu0 0.0
        %469 = vmatprep.subr.mxu0 0.0
        %470 = vmatpush1.msra.mxu0 0.0
        %471 = vmatprep.subr.mxu0 0.0
        %472 = vmatpush1.msra.mxu0 0.0
        %473 = vmatprep.subr.mxu0 0.0
        %474 = vmatpush1.msra.mxu0 0.0
        %475 = vmatprep.subr.mxu0 0.0
        %476 = vmatpush1.msra.mxu0 0.0
        %477 = vmatprep.subr.mxu0 0.0
        %478 = vmatpush1.msra.mxu0 0.0
        %479 = vmatprep.subr.mxu0 0.0
        %480 = vmatpush1.msra.mxu0 0.0
        %481 = vmatprep.subr.mxu0 0.0
        %482 = vmatpush1.msra.mxu0 0.0
        %483 = vmatprep.subr.mxu0 0.0
        %484 = vmatpush1.msra.mxu0 0.0
        %485 = vmatprep.subr.mxu0 0.0
        %486 = vmatpush1.msra.mxu0 0.0
        %487 = vmatprep.mubr.f32.mxu0 0.0
        %488 = vmatmul.mubr.f32.gmra.mrb[0].mxu0 %v400
        %v489 = vpop.f32.mrb[0].mxu0
        %v490 = vadd.f32 %v396, %v489
        %v491 = vpop.f32.mrb[0].mxu0
        %492 = vmatprep.mubr.f32.mxu0 0.0
        %493 = vmatmul.mubr.f32.gmra.mrb[0].mxu0 %v403
        %v494 = vpop.f32.mrb[0].mxu0
        %v495 = vadd.f32 %v396, %v494
        %v496 = vpop.f32.mrb[0].mxu0
        %497 = vmatprep.mubr.f32.mxu0 0.0
        %498 = vmatmul.mubr.f32.gmra.mrb[0].mxu0 %v406
        %v499 = vpop.f32.mrb[0].mxu0
        %v500 = vadd.f32 %v396, %v499
        %v501 = vpop.f32.mrb[0].mxu0
        %502 = vmatprep.mubr.f32.mxu0 0.0
        %503 = vmatmul.mubr.f32.gmra.mrb[0].mxu0 %v409
        %v504 = vpop.f32.mrb[0].mxu0
        %v505 = vadd.f32 %v396, %v504
        %v506 = vpop.f32.mrb[0].mxu0
        %507 = vmatprep.mubr.f32.mxu0 0.0
        %508 = vmatmul.mubr.f32.gmra.mrb[0].mxu0 %v412
        %v509 = vpop.f32.mrb[0].mxu0
        %v510 = vadd.f32 %v396, %v509
        %v511 = vpop.f32.mrb[0].mxu0
        %512 = vmatprep.mubr.f32.mxu0 0.0
        %513 = vmatmul.mubr.f32.gmra.mrb[0].mxu0 %v415
        %v514 = vpop.f32.mrb[0].mxu0
        %v515 = vadd.f32 %v396, %v514
        %v516 = vpop.f32.mrb[0].mxu0
        %517 = vmatprep.mubr.f32.mxu0 0.0
        %518 = vmatmul.mubr.f32.gmra.mrb[0].mxu0 %v418
        %v519 = vpop.f32.mrb[0].mxu0
        %v520 = vadd.f32 %v396, %v519
        %v521 = vpop.f32.mrb[0].mxu0
        %522 = vmatprep.mubr.f32.mxu0 0.0
        %523 = vmatmul.mubr.f32.gmra.mrb[0].mxu0 %v421
        %v524 = vpop.f32.mrb[0].mxu0
        %v525 = vadd.f32 %v396, %v524
        %v526 = vpop.f32.mrb[0].mxu0
        %527 = vdwg.mxu0
        %v529 = vcombine.high %v490, %v490
        %v531 = vunpack.c.l.s4 1966171168
        %v532 = vunpack.c.0.s8 %v531
        %v533 = vlaneseq
        %v534 = vshrl.u32 %v533, 7
        %v535 = vsub.s32 %v532, %v534
        %v536 = vrot.slane %v490, %v535
        %v538 = vunpack.c.l.s4 1966171168
        %v539 = vunpack.c.0.s8 %v538
        %v540 = vlaneseq
        %v541 = vshrl.u32 %v540, 7
        %v542 = vsub.s32 %v539, %v541
        %v543 = vrot.slane %v529, %v542
        %v544 = vcombine.high %v536, %v536
        %v545 = vcombine.high %v543, %v543
        %v547 = vunpack.c.l.s4 1966171168
        %v548 = vunpack.c.0.s8 %v547
        %v549 = vlaneseq
        %v550 = vshrl.u32 %v549, 7
        %v551 = vsub.s32 %v548, %v550
        %v552 = vrot.slane %v536, %v551
        %v554 = vunpack.c.l.s4 1966171168
        %v555 = vunpack.c.0.s8 %v554
        %v556 = vlaneseq
        %v557 = vshrl.u32 %v556, 7
        %v558 = vsub.s32 %v555, %v557
        %v559 = vrot.slane %v543, %v558
        %v561 = vunpack.c.l.s4 1966171168
        %v562 = vunpack.c.0.s8 %v561
        %v563 = vlaneseq
        %v564 = vshrl.u32 %v563, 7
        %v565 = vsub.s32 %v562, %v564
        %v566 = vrot.slane %v544, %v565
        %v568 = vunpack.c.l.s4 1966171168
        %v569 = vunpack.c.0.s8 %v568
        %v570 = vlaneseq
        %v571 = vshrl.u32 %v570, 7
        %v572 = vsub.s32 %v569, %v571
        %v573 = vrot.slane %v545, %v572
        %v574 = vcombine.high %v552, %v552
        %v575 = vcombine.high %v559, %v559
        %v576 = vcombine.high %v566, %v566
        %v577 = vcombine.high %v573, %v573
        %v578 = vlaneseq
        %v579 = vshrl.u32 %v578, 7
        %v580 = vsub.s32 0, %v579
        %v581 = vrot.slane %v552, %v580
        %v582 = vlaneseq
        %v583 = vshrl.u32 %v582, 7
        %v584 = vsub.s32 0, %v583
        %v585 = vrot.slane %v566, %v584
        %v586 = vlaneseq
        %v587 = vshrl.u32 %v586, 7
        %v588 = vsub.s32 0, %v587
        %v589 = vrot.slane %v574, %v588
        %v590 = vlaneseq
        %v591 = vshrl.u32 %v590, 7
        %v592 = vsub.s32 0, %v591
        %v593 = vrot.slane %v576, %v592
        %v594 = vlaneseq
        %v595 = vshrl.u32 %v594, 7
        %v596 = vsub.s32 0, %v595
        %v597 = vrot.slane %v559, %v596
        %v598 = vlaneseq
        %v599 = vshrl.u32 %v598, 7
        %v600 = vsub.s32 0, %v599
        %v601 = vrot.slane %v573, %v600
        %v602 = vlaneseq
        %v603 = vshrl.u32 %v602, 7
        %v604 = vsub.s32 0, %v603
        %v605 = vrot.slane %v575, %v604
        %v606 = vlaneseq
        %v607 = vshrl.u32 %v606, 7
        %v608 = vsub.s32 0, %v607
        %v609 = vrot.slane %v577, %v608
        %618 = vrot.lane.b32.xlu0 %v490, 112
        %v619 = vpop.permute.xlu0 %618
        %v621 = vmul.f32 %v581, %v619
        %v622 = vmul.f32 %v585, %v619
        %v623 = vmul.f32 %v589, %v619
        %v624 = vmul.f32 %v593, %v619
        %v625 = vmul.f32 %v597, %v619
        %v626 = vmul.f32 %v601, %v619
        %v627 = vmul.f32 %v605, %v619
        %v628 = vmul.f32 %v609, %v619
        %v629 = vsel %vm398, %v621, -inf
        %v630 = vrot.slane %v629, 4
        %v631 = vmax.f32 %v629, %v630
        %v632 = vrot.slane %v631, 2
        %v633 = vmax.f32 %v631, %v632
        %v634 = vrot.slane %v633, 1
        %v635 = vmax.f32 %v633, %v634
        %v636 = vsel %vm398, %v622, -inf
        %v637 = vrot.slane %v636, 4
        %v638 = vmax.f32 %v636, %v637
        %v639 = vrot.slane %v638, 2
        %v640 = vmax.f32 %v638, %v639
        %v641 = vrot.slane %v640, 1
        %v642 = vmax.f32 %v640, %v641
        %v643 = vsel %vm398, %v623, -inf
        %v644 = vrot.slane %v643, 4
        %v645 = vmax.f32 %v643, %v644
        %v646 = vrot.slane %v645, 2
        %v647 = vmax.f32 %v645, %v646
        %v648 = vrot.slane %v647, 1
        %v649 = vmax.f32 %v647, %v648
        %v650 = vsel %vm398, %v624, -inf
        %v651 = vrot.slane %v650, 4
        %v652 = vmax.f32 %v650, %v651
        %v653 = vrot.slane %v652, 2
        %v654 = vmax.f32 %v652, %v653
        %v655 = vrot.slane %v654, 1
        %v656 = vmax.f32 %v654, %v655
        %v657 = vsel %vm398, %v625, -inf
        %v658 = vrot.slane %v657, 4
        %v659 = vmax.f32 %v657, %v658
        %v660 = vrot.slane %v659, 2
        %v661 = vmax.f32 %v659, %v660
        %v662 = vrot.slane %v661, 1
        %v663 = vmax.f32 %v661, %v662
        %v664 = vsel %vm398, %v626, -inf
        %v665 = vrot.slane %v664, 4
        %v666 = vmax.f32 %v664, %v665
        %v667 = vrot.slane %v666, 2
        %v668 = vmax.f32 %v666, %v667
        %v669 = vrot.slane %v668, 1
        %v670 = vmax.f32 %v668, %v669
        %v671 = vsel %vm398, %v627, -inf
        %v672 = vrot.slane %v671, 4
        %v673 = vmax.f32 %v671, %v672
        %v674 = vrot.slane %v673, 2
        %v675 = vmax.f32 %v673, %v674
        %v676 = vrot.slane %v675, 1
        %v677 = vmax.f32 %v675, %v676
        %v678 = vsel %vm398, %v628, -inf
        %v679 = vrot.slane %v678, 4
        %v680 = vmax.f32 %v678, %v679
        %v681 = vrot.slane %v680, 2
        %v682 = vmax.f32 %v680, %v681
        %v683 = vrot.slane %v682, 1
        %v684 = vmax.f32 %v682, %v683
        %v685 = vsub.f32 %v621, %v635
        %v686 = vsub.f32 %v622, %v642
        %v687 = vsub.f32 %v623, %v649
        %v688 = vsub.f32 %v624, %v656
        %v689 = vsub.f32 %v625, %v663
        %v690 = vsub.f32 %v626, %v670
        %v691 = vsub.f32 %v627, %v677
        %v692 = vsub.f32 %v628, %v684
        %v693 = vmul.f32 %v685, 1.442695
        %v694 = vpow.pop %v693
        %v695 = vmul.f32 %v686, 1.442695
        %v696 = vpow.pop %v695
        %v697 = vmul.f32 %v687, 1.442695
        %v698 = vpow.pop %v697
        %v699 = vmul.f32 %v688, 1.442695
        %v700 = vpow.pop %v699
        %v701 = vmul.f32 %v689, 1.442695
        %v702 = vpow.pop %v701
        %v703 = vmul.f32 %v690, 1.442695
        %v704 = vpow.pop %v703
        %v705 = vmul.f32 %v691, 1.442695
        %v706 = vpow.pop %v705
        %v707 = vmul.f32 %v692, 1.442695
        %v708 = vpow.pop %v707
        %v709 = vsel %vm398, %v694, 0.0
        %v710 = vrot.slane %v709, 4
        %v711 = vadd.f32 %v709, %v710
        %v712 = vrot.slane %v711, 2
        %v713 = vadd.f32 %v711, %v712
        %v714 = vrot.slane %v713, 1
        %v715 = vadd.f32 %v713, %v714
        %v716 = vsel %vm398, %v696, 0.0
        %v717 = vrot.slane %v716, 4
        %v718 = vadd.f32 %v716, %v717
        %v719 = vrot.slane %v718, 2
        %v720 = vadd.f32 %v718, %v719
        %v721 = vrot.slane %v720, 1
        %v722 = vadd.f32 %v720, %v721
        %v723 = vsel %vm398, %v698, 0.0
        %v724 = vrot.slane %v723, 4
        %v725 = vadd.f32 %v723, %v724
        %v726 = vrot.slane %v725, 2
        %v727 = vadd.f32 %v725, %v726
        %v728 = vrot.slane %v727, 1
        %v729 = vadd.f32 %v727, %v728
        %v730 = vsel %vm398, %v700, 0.0
        %v731 = vrot.slane %v730, 4
        %v732 = vadd.f32 %v730, %v731
        %v733 = vrot.slane %v732, 2
        %v734 = vadd.f32 %v732, %v733
        %v735 = vrot.slane %v734, 1
        %v736 = vadd.f32 %v734, %v735
        %v737 = vsel %vm398, %v702, 0.0
        %v738 = vrot.slane %v737, 4
        %v739 = vadd.f32 %v737, %v738
        %v740 = vrot.slane %v739, 2
        %v741 = vadd.f32 %v739, %v740
        %v742 = vrot.slane %v741, 1
        %v743 = vadd.f32 %v741, %v742
        %v744 = vsel %vm398, %v704, 0.0
        %v745 = vrot.slane %v744, 4
        %v746 = vadd.f32 %v744, %v745
        %v747 = vrot.slane %v746, 2
        %v748 = vadd.f32 %v746, %v747
        %v749 = vrot.slane %v748, 1
        %v750 = vadd.f32 %v748, %v749
        %v751 = vsel %vm398, %v706, 0.0
        %v752 = vrot.slane %v751, 4
        %v753 = vadd.f32 %v751, %v752
        %v754 = vrot.slane %v753, 2
        %v755 = vadd.f32 %v753, %v754
        %v756 = vrot.slane %v755, 1
        %v757 = vadd.f32 %v755, %v756
        %v758 = vsel %vm398, %v708, 0.0
        %v759 = vrot.slane %v758, 4
        %v760 = vadd.f32 %v758, %v759
        %v761 = vrot.slane %v760, 2
        %v762 = vadd.f32 %v760, %v761
        %v763 = vrot.slane %v762, 1
        %v764 = vadd.f32 %v762, %v763
        %765 = vrot.lane.b32.xlu0 %v490, 96
        %v766 = vpop.permute.xlu0 %765
        %v768 = vmul.f32 %v694, %v766
        %v769 = vmul.f32 %v696, %v766
        %v770 = vmul.f32 %v698, %v766
        %v771 = vmul.f32 %v700, %v766
        %v772 = vmul.f32 %v702, %v766
        %v773 = vmul.f32 %v704, %v766
        %v774 = vmul.f32 %v706, %v766
        %v775 = vmul.f32 %v708, %v766
        %v776 = vsel %vm398, %v768, 0.0
        %v777 = vrot.slane %v776, 4
        %v778 = vadd.f32 %v776, %v777
        %v779 = vrot.slane %v778, 2
        %v780 = vadd.f32 %v778, %v779
        %v781 = vrot.slane %v780, 1
        %v782 = vadd.f32 %v780, %v781
        %v783 = vsel %vm398, %v769, 0.0
        %v784 = vrot.slane %v783, 4
        %v785 = vadd.f32 %v783, %v784
        %v786 = vrot.slane %v785, 2
        %v787 = vadd.f32 %v785, %v786
        %v788 = vrot.slane %v787, 1
        %v789 = vadd.f32 %v787, %v788
        %v790 = vsel %vm398, %v770, 0.0
        %v791 = vrot.slane %v790, 4
        %v792 = vadd.f32 %v790, %v791
        %v793 = vrot.slane %v792, 2
        %v794 = vadd.f32 %v792, %v793
        %v795 = vrot.slane %v794, 1
        %v796 = vadd.f32 %v794, %v795
        %v797 = vsel %vm398, %v771, 0.0
        %v798 = vrot.slane %v797, 4
        %v799 = vadd.f32 %v797, %v798
        %v800 = vrot.slane %v799, 2
        %v801 = vadd.f32 %v799, %v800
        %v802 = vrot.slane %v801, 1
        %v803 = vadd.f32 %v801, %v802
        %v804 = vsel %vm398, %v772, 0.0
        %v805 = vrot.slane %v804, 4
        %v806 = vadd.f32 %v804, %v805
        %v807 = vrot.slane %v806, 2
        %v808 = vadd.f32 %v806, %v807
        %v809 = vrot.slane %v808, 1
        %v810 = vadd.f32 %v808, %v809
        %v811 = vsel %vm398, %v773, 0.0
        %v812 = vrot.slane %v811, 4
        %v813 = vadd.f32 %v811, %v812
        %v814 = vrot.slane %v813, 2
        %v815 = vadd.f32 %v813, %v814
        %v816 = vrot.slane %v815, 1
        %v817 = vadd.f32 %v815, %v816
        %v818 = vsel %vm398, %v774, 0.0
        %v819 = vrot.slane %v818, 4
        %v820 = vadd.f32 %v818, %v819
        %v821 = vrot.slane %v820, 2
        %v822 = vadd.f32 %v820, %v821
        %v823 = vrot.slane %v822, 1
        %v824 = vadd.f32 %v822, %v823
        %v825 = vsel %vm398, %v775, 0.0
        %v826 = vrot.slane %v825, 4
        %v827 = vadd.f32 %v825, %v826
        %v828 = vrot.slane %v827, 2
        %v829 = vadd.f32 %v827, %v828
        %v830 = vrot.slane %v829, 1
        %v831 = vadd.f32 %v829, %v830
        %v832 = vrcp.pop %v715
        %v833 = vmul.f32 %v782, %v832
        %v834 = vrcp.pop %v722
        %v835 = vmul.f32 %v789, %v834
        %v836 = vrcp.pop %v729
        %v837 = vmul.f32 %v796, %v836
        %v838 = vrcp.pop %v736
        %v839 = vmul.f32 %v803, %v838
        %v840 = vrcp.pop %v743
        %v841 = vmul.f32 %v810, %v840
        %v842 = vrcp.pop %v750
        %v843 = vmul.f32 %v817, %v842
        %v844 = vrcp.pop %v757
        %v845 = vmul.f32 %v824, %v844
        %v846 = vrcp.pop %v764
        %v847 = vmul.f32 %v831, %v846
        %v849 = vcombine.high %v495, %v495
        %v851 = vunpack.c.l.s4 1966171168
        %v852 = vunpack.c.0.s8 %v851
        %v853 = vlaneseq
        %v854 = vshrl.u32 %v853, 7
        %v855 = vsub.s32 %v852, %v854
        %v856 = vrot.slane %v495, %v855
        %v858 = vunpack.c.l.s4 1966171168
        %v859 = vunpack.c.0.s8 %v858
        %v860 = vlaneseq
        %v861 = vshrl.u32 %v860, 7
        %v862 = vsub.s32 %v859, %v861
        %v863 = vrot.slane %v849, %v862
        %v864 = vcombine.high %v856, %v856
        %v865 = vcombine.high %v863, %v863
        %v867 = vunpack.c.l.s4 1966171168
        %v868 = vunpack.c.0.s8 %v867
        %v869 = vlaneseq
        %v870 = vshrl.u32 %v869, 7
        %v871 = vsub.s32 %v868, %v870
        %v872 = vrot.slane %v856, %v871
        %v874 = vunpack.c.l.s4 1966171168
        %v875 = vunpack.c.0.s8 %v874
        %v876 = vlaneseq
        %v877 = vshrl.u32 %v876, 7
        %v878 = vsub.s32 %v875, %v877
        %v879 = vrot.slane %v863, %v878
        %v881 = vunpack.c.l.s4 1966171168
        %v882 = vunpack.c.0.s8 %v881
        %v883 = vlaneseq
        %v884 = vshrl.u32 %v883, 7
        %v885 = vsub.s32 %v882, %v884
        %v886 = vrot.slane %v864, %v885
        %v888 = vunpack.c.l.s4 1966171168
        %v889 = vunpack.c.0.s8 %v888
        %v890 = vlaneseq
        %v891 = vshrl.u32 %v890, 7
        %v892 = vsub.s32 %v889, %v891
        %v893 = vrot.slane %v865, %v892
        %v894 = vcombine.high %v872, %v872
        %v895 = vcombine.high %v879, %v879
        %v896 = vcombine.high %v886, %v886
        %v897 = vcombine.high %v893, %v893
        %v898 = vlaneseq
        %v899 = vshrl.u32 %v898, 7
        %v900 = vsub.s32 0, %v899
        %v901 = vrot.slane %v872, %v900
        %v902 = vlaneseq
        %v903 = vshrl.u32 %v902, 7
        %v904 = vsub.s32 0, %v903
        %v905 = vrot.slane %v886, %v904
        %v906 = vlaneseq
        %v907 = vshrl.u32 %v906, 7
        %v908 = vsub.s32 0, %v907
        %v909 = vrot.slane %v894, %v908
        %v910 = vlaneseq
        %v911 = vshrl.u32 %v910, 7
        %v912 = vsub.s32 0, %v911
        %v913 = vrot.slane %v896, %v912
        %v914 = vlaneseq
        %v915 = vshrl.u32 %v914, 7
        %v916 = vsub.s32 0, %v915
        %v917 = vrot.slane %v879, %v916
        %v918 = vlaneseq
        %v919 = vshrl.u32 %v918, 7
        %v920 = vsub.s32 0, %v919
        %v921 = vrot.slane %v893, %v920
        %v922 = vlaneseq
        %v923 = vshrl.u32 %v922, 7
        %v924 = vsub.s32 0, %v923
        %v925 = vrot.slane %v895, %v924
        %v926 = vlaneseq
        %v927 = vshrl.u32 %v926, 7
        %v928 = vsub.s32 0, %v927
        %v929 = vrot.slane %v897, %v928
        %938 = vrot.lane.b32.xlu0 %v495, 112
        %v939 = vpop.permute.xlu0 %938
        %v941 = vmul.f32 %v901, %v939
        %v942 = vmul.f32 %v905, %v939
        %v943 = vmul.f32 %v909, %v939
        %v944 = vmul.f32 %v913, %v939
        %v945 = vmul.f32 %v917, %v939
        %v946 = vmul.f32 %v921, %v939
        %v947 = vmul.f32 %v925, %v939
        %v948 = vmul.f32 %v929, %v939
        %v949 = vsel %vm398, %v941, -inf
        %v950 = vrot.slane %v949, 4
        %v951 = vmax.f32 %v949, %v950
        %v952 = vrot.slane %v951, 2
        %v953 = vmax.f32 %v951, %v952
        %v954 = vrot.slane %v953, 1
        %v955 = vmax.f32 %v953, %v954
        %v956 = vsel %vm398, %v942, -inf
        %v957 = vrot.slane %v956, 4
        %v958 = vmax.f32 %v956, %v957
        %v959 = vrot.slane %v958, 2
        %v960 = vmax.f32 %v958, %v959
        %v961 = vrot.slane %v960, 1
        %v962 = vmax.f32 %v960, %v961
        %v963 = vsel %vm398, %v943, -inf
        %v964 = vrot.slane %v963, 4
        %v965 = vmax.f32 %v963, %v964
        %v966 = vrot.slane %v965, 2
        %v967 = vmax.f32 %v965, %v966
        %v968 = vrot.slane %v967, 1
        %v969 = vmax.f32 %v967, %v968
        %v970 = vsel %vm398, %v944, -inf
        %v971 = vrot.slane %v970, 4
        %v972 = vmax.f32 %v970, %v971
        %v973 = vrot.slane %v972, 2
        %v974 = vmax.f32 %v972, %v973
        %v975 = vrot.slane %v974, 1
        %v976 = vmax.f32 %v974, %v975
        %v977 = vsel %vm398, %v945, -inf
        %v978 = vrot.slane %v977, 4
        %v979 = vmax.f32 %v977, %v978
        %v980 = vrot.slane %v979, 2
        %v981 = vmax.f32 %v979, %v980
        %v982 = vrot.slane %v981, 1
        %v983 = vmax.f32 %v981, %v982
        %v984 = vsel %vm398, %v946, -inf
        %v985 = vrot.slane %v984, 4
        %v986 = vmax.f32 %v984, %v985
        %v987 = vrot.slane %v986, 2
        %v988 = vmax.f32 %v986, %v987
        %v989 = vrot.slane %v988, 1
        %v990 = vmax.f32 %v988, %v989
        %v991 = vsel %vm398, %v947, -inf
        %v992 = vrot.slane %v991, 4
        %v993 = vmax.f32 %v991, %v992
        %v994 = vrot.slane %v993, 2
        %v995 = vmax.f32 %v993, %v994
        %v996 = vrot.slane %v995, 1
        %v997 = vmax.f32 %v995, %v996
        %v998 = vsel %vm398, %v948, -inf
        %v999 = vrot.slane %v998, 4
        %v1000 = vmax.f32 %v998, %v999
        %v1001 = vrot.slane %v1000, 2
        %v1002 = vmax.f32 %v1000, %v1001
        %v1003 = vrot.slane %v1002, 1
        %v1004 = vmax.f32 %v1002, %v1003
        %v1005 = vsub.f32 %v941, %v955
        %v1006 = vsub.f32 %v942, %v962
        %v1007 = vsub.f32 %v943, %v969
        %v1008 = vsub.f32 %v944, %v976
        %v1009 = vsub.f32 %v945, %v983
        %v1010 = vsub.f32 %v946, %v990
        %v1011 = vsub.f32 %v947, %v997
        %v1012 = vsub.f32 %v948, %v1004
        %v1013 = vmul.f32 %v1005, 1.442695
        %v1014 = vpow.pop %v1013
        %v1015 = vmul.f32 %v1006, 1.442695
        %v1016 = vpow.pop %v1015
        %v1017 = vmul.f32 %v1007, 1.442695
        %v1018 = vpow.pop %v1017
        %v1019 = vmul.f32 %v1008, 1.442695
        %v1020 = vpow.pop %v1019
        %v1021 = vmul.f32 %v1009, 1.442695
        %v1022 = vpow.pop %v1021
        %v1023 = vmul.f32 %v1010, 1.442695
        %v1024 = vpow.pop %v1023
        %v1025 = vmul.f32 %v1011, 1.442695
        %v1026 = vpow.pop %v1025
        %v1027 = vmul.f32 %v1012, 1.442695
        %v1028 = vpow.pop %v1027
        %v1029 = vsel %vm398, %v1014, 0.0
        %v1030 = vrot.slane %v1029, 4
        %v1031 = vadd.f32 %v1029, %v1030
        %v1032 = vrot.slane %v1031, 2
        %v1033 = vadd.f32 %v1031, %v1032
        %v1034 = vrot.slane %v1033, 1
        %v1035 = vadd.f32 %v1033, %v1034
        %v1036 = vsel %vm398, %v1016, 0.0
        %v1037 = vrot.slane %v1036, 4
        %v1038 = vadd.f32 %v1036, %v1037
        %v1039 = vrot.slane %v1038, 2
        %v1040 = vadd.f32 %v1038, %v1039
        %v1041 = vrot.slane %v1040, 1
        %v1042 = vadd.f32 %v1040, %v1041
        %v1043 = vsel %vm398, %v1018, 0.0
        %v1044 = vrot.slane %v1043, 4
        %v1045 = vadd.f32 %v1043, %v1044
        %v1046 = vrot.slane %v1045, 2
        %v1047 = vadd.f32 %v1045, %v1046
        %v1048 = vrot.slane %v1047, 1
        %v1049 = vadd.f32 %v1047, %v1048
        %v1050 = vsel %vm398, %v1020, 0.0
        %v1051 = vrot.slane %v1050, 4
        %v1052 = vadd.f32 %v1050, %v1051
        %v1053 = vrot.slane %v1052, 2
        %v1054 = vadd.f32 %v1052, %v1053
        %v1055 = vrot.slane %v1054, 1
        %v1056 = vadd.f32 %v1054, %v1055
        %v1057 = vsel %vm398, %v1022, 0.0
        %v1058 = vrot.slane %v1057, 4
        %v1059 = vadd.f32 %v1057, %v1058
        %v1060 = vrot.slane %v1059, 2
        %v1061 = vadd.f32 %v1059, %v1060
        %v1062 = vrot.slane %v1061, 1
        %v1063 = vadd.f32 %v1061, %v1062
        %v1064 = vsel %vm398, %v1024, 0.0
        %v1065 = vrot.slane %v1064, 4
        %v1066 = vadd.f32 %v1064, %v1065
        %v1067 = vrot.slane %v1066, 2
        %v1068 = vadd.f32 %v1066, %v1067
        %v1069 = vrot.slane %v1068, 1
        %v1070 = vadd.f32 %v1068, %v1069
        %v1071 = vsel %vm398, %v1026, 0.0
        %v1072 = vrot.slane %v1071, 4
        %v1073 = vadd.f32 %v1071, %v1072
        %v1074 = vrot.slane %v1073, 2
        %v1075 = vadd.f32 %v1073, %v1074
        %v1076 = vrot.slane %v1075, 1
        %v1077 = vadd.f32 %v1075, %v1076
        %v1078 = vsel %vm398, %v1028, 0.0
        %v1079 = vrot.slane %v1078, 4
        %v1080 = vadd.f32 %v1078, %v1079
        %v1081 = vrot.slane %v1080, 2
        %v1082 = vadd.f32 %v1080, %v1081
        %v1083 = vrot.slane %v1082, 1
        %v1084 = vadd.f32 %v1082, %v1083
        %1085 = vrot.lane.b32.xlu0 %v495, 96
        %v1086 = vpop.permute.xlu0 %1085
        %v1088 = vmul.f32 %v1014, %v1086
        %v1089 = vmul.f32 %v1016, %v1086
        %v1090 = vmul.f32 %v1018, %v1086
        %v1091 = vmul.f32 %v1020, %v1086
        %v1092 = vmul.f32 %v1022, %v1086
        %v1093 = vmul.f32 %v1024, %v1086
        %v1094 = vmul.f32 %v1026, %v1086
        %v1095 = vmul.f32 %v1028, %v1086
        %v1096 = vsel %vm398, %v1088, 0.0
        %v1097 = vrot.slane %v1096, 4
        %v1098 = vadd.f32 %v1096, %v1097
        %v1099 = vrot.slane %v1098, 2
        %v1100 = vadd.f32 %v1098, %v1099
        %v1101 = vrot.slane %v1100, 1
        %v1102 = vadd.f32 %v1100, %v1101
        %v1103 = vsel %vm398, %v1089, 0.0
        %v1104 = vrot.slane %v1103, 4
        %v1105 = vadd.f32 %v1103, %v1104
        %v1106 = vrot.slane %v1105, 2
        %v1107 = vadd.f32 %v1105, %v1106
        %v1108 = vrot.slane %v1107, 1
        %v1109 = vadd.f32 %v1107, %v1108
        %v1110 = vsel %vm398, %v1090, 0.0
        %v1111 = vrot.slane %v1110, 4
        %v1112 = vadd.f32 %v1110, %v1111
        %v1113 = vrot.slane %v1112, 2
        %v1114 = vadd.f32 %v1112, %v1113
        %v1115 = vrot.slane %v1114, 1
        %v1116 = vadd.f32 %v1114, %v1115
        %v1117 = vsel %vm398, %v1091, 0.0
        %v1118 = vrot.slane %v1117, 4
        %v1119 = vadd.f32 %v1117, %v1118
        %v1120 = vrot.slane %v1119, 2
        %v1121 = vadd.f32 %v1119, %v1120
        %v1122 = vrot.slane %v1121, 1
        %v1123 = vadd.f32 %v1121, %v1122
        %v1124 = vsel %vm398, %v1092, 0.0
        %v1125 = vrot.slane %v1124, 4
        %v1126 = vadd.f32 %v1124, %v1125
        %v1127 = vrot.slane %v1126, 2
        %v1128 = vadd.f32 %v1126, %v1127
        %v1129 = vrot.slane %v1128, 1
        %v1130 = vadd.f32 %v1128, %v1129
        %v1131 = vsel %vm398, %v1093, 0.0
        %v1132 = vrot.slane %v1131, 4
        %v1133 = vadd.f32 %v1131, %v1132
        %v1134 = vrot.slane %v1133, 2
        %v1135 = vadd.f32 %v1133, %v1134
        %v1136 = vrot.slane %v1135, 1
        %v1137 = vadd.f32 %v1135, %v1136
        %v1138 = vsel %vm398, %v1094, 0.0
        %v1139 = vrot.slane %v1138, 4
        %v1140 = vadd.f32 %v1138, %v1139
        %v1141 = vrot.slane %v1140, 2
        %v1142 = vadd.f32 %v1140, %v1141
        %v1143 = vrot.slane %v1142, 1
        %v1144 = vadd.f32 %v1142, %v1143
        %v1145 = vsel %vm398, %v1095, 0.0
        %v1146 = vrot.slane %v1145, 4
        %v1147 = vadd.f32 %v1145, %v1146
        %v1148 = vrot.slane %v1147, 2
        %v1149 = vadd.f32 %v1147, %v1148
        %v1150 = vrot.slane %v1149, 1
        %v1151 = vadd.f32 %v1149, %v1150
        %v1152 = vrcp.pop %v1035
        %v1153 = vmul.f32 %v1102, %v1152
        %v1154 = vrcp.pop %v1042
        %v1155 = vmul.f32 %v1109, %v1154
        %v1156 = vrcp.pop %v1049
        %v1157 = vmul.f32 %v1116, %v1156
        %v1158 = vrcp.pop %v1056
        %v1159 = vmul.f32 %v1123, %v1158
        %v1160 = vrcp.pop %v1063
        %v1161 = vmul.f32 %v1130, %v1160
        %v1162 = vrcp.pop %v1070
        %v1163 = vmul.f32 %v1137, %v1162
        %v1164 = vrcp.pop %v1077
        %v1165 = vmul.f32 %v1144, %v1164
        %v1166 = vrcp.pop %v1084
        %v1167 = vmul.f32 %v1151, %v1166
        %v1169 = vcombine.high %v500, %v500
        %v1171 = vunpack.c.l.s4 1966171168
        %v1172 = vunpack.c.0.s8 %v1171
        %v1173 = vlaneseq
        %v1174 = vshrl.u32 %v1173, 7
        %v1175 = vsub.s32 %v1172, %v1174
        %v1176 = vrot.slane %v500, %v1175
        %v1178 = vunpack.c.l.s4 1966171168
        %v1179 = vunpack.c.0.s8 %v1178
        %v1180 = vlaneseq
        %v1181 = vshrl.u32 %v1180, 7
        %v1182 = vsub.s32 %v1179, %v1181
        %v1183 = vrot.slane %v1169, %v1182
        %v1184 = vcombine.high %v1176, %v1176
        %v1185 = vcombine.high %v1183, %v1183
        %v1187 = vunpack.c.l.s4 1966171168
        %v1188 = vunpack.c.0.s8 %v1187
        %v1189 = vlaneseq
        %v1190 = vshrl.u32 %v1189, 7
        %v1191 = vsub.s32 %v1188, %v1190
        %v1192 = vrot.slane %v1176, %v1191
        %v1194 = vunpack.c.l.s4 1966171168
        %v1195 = vunpack.c.0.s8 %v1194
        %v1196 = vlaneseq
        %v1197 = vshrl.u32 %v1196, 7
        %v1198 = vsub.s32 %v1195, %v1197
        %v1199 = vrot.slane %v1183, %v1198
        %v1201 = vunpack.c.l.s4 1966171168
        %v1202 = vunpack.c.0.s8 %v1201
        %v1203 = vlaneseq
        %v1204 = vshrl.u32 %v1203, 7
        %v1205 = vsub.s32 %v1202, %v1204
        %v1206 = vrot.slane %v1184, %v1205
        %v1208 = vunpack.c.l.s4 1966171168
        %v1209 = vunpack.c.0.s8 %v1208
        %v1210 = vlaneseq
        %v1211 = vshrl.u32 %v1210, 7
        %v1212 = vsub.s32 %v1209, %v1211
        %v1213 = vrot.slane %v1185, %v1212
        %v1214 = vcombine.high %v1192, %v1192
        %v1215 = vcombine.high %v1199, %v1199
        %v1216 = vcombine.high %v1206, %v1206
        %v1217 = vcombine.high %v1213, %v1213
        %v1218 = vlaneseq
        %v1219 = vshrl.u32 %v1218, 7
        %v1220 = vsub.s32 0, %v1219
        %v1221 = vrot.slane %v1192, %v1220
        %v1222 = vlaneseq
        %v1223 = vshrl.u32 %v1222, 7
        %v1224 = vsub.s32 0, %v1223
        %v1225 = vrot.slane %v1206, %v1224
        %v1226 = vlaneseq
        %v1227 = vshrl.u32 %v1226, 7
        %v1228 = vsub.s32 0, %v1227
        %v1229 = vrot.slane %v1214, %v1228
        %v1230 = vlaneseq
        %v1231 = vshrl.u32 %v1230, 7
        %v1232 = vsub.s32 0, %v1231
        %v1233 = vrot.slane %v1216, %v1232
        %v1234 = vlaneseq
        %v1235 = vshrl.u32 %v1234, 7
        %v1236 = vsub.s32 0, %v1235
        %v1237 = vrot.slane %v1199, %v1236
        %v1238 = vlaneseq
        %v1239 = vshrl.u32 %v1238, 7
        %v1240 = vsub.s32 0, %v1239
        %v1241 = vrot.slane %v1213, %v1240
        %v1242 = vlaneseq
        %v1243 = vshrl.u32 %v1242, 7
        %v1244 = vsub.s32 0, %v1243
        %v1245 = vrot.slane %v1215, %v1244
        %v1246 = vlaneseq
        %v1247 = vshrl.u32 %v1246, 7
        %v1248 = vsub.s32 0, %v1247
        %v1249 = vrot.slane %v1217, %v1248
        %1258 = vrot.lane.b32.xlu0 %v500, 112
        %v1259 = vpop.permute.xlu0 %1258
        %v1261 = vmul.f32 %v1221, %v1259
        %v1262 = vmul.f32 %v1225, %v1259
        %v1263 = vmul.f32 %v1229, %v1259
        %v1264 = vmul.f32 %v1233, %v1259
        %v1265 = vmul.f32 %v1237, %v1259
        %v1266 = vmul.f32 %v1241, %v1259
        %v1267 = vmul.f32 %v1245, %v1259
        %v1268 = vmul.f32 %v1249, %v1259
        %v1269 = vsel %vm398, %v1261, -inf
        %v1270 = vrot.slane %v1269, 4
        %v1271 = vmax.f32 %v1269, %v1270
        %v1272 = vrot.slane %v1271, 2
        %v1273 = vmax.f32 %v1271, %v1272
        %v1274 = vrot.slane %v1273, 1
        %v1275 = vmax.f32 %v1273, %v1274
        %v1276 = vsel %vm398, %v1262, -inf
        %v1277 = vrot.slane %v1276, 4
        %v1278 = vmax.f32 %v1276, %v1277
        %v1279 = vrot.slane %v1278, 2
        %v1280 = vmax.f32 %v1278, %v1279
        %v1281 = vrot.slane %v1280, 1
        %v1282 = vmax.f32 %v1280, %v1281
        %v1283 = vsel %vm398, %v1263, -inf
        %v1284 = vrot.slane %v1283, 4
        %v1285 = vmax.f32 %v1283, %v1284
        %v1286 = vrot.slane %v1285, 2
        %v1287 = vmax.f32 %v1285, %v1286
        %v1288 = vrot.slane %v1287, 1
        %v1289 = vmax.f32 %v1287, %v1288
        %v1290 = vsel %vm398, %v1264, -inf
        %v1291 = vrot.slane %v1290, 4
        %v1292 = vmax.f32 %v1290, %v1291
        %v1293 = vrot.slane %v1292, 2
        %v1294 = vmax.f32 %v1292, %v1293
        %v1295 = vrot.slane %v1294, 1
        %v1296 = vmax.f32 %v1294, %v1295
        %v1297 = vsel %vm398, %v1265, -inf
        %v1298 = vrot.slane %v1297, 4
        %v1299 = vmax.f32 %v1297, %v1298
        %v1300 = vrot.slane %v1299, 2
        %v1301 = vmax.f32 %v1299, %v1300
        %v1302 = vrot.slane %v1301, 1
        %v1303 = vmax.f32 %v1301, %v1302
        %v1304 = vsel %vm398, %v1266, -inf
        %v1305 = vrot.slane %v1304, 4
        %v1306 = vmax.f32 %v1304, %v1305
        %v1307 = vrot.slane %v1306, 2
        %v1308 = vmax.f32 %v1306, %v1307
        %v1309 = vrot.slane %v1308, 1
        %v1310 = vmax.f32 %v1308, %v1309
        %v1311 = vsel %vm398, %v1267, -inf
        %v1312 = vrot.slane %v1311, 4
        %v1313 = vmax.f32 %v1311, %v1312
        %v1314 = vrot.slane %v1313, 2
        %v1315 = vmax.f32 %v1313, %v1314
        %v1316 = vrot.slane %v1315, 1
        %v1317 = vmax.f32 %v1315, %v1316
        %v1318 = vsel %vm398, %v1268, -inf
        %v1319 = vrot.slane %v1318, 4
        %v1320 = vmax.f32 %v1318, %v1319
        %v1321 = vrot.slane %v1320, 2
        %v1322 = vmax.f32 %v1320, %v1321
        %v1323 = vrot.slane %v1322, 1
        %v1324 = vmax.f32 %v1322, %v1323
        %v1325 = vsub.f32 %v1261, %v1275
        %v1326 = vsub.f32 %v1262, %v1282
        %v1327 = vsub.f32 %v1263, %v1289
        %v1328 = vsub.f32 %v1264, %v1296
        %v1329 = vsub.f32 %v1265, %v1303
        %v1330 = vsub.f32 %v1266, %v1310
        %v1331 = vsub.f32 %v1267, %v1317
        %v1332 = vsub.f32 %v1268, %v1324
        %v1333 = vmul.f32 %v1325, 1.442695
        %v1334 = vpow.pop %v1333
        %v1335 = vmul.f32 %v1326, 1.442695
        %v1336 = vpow.pop %v1335
        %v1337 = vmul.f32 %v1327, 1.442695
        %v1338 = vpow.pop %v1337
        %v1339 = vmul.f32 %v1328, 1.442695
        %v1340 = vpow.pop %v1339
        %v1341 = vmul.f32 %v1329, 1.442695
        %v1342 = vpow.pop %v1341
        %v1343 = vmul.f32 %v1330, 1.442695
        %v1344 = vpow.pop %v1343
        %v1345 = vmul.f32 %v1331, 1.442695
        %v1346 = vpow.pop %v1345
        %v1347 = vmul.f32 %v1332, 1.442695
        %v1348 = vpow.pop %v1347
        %v1349 = vsel %vm398, %v1334, 0.0
        %v1350 = vrot.slane %v1349, 4
        %v1351 = vadd.f32 %v1349, %v1350
        %v1352 = vrot.slane %v1351, 2
        %v1353 = vadd.f32 %v1351, %v1352
        %v1354 = vrot.slane %v1353, 1
        %v1355 = vadd.f32 %v1353, %v1354
        %v1356 = vsel %vm398, %v1336, 0.0
        %v1357 = vrot.slane %v1356, 4
        %v1358 = vadd.f32 %v1356, %v1357
        %v1359 = vrot.slane %v1358, 2
        %v1360 = vadd.f32 %v1358, %v1359
        %v1361 = vrot.slane %v1360, 1
        %v1362 = vadd.f32 %v1360, %v1361
        %v1363 = vsel %vm398, %v1338, 0.0
        %v1364 = vrot.slane %v1363, 4
        %v1365 = vadd.f32 %v1363, %v1364
        %v1366 = vrot.slane %v1365, 2
        %v1367 = vadd.f32 %v1365, %v1366
        %v1368 = vrot.slane %v1367, 1
        %v1369 = vadd.f32 %v1367, %v1368
        %v1370 = vsel %vm398, %v1340, 0.0
        %v1371 = vrot.slane %v1370, 4
        %v1372 = vadd.f32 %v1370, %v1371
        %v1373 = vrot.slane %v1372, 2
        %v1374 = vadd.f32 %v1372, %v1373
        %v1375 = vrot.slane %v1374, 1
        %v1376 = vadd.f32 %v1374, %v1375
        %v1377 = vsel %vm398, %v1342, 0.0
        %v1378 = vrot.slane %v1377, 4
        %v1379 = vadd.f32 %v1377, %v1378
        %v1380 = vrot.slane %v1379, 2
        %v1381 = vadd.f32 %v1379, %v1380
        %v1382 = vrot.slane %v1381, 1
        %v1383 = vadd.f32 %v1381, %v1382
        %v1384 = vsel %vm398, %v1344, 0.0
        %v1385 = vrot.slane %v1384, 4
        %v1386 = vadd.f32 %v1384, %v1385
        %v1387 = vrot.slane %v1386, 2
        %v1388 = vadd.f32 %v1386, %v1387
        %v1389 = vrot.slane %v1388, 1
        %v1390 = vadd.f32 %v1388, %v1389
        %v1391 = vsel %vm398, %v1346, 0.0
        %v1392 = vrot.slane %v1391, 4
        %v1393 = vadd.f32 %v1391, %v1392
        %v1394 = vrot.slane %v1393, 2
        %v1395 = vadd.f32 %v1393, %v1394
        %v1396 = vrot.slane %v1395, 1
        %v1397 = vadd.f32 %v1395, %v1396
        %v1398 = vsel %vm398, %v1348, 0.0
        %v1399 = vrot.slane %v1398, 4
        %v1400 = vadd.f32 %v1398, %v1399
        %v1401 = vrot.slane %v1400, 2
        %v1402 = vadd.f32 %v1400, %v1401
        %v1403 = vrot.slane %v1402, 1
        %v1404 = vadd.f32 %v1402, %v1403
        %1405 = vrot.lane.b32.xlu0 %v500, 96
        %v1406 = vpop.permute.xlu0 %1405
        %v1408 = vmul.f32 %v1334, %v1406
        %v1409 = vmul.f32 %v1336, %v1406
        %v1410 = vmul.f32 %v1338, %v1406
        %v1411 = vmul.f32 %v1340, %v1406
        %v1412 = vmul.f32 %v1342, %v1406
        %v1413 = vmul.f32 %v1344, %v1406
        %v1414 = vmul.f32 %v1346, %v1406
        %v1415 = vmul.f32 %v1348, %v1406
        %v1416 = vsel %vm398, %v1408, 0.0
        %v1417 = vrot.slane %v1416, 4
        %v1418 = vadd.f32 %v1416, %v1417
        %v1419 = vrot.slane %v1418, 2
        %v1420 = vadd.f32 %v1418, %v1419
        %v1421 = vrot.slane %v1420, 1
        %v1422 = vadd.f32 %v1420, %v1421
        %v1423 = vsel %vm398, %v1409, 0.0
        %v1424 = vrot.slane %v1423, 4
        %v1425 = vadd.f32 %v1423, %v1424
        %v1426 = vrot.slane %v1425, 2
        %v1427 = vadd.f32 %v1425, %v1426
        %v1428 = vrot.slane %v1427, 1
        %v1429 = vadd.f32 %v1427, %v1428
        %v1430 = vsel %vm398, %v1410, 0.0
        %v1431 = vrot.slane %v1430, 4
        %v1432 = vadd.f32 %v1430, %v1431
        %v1433 = vrot.slane %v1432, 2
        %v1434 = vadd.f32 %v1432, %v1433
        %v1435 = vrot.slane %v1434, 1
        %v1436 = vadd.f32 %v1434, %v1435
        %v1437 = vsel %vm398, %v1411, 0.0
        %v1438 = vrot.slane %v1437, 4
        %v1439 = vadd.f32 %v1437, %v1438
        %v1440 = vrot.slane %v1439, 2
        %v1441 = vadd.f32 %v1439, %v1440
        %v1442 = vrot.slane %v1441, 1
        %v1443 = vadd.f32 %v1441, %v1442
        %v1444 = vsel %vm398, %v1412, 0.0
        %v1445 = vrot.slane %v1444, 4
        %v1446 = vadd.f32 %v1444, %v1445
        %v1447 = vrot.slane %v1446, 2
        %v1448 = vadd.f32 %v1446, %v1447
        %v1449 = vrot.slane %v1448, 1
        %v1450 = vadd.f32 %v1448, %v1449
        %v1451 = vsel %vm398, %v1413, 0.0
        %v1452 = vrot.slane %v1451, 4
        %v1453 = vadd.f32 %v1451, %v1452
        %v1454 = vrot.slane %v1453, 2
        %v1455 = vadd.f32 %v1453, %v1454
        %v1456 = vrot.slane %v1455, 1
        %v1457 = vadd.f32 %v1455, %v1456
        %v1458 = vsel %vm398, %v1414, 0.0
        %v1459 = vrot.slane %v1458, 4
        %v1460 = vadd.f32 %v1458, %v1459
        %v1461 = vrot.slane %v1460, 2
        %v1462 = vadd.f32 %v1460, %v1461
        %v1463 = vrot.slane %v1462, 1
        %v1464 = vadd.f32 %v1462, %v1463
        %v1465 = vsel %vm398, %v1415, 0.0
        %v1466 = vrot.slane %v1465, 4
        %v1467 = vadd.f32 %v1465, %v1466
        %v1468 = vrot.slane %v1467, 2
        %v1469 = vadd.f32 %v1467, %v1468
        %v1470 = vrot.slane %v1469, 1
        %v1471 = vadd.f32 %v1469, %v1470
        %v1472 = vrcp.pop %v1355
        %v1473 = vmul.f32 %v1422, %v1472
        %v1474 = vrcp.pop %v1362
        %v1475 = vmul.f32 %v1429, %v1474
        %v1476 = vrcp.pop %v1369
        %v1477 = vmul.f32 %v1436, %v1476
        %v1478 = vrcp.pop %v1376
        %v1479 = vmul.f32 %v1443, %v1478
        %v1480 = vrcp.pop %v1383
        %v1481 = vmul.f32 %v1450, %v1480
        %v1482 = vrcp.pop %v1390
        %v1483 = vmul.f32 %v1457, %v1482
        %v1484 = vrcp.pop %v1397
        %v1485 = vmul.f32 %v1464, %v1484
        %v1486 = vrcp.pop %v1404
        %v1487 = vmul.f32 %v1471, %v1486
        %v1489 = vcombine.high %v505, %v505
        %v1491 = vunpack.c.l.s4 1966171168
        %v1492 = vunpack.c.0.s8 %v1491
        %v1493 = vlaneseq
        %v1494 = vshrl.u32 %v1493, 7
        %v1495 = vsub.s32 %v1492, %v1494
        %v1496 = vrot.slane %v505, %v1495
        %v1498 = vunpack.c.l.s4 1966171168
        %v1499 = vunpack.c.0.s8 %v1498
        %v1500 = vlaneseq
        %v1501 = vshrl.u32 %v1500, 7
        %v1502 = vsub.s32 %v1499, %v1501
        %v1503 = vrot.slane %v1489, %v1502
        %v1504 = vcombine.high %v1496, %v1496
        %v1505 = vcombine.high %v1503, %v1503
        %v1507 = vunpack.c.l.s4 1966171168
        %v1508 = vunpack.c.0.s8 %v1507
        %v1509 = vlaneseq
        %v1510 = vshrl.u32 %v1509, 7
        %v1511 = vsub.s32 %v1508, %v1510
        %v1512 = vrot.slane %v1496, %v1511
        %v1514 = vunpack.c.l.s4 1966171168
        %v1515 = vunpack.c.0.s8 %v1514
        %v1516 = vlaneseq
        %v1517 = vshrl.u32 %v1516, 7
        %v1518 = vsub.s32 %v1515, %v1517
        %v1519 = vrot.slane %v1503, %v1518
        %v1521 = vunpack.c.l.s4 1966171168
        %v1522 = vunpack.c.0.s8 %v1521
        %v1523 = vlaneseq
        %v1524 = vshrl.u32 %v1523, 7
        %v1525 = vsub.s32 %v1522, %v1524
        %v1526 = vrot.slane %v1504, %v1525
        %v1528 = vunpack.c.l.s4 1966171168
        %v1529 = vunpack.c.0.s8 %v1528
        %v1530 = vlaneseq
        %v1531 = vshrl.u32 %v1530, 7
        %v1532 = vsub.s32 %v1529, %v1531
        %v1533 = vrot.slane %v1505, %v1532
        %v1534 = vcombine.high %v1512, %v1512
        %v1535 = vcombine.high %v1519, %v1519
        %v1536 = vcombine.high %v1526, %v1526
        %v1537 = vcombine.high %v1533, %v1533
        %v1538 = vlaneseq
        %v1539 = vshrl.u32 %v1538, 7
        %v1540 = vsub.s32 0, %v1539
        %v1541 = vrot.slane %v1512, %v1540
        %v1542 = vlaneseq
        %v1543 = vshrl.u32 %v1542, 7
        %v1544 = vsub.s32 0, %v1543
        %v1545 = vrot.slane %v1526, %v1544
        %v1546 = vlaneseq
        %v1547 = vshrl.u32 %v1546, 7
        %v1548 = vsub.s32 0, %v1547
        %v1549 = vrot.slane %v1534, %v1548
        %v1550 = vlaneseq
        %v1551 = vshrl.u32 %v1550, 7
        %v1552 = vsub.s32 0, %v1551
        %v1553 = vrot.slane %v1536, %v1552
        %v1554 = vlaneseq
        %v1555 = vshrl.u32 %v1554, 7
        %v1556 = vsub.s32 0, %v1555
        %v1557 = vrot.slane %v1519, %v1556
        %v1558 = vlaneseq
        %v1559 = vshrl.u32 %v1558, 7
        %v1560 = vsub.s32 0, %v1559
        %v1561 = vrot.slane %v1533, %v1560
        %v1562 = vlaneseq
        %v1563 = vshrl.u32 %v1562, 7
        %v1564 = vsub.s32 0, %v1563
        %v1565 = vrot.slane %v1535, %v1564
        %v1566 = vlaneseq
        %v1567 = vshrl.u32 %v1566, 7
        %v1568 = vsub.s32 0, %v1567
        %v1569 = vrot.slane %v1537, %v1568
        %1578 = vrot.lane.b32.xlu0 %v505, 112
        %v1579 = vpop.permute.xlu0 %1578
        %v1581 = vmul.f32 %v1541, %v1579
        %v1582 = vmul.f32 %v1545, %v1579
        %v1583 = vmul.f32 %v1549, %v1579
        %v1584 = vmul.f32 %v1553, %v1579
        %v1585 = vmul.f32 %v1557, %v1579
        %v1586 = vmul.f32 %v1561, %v1579
        %v1587 = vmul.f32 %v1565, %v1579
        %v1588 = vmul.f32 %v1569, %v1579
        %v1589 = vsel %vm398, %v1581, -inf
        %v1590 = vrot.slane %v1589, 4
        %v1591 = vmax.f32 %v1589, %v1590
        %v1592 = vrot.slane %v1591, 2
        %v1593 = vmax.f32 %v1591, %v1592
        %v1594 = vrot.slane %v1593, 1
        %v1595 = vmax.f32 %v1593, %v1594
        %v1596 = vsel %vm398, %v1582, -inf
        %v1597 = vrot.slane %v1596, 4
        %v1598 = vmax.f32 %v1596, %v1597
        %v1599 = vrot.slane %v1598, 2
        %v1600 = vmax.f32 %v1598, %v1599
        %v1601 = vrot.slane %v1600, 1
        %v1602 = vmax.f32 %v1600, %v1601
        %v1603 = vsel %vm398, %v1583, -inf
        %v1604 = vrot.slane %v1603, 4
        %v1605 = vmax.f32 %v1603, %v1604
        %v1606 = vrot.slane %v1605, 2
        %v1607 = vmax.f32 %v1605, %v1606
        %v1608 = vrot.slane %v1607, 1
        %v1609 = vmax.f32 %v1607, %v1608
        %v1610 = vsel %vm398, %v1584, -inf
        %v1611 = vrot.slane %v1610, 4
        %v1612 = vmax.f32 %v1610, %v1611
        %v1613 = vrot.slane %v1612, 2
        %v1614 = vmax.f32 %v1612, %v1613
        %v1615 = vrot.slane %v1614, 1
        %v1616 = vmax.f32 %v1614, %v1615
        %v1617 = vsel %vm398, %v1585, -inf
        %v1618 = vrot.slane %v1617, 4
        %v1619 = vmax.f32 %v1617, %v1618
        %v1620 = vrot.slane %v1619, 2
        %v1621 = vmax.f32 %v1619, %v1620
        %v1622 = vrot.slane %v1621, 1
        %v1623 = vmax.f32 %v1621, %v1622
        %v1624 = vsel %vm398, %v1586, -inf
        %v1625 = vrot.slane %v1624, 4
        %v1626 = vmax.f32 %v1624, %v1625
        %v1627 = vrot.slane %v1626, 2
        %v1628 = vmax.f32 %v1626, %v1627
        %v1629 = vrot.slane %v1628, 1
        %v1630 = vmax.f32 %v1628, %v1629
        %v1631 = vsel %vm398, %v1587, -inf
        %v1632 = vrot.slane %v1631, 4
        %v1633 = vmax.f32 %v1631, %v1632
        %v1634 = vrot.slane %v1633, 2
        %v1635 = vmax.f32 %v1633, %v1634
        %v1636 = vrot.slane %v1635, 1
        %v1637 = vmax.f32 %v1635, %v1636
        %v1638 = vsel %vm398, %v1588, -inf
        %v1639 = vrot.slane %v1638, 4
        %v1640 = vmax.f32 %v1638, %v1639
        %v1641 = vrot.slane %v1640, 2
        %v1642 = vmax.f32 %v1640, %v1641
        %v1643 = vrot.slane %v1642, 1
        %v1644 = vmax.f32 %v1642, %v1643
        %v1645 = vsub.f32 %v1581, %v1595
        %v1646 = vsub.f32 %v1582, %v1602
        %v1647 = vsub.f32 %v1583, %v1609
        %v1648 = vsub.f32 %v1584, %v1616
        %v1649 = vsub.f32 %v1585, %v1623
        %v1650 = vsub.f32 %v1586, %v1630
        %v1651 = vsub.f32 %v1587, %v1637
        %v1652 = vsub.f32 %v1588, %v1644
        %v1653 = vmul.f32 %v1645, 1.442695
        %v1654 = vpow.pop %v1653
        %v1655 = vmul.f32 %v1646, 1.442695
        %v1656 = vpow.pop %v1655
        %v1657 = vmul.f32 %v1647, 1.442695
        %v1658 = vpow.pop %v1657
        %v1659 = vmul.f32 %v1648, 1.442695
        %v1660 = vpow.pop %v1659
        %v1661 = vmul.f32 %v1649, 1.442695
        %v1662 = vpow.pop %v1661
        %v1663 = vmul.f32 %v1650, 1.442695
        %v1664 = vpow.pop %v1663
        %v1665 = vmul.f32 %v1651, 1.442695
        %v1666 = vpow.pop %v1665
        %v1667 = vmul.f32 %v1652, 1.442695
        %v1668 = vpow.pop %v1667
        %v1669 = vsel %vm398, %v1654, 0.0
        %v1670 = vrot.slane %v1669, 4
        %v1671 = vadd.f32 %v1669, %v1670
        %v1672 = vrot.slane %v1671, 2
        %v1673 = vadd.f32 %v1671, %v1672
        %v1674 = vrot.slane %v1673, 1
        %v1675 = vadd.f32 %v1673, %v1674
        %v1676 = vsel %vm398, %v1656, 0.0
        %v1677 = vrot.slane %v1676, 4
        %v1678 = vadd.f32 %v1676, %v1677
        %v1679 = vrot.slane %v1678, 2
        %v1680 = vadd.f32 %v1678, %v1679
        %v1681 = vrot.slane %v1680, 1
        %v1682 = vadd.f32 %v1680, %v1681
        %v1683 = vsel %vm398, %v1658, 0.0
        %v1684 = vrot.slane %v1683, 4
        %v1685 = vadd.f32 %v1683, %v1684
        %v1686 = vrot.slane %v1685, 2
        %v1687 = vadd.f32 %v1685, %v1686
        %v1688 = vrot.slane %v1687, 1
        %v1689 = vadd.f32 %v1687, %v1688
        %v1690 = vsel %vm398, %v1660, 0.0
        %v1691 = vrot.slane %v1690, 4
        %v1692 = vadd.f32 %v1690, %v1691
        %v1693 = vrot.slane %v1692, 2
        %v1694 = vadd.f32 %v1692, %v1693
        %v1695 = vrot.slane %v1694, 1
        %v1696 = vadd.f32 %v1694, %v1695
        %v1697 = vsel %vm398, %v1662, 0.0
        %v1698 = vrot.slane %v1697, 4
        %v1699 = vadd.f32 %v1697, %v1698
        %v1700 = vrot.slane %v1699, 2
        %v1701 = vadd.f32 %v1699, %v1700
        %v1702 = vrot.slane %v1701, 1
        %v1703 = vadd.f32 %v1701, %v1702
        %v1704 = vsel %vm398, %v1664, 0.0
        %v1705 = vrot.slane %v1704, 4
        %v1706 = vadd.f32 %v1704, %v1705
        %v1707 = vrot.slane %v1706, 2
        %v1708 = vadd.f32 %v1706, %v1707
        %v1709 = vrot.slane %v1708, 1
        %v1710 = vadd.f32 %v1708, %v1709
        %v1711 = vsel %vm398, %v1666, 0.0
        %v1712 = vrot.slane %v1711, 4
        %v1713 = vadd.f32 %v1711, %v1712
        %v1714 = vrot.slane %v1713, 2
        %v1715 = vadd.f32 %v1713, %v1714
        %v1716 = vrot.slane %v1715, 1
        %v1717 = vadd.f32 %v1715, %v1716
        %v1718 = vsel %vm398, %v1668, 0.0
        %v1719 = vrot.slane %v1718, 4
        %v1720 = vadd.f32 %v1718, %v1719
        %v1721 = vrot.slane %v1720, 2
        %v1722 = vadd.f32 %v1720, %v1721
        %v1723 = vrot.slane %v1722, 1
        %v1724 = vadd.f32 %v1722, %v1723
        %1725 = vrot.lane.b32.xlu0 %v505, 96
        %v1726 = vpop.permute.xlu0 %1725
        %v1728 = vmul.f32 %v1654, %v1726
        %v1729 = vmul.f32 %v1656, %v1726
        %v1730 = vmul.f32 %v1658, %v1726
        %v1731 = vmul.f32 %v1660, %v1726
        %v1732 = vmul.f32 %v1662, %v1726
        %v1733 = vmul.f32 %v1664, %v1726
        %v1734 = vmul.f32 %v1666, %v1726
        %v1735 = vmul.f32 %v1668, %v1726
        %v1736 = vsel %vm398, %v1728, 0.0
        %v1737 = vrot.slane %v1736, 4
        %v1738 = vadd.f32 %v1736, %v1737
        %v1739 = vrot.slane %v1738, 2
        %v1740 = vadd.f32 %v1738, %v1739
        %v1741 = vrot.slane %v1740, 1
        %v1742 = vadd.f32 %v1740, %v1741
        %v1743 = vsel %vm398, %v1729, 0.0
        %v1744 = vrot.slane %v1743, 4
        %v1745 = vadd.f32 %v1743, %v1744
        %v1746 = vrot.slane %v1745, 2
        %v1747 = vadd.f32 %v1745, %v1746
        %v1748 = vrot.slane %v1747, 1
        %v1749 = vadd.f32 %v1747, %v1748
        %v1750 = vsel %vm398, %v1730, 0.0
        %v1751 = vrot.slane %v1750, 4
        %v1752 = vadd.f32 %v1750, %v1751
        %v1753 = vrot.slane %v1752, 2
        %v1754 = vadd.f32 %v1752, %v1753
        %v1755 = vrot.slane %v1754, 1
        %v1756 = vadd.f32 %v1754, %v1755
        %v1757 = vsel %vm398, %v1731, 0.0
        %v1758 = vrot.slane %v1757, 4
        %v1759 = vadd.f32 %v1757, %v1758
        %v1760 = vrot.slane %v1759, 2
        %v1761 = vadd.f32 %v1759, %v1760
        %v1762 = vrot.slane %v1761, 1
        %v1763 = vadd.f32 %v1761, %v1762
        %v1764 = vsel %vm398, %v1732, 0.0
        %v1765 = vrot.slane %v1764, 4
        %v1766 = vadd.f32 %v1764, %v1765
        %v1767 = vrot.slane %v1766, 2
        %v1768 = vadd.f32 %v1766, %v1767
        %v1769 = vrot.slane %v1768, 1
        %v1770 = vadd.f32 %v1768, %v1769
        %v1771 = vsel %vm398, %v1733, 0.0
        %v1772 = vrot.slane %v1771, 4
        %v1773 = vadd.f32 %v1771, %v1772
        %v1774 = vrot.slane %v1773, 2
        %v1775 = vadd.f32 %v1773, %v1774
        %v1776 = vrot.slane %v1775, 1
        %v1777 = vadd.f32 %v1775, %v1776
        %v1778 = vsel %vm398, %v1734, 0.0
        %v1779 = vrot.slane %v1778, 4
        %v1780 = vadd.f32 %v1778, %v1779
        %v1781 = vrot.slane %v1780, 2
        %v1782 = vadd.f32 %v1780, %v1781
        %v1783 = vrot.slane %v1782, 1
        %v1784 = vadd.f32 %v1782, %v1783
        %v1785 = vsel %vm398, %v1735, 0.0
        %v1786 = vrot.slane %v1785, 4
        %v1787 = vadd.f32 %v1785, %v1786
        %v1788 = vrot.slane %v1787, 2
        %v1789 = vadd.f32 %v1787, %v1788
        %v1790 = vrot.slane %v1789, 1
        %v1791 = vadd.f32 %v1789, %v1790
        %v1792 = vrcp.pop %v1675
        %v1793 = vmul.f32 %v1742, %v1792
        %v1794 = vrcp.pop %v1682
        %v1795 = vmul.f32 %v1749, %v1794
        %v1796 = vrcp.pop %v1689
        %v1797 = vmul.f32 %v1756, %v1796
        %v1798 = vrcp.pop %v1696
        %v1799 = vmul.f32 %v1763, %v1798
        %v1800 = vrcp.pop %v1703
        %v1801 = vmul.f32 %v1770, %v1800
        %v1802 = vrcp.pop %v1710
        %v1803 = vmul.f32 %v1777, %v1802
        %v1804 = vrcp.pop %v1717
        %v1805 = vmul.f32 %v1784, %v1804
        %v1806 = vrcp.pop %v1724
        %v1807 = vmul.f32 %v1791, %v1806
        %v1809 = vcombine.high %v510, %v510
        %v1811 = vunpack.c.l.s4 1966171168
        %v1812 = vunpack.c.0.s8 %v1811
        %v1813 = vlaneseq
        %v1814 = vshrl.u32 %v1813, 7
        %v1815 = vsub.s32 %v1812, %v1814
        %v1816 = vrot.slane %v510, %v1815
        %v1818 = vunpack.c.l.s4 1966171168
        %v1819 = vunpack.c.0.s8 %v1818
        %v1820 = vlaneseq
        %v1821 = vshrl.u32 %v1820, 7
        %v1822 = vsub.s32 %v1819, %v1821
        %v1823 = vrot.slane %v1809, %v1822
        %v1824 = vcombine.high %v1816, %v1816
        %v1825 = vcombine.high %v1823, %v1823
        %v1827 = vunpack.c.l.s4 1966171168
        %v1828 = vunpack.c.0.s8 %v1827
        %v1829 = vlaneseq
        %v1830 = vshrl.u32 %v1829, 7
        %v1831 = vsub.s32 %v1828, %v1830
        %v1832 = vrot.slane %v1816, %v1831
        %v1834 = vunpack.c.l.s4 1966171168
        %v1835 = vunpack.c.0.s8 %v1834
        %v1836 = vlaneseq
        %v1837 = vshrl.u32 %v1836, 7
        %v1838 = vsub.s32 %v1835, %v1837
        %v1839 = vrot.slane %v1823, %v1838
        %v1841 = vunpack.c.l.s4 1966171168
        %v1842 = vunpack.c.0.s8 %v1841
        %v1843 = vlaneseq
        %v1844 = vshrl.u32 %v1843, 7
        %v1845 = vsub.s32 %v1842, %v1844
        %v1846 = vrot.slane %v1824, %v1845
        %v1848 = vunpack.c.l.s4 1966171168
        %v1849 = vunpack.c.0.s8 %v1848
        %v1850 = vlaneseq
        %v1851 = vshrl.u32 %v1850, 7
        %v1852 = vsub.s32 %v1849, %v1851
        %v1853 = vrot.slane %v1825, %v1852
        %v1854 = vcombine.high %v1832, %v1832
        %v1855 = vcombine.high %v1839, %v1839
        %v1856 = vcombine.high %v1846, %v1846
        %v1857 = vcombine.high %v1853, %v1853
        %v1858 = vlaneseq
        %v1859 = vshrl.u32 %v1858, 7
        %v1860 = vsub.s32 0, %v1859
        %v1861 = vrot.slane %v1832, %v1860
        %v1862 = vlaneseq
        %v1863 = vshrl.u32 %v1862, 7
        %v1864 = vsub.s32 0, %v1863
        %v1865 = vrot.slane %v1846, %v1864
        %v1866 = vlaneseq
        %v1867 = vshrl.u32 %v1866, 7
        %v1868 = vsub.s32 0, %v1867
        %v1869 = vrot.slane %v1854, %v1868
        %v1870 = vlaneseq
        %v1871 = vshrl.u32 %v1870, 7
        %v1872 = vsub.s32 0, %v1871
        %v1873 = vrot.slane %v1856, %v1872
        %v1874 = vlaneseq
        %v1875 = vshrl.u32 %v1874, 7
        %v1876 = vsub.s32 0, %v1875
        %v1877 = vrot.slane %v1839, %v1876
        %v1878 = vlaneseq
        %v1879 = vshrl.u32 %v1878, 7
        %v1880 = vsub.s32 0, %v1879
        %v1881 = vrot.slane %v1853, %v1880
        %v1882 = vlaneseq
        %v1883 = vshrl.u32 %v1882, 7
        %v1884 = vsub.s32 0, %v1883
        %v1885 = vrot.slane %v1855, %v1884
        %v1886 = vlaneseq
        %v1887 = vshrl.u32 %v1886, 7
        %v1888 = vsub.s32 0, %v1887
        %v1889 = vrot.slane %v1857, %v1888
        %1898 = vrot.lane.b32.xlu0 %v510, 112
        %v1899 = vpop.permute.xlu0 %1898
        %v1901 = vmul.f32 %v1861, %v1899
        %v1902 = vmul.f32 %v1865, %v1899
        %v1903 = vmul.f32 %v1869, %v1899
        %v1904 = vmul.f32 %v1873, %v1899
        %v1905 = vmul.f32 %v1877, %v1899
        %v1906 = vmul.f32 %v1881, %v1899
        %v1907 = vmul.f32 %v1885, %v1899
        %v1908 = vmul.f32 %v1889, %v1899
        %v1909 = vsel %vm398, %v1901, -inf
        %v1910 = vrot.slane %v1909, 4
        %v1911 = vmax.f32 %v1909, %v1910
        %v1912 = vrot.slane %v1911, 2
        %v1913 = vmax.f32 %v1911, %v1912
        %v1914 = vrot.slane %v1913, 1
        %v1915 = vmax.f32 %v1913, %v1914
        %v1916 = vsel %vm398, %v1902, -inf
        %v1917 = vrot.slane %v1916, 4
        %v1918 = vmax.f32 %v1916, %v1917
        %v1919 = vrot.slane %v1918, 2
        %v1920 = vmax.f32 %v1918, %v1919
        %v1921 = vrot.slane %v1920, 1
        %v1922 = vmax.f32 %v1920, %v1921
        %v1923 = vsel %vm398, %v1903, -inf
        %v1924 = vrot.slane %v1923, 4
        %v1925 = vmax.f32 %v1923, %v1924
        %v1926 = vrot.slane %v1925, 2
        %v1927 = vmax.f32 %v1925, %v1926
        %v1928 = vrot.slane %v1927, 1
        %v1929 = vmax.f32 %v1927, %v1928
        %v1930 = vsel %vm398, %v1904, -inf
        %v1931 = vrot.slane %v1930, 4
        %v1932 = vmax.f32 %v1930, %v1931
        %v1933 = vrot.slane %v1932, 2
        %v1934 = vmax.f32 %v1932, %v1933
        %v1935 = vrot.slane %v1934, 1
        %v1936 = vmax.f32 %v1934, %v1935
        %v1937 = vsel %vm398, %v1905, -inf
        %v1938 = vrot.slane %v1937, 4
        %v1939 = vmax.f32 %v1937, %v1938
        %v1940 = vrot.slane %v1939, 2
        %v1941 = vmax.f32 %v1939, %v1940
        %v1942 = vrot.slane %v1941, 1
        %v1943 = vmax.f32 %v1941, %v1942
        %v1944 = vsel %vm398, %v1906, -inf
        %v1945 = vrot.slane %v1944, 4
        %v1946 = vmax.f32 %v1944, %v1945
        %v1947 = vrot.slane %v1946, 2
        %v1948 = vmax.f32 %v1946, %v1947
        %v1949 = vrot.slane %v1948, 1
        %v1950 = vmax.f32 %v1948, %v1949
        %v1951 = vsel %vm398, %v1907, -inf
        %v1952 = vrot.slane %v1951, 4
        %v1953 = vmax.f32 %v1951, %v1952
        %v1954 = vrot.slane %v1953, 2
        %v1955 = vmax.f32 %v1953, %v1954
        %v1956 = vrot.slane %v1955, 1
        %v1957 = vmax.f32 %v1955, %v1956
        %v1958 = vsel %vm398, %v1908, -inf
        %v1959 = vrot.slane %v1958, 4
        %v1960 = vmax.f32 %v1958, %v1959
        %v1961 = vrot.slane %v1960, 2
        %v1962 = vmax.f32 %v1960, %v1961
        %v1963 = vrot.slane %v1962, 1
        %v1964 = vmax.f32 %v1962, %v1963
        %v1965 = vsub.f32 %v1901, %v1915
        %v1966 = vsub.f32 %v1902, %v1922
        %v1967 = vsub.f32 %v1903, %v1929
        %v1968 = vsub.f32 %v1904, %v1936
        %v1969 = vsub.f32 %v1905, %v1943
        %v1970 = vsub.f32 %v1906, %v1950
        %v1971 = vsub.f32 %v1907, %v1957
        %v1972 = vsub.f32 %v1908, %v1964
        %v1973 = vmul.f32 %v1965, 1.442695
        %v1974 = vpow.pop %v1973
        %v1975 = vmul.f32 %v1966, 1.442695
        %v1976 = vpow.pop %v1975
        %v1977 = vmul.f32 %v1967, 1.442695
        %v1978 = vpow.pop %v1977
        %v1979 = vmul.f32 %v1968, 1.442695
        %v1980 = vpow.pop %v1979
        %v1981 = vmul.f32 %v1969, 1.442695
        %v1982 = vpow.pop %v1981
        %v1983 = vmul.f32 %v1970, 1.442695
        %v1984 = vpow.pop %v1983
        %v1985 = vmul.f32 %v1971, 1.442695
        %v1986 = vpow.pop %v1985
        %v1987 = vmul.f32 %v1972, 1.442695
        %v1988 = vpow.pop %v1987
        %v1989 = vsel %vm398, %v1974, 0.0
        %v1990 = vrot.slane %v1989, 4
        %v1991 = vadd.f32 %v1989, %v1990
        %v1992 = vrot.slane %v1991, 2
        %v1993 = vadd.f32 %v1991, %v1992
        %v1994 = vrot.slane %v1993, 1
        %v1995 = vadd.f32 %v1993, %v1994
        %v1996 = vsel %vm398, %v1976, 0.0
        %v1997 = vrot.slane %v1996, 4
        %v1998 = vadd.f32 %v1996, %v1997
        %v1999 = vrot.slane %v1998, 2
        %v2000 = vadd.f32 %v1998, %v1999
        %v2001 = vrot.slane %v2000, 1
        %v2002 = vadd.f32 %v2000, %v2001
        %v2003 = vsel %vm398, %v1978, 0.0
        %v2004 = vrot.slane %v2003, 4
        %v2005 = vadd.f32 %v2003, %v2004
        %v2006 = vrot.slane %v2005, 2
        %v2007 = vadd.f32 %v2005, %v2006
        %v2008 = vrot.slane %v2007, 1
        %v2009 = vadd.f32 %v2007, %v2008
        %v2010 = vsel %vm398, %v1980, 0.0
        %v2011 = vrot.slane %v2010, 4
        %v2012 = vadd.f32 %v2010, %v2011
        %v2013 = vrot.slane %v2012, 2
        %v2014 = vadd.f32 %v2012, %v2013
        %v2015 = vrot.slane %v2014, 1
        %v2016 = vadd.f32 %v2014, %v2015
        %v2017 = vsel %vm398, %v1982, 0.0
        %v2018 = vrot.slane %v2017, 4
        %v2019 = vadd.f32 %v2017, %v2018
        %v2020 = vrot.slane %v2019, 2
        %v2021 = vadd.f32 %v2019, %v2020
        %v2022 = vrot.slane %v2021, 1
        %v2023 = vadd.f32 %v2021, %v2022
        %v2024 = vsel %vm398, %v1984, 0.0
        %v2025 = vrot.slane %v2024, 4
        %v2026 = vadd.f32 %v2024, %v2025
        %v2027 = vrot.slane %v2026, 2
        %v2028 = vadd.f32 %v2026, %v2027
        %v2029 = vrot.slane %v2028, 1
        %v2030 = vadd.f32 %v2028, %v2029
        %v2031 = vsel %vm398, %v1986, 0.0
        %v2032 = vrot.slane %v2031, 4
        %v2033 = vadd.f32 %v2031, %v2032
        %v2034 = vrot.slane %v2033, 2
        %v2035 = vadd.f32 %v2033, %v2034
        %v2036 = vrot.slane %v2035, 1
        %v2037 = vadd.f32 %v2035, %v2036
        %v2038 = vsel %vm398, %v1988, 0.0
        %v2039 = vrot.slane %v2038, 4
        %v2040 = vadd.f32 %v2038, %v2039
        %v2041 = vrot.slane %v2040, 2
        %v2042 = vadd.f32 %v2040, %v2041
        %v2043 = vrot.slane %v2042, 1
        %v2044 = vadd.f32 %v2042, %v2043
        %2045 = vrot.lane.b32.xlu0 %v510, 96
        %v2046 = vpop.permute.xlu0 %2045
        %v2048 = vmul.f32 %v1974, %v2046
        %v2049 = vmul.f32 %v1976, %v2046
        %v2050 = vmul.f32 %v1978, %v2046
        %v2051 = vmul.f32 %v1980, %v2046
        %v2052 = vmul.f32 %v1982, %v2046
        %v2053 = vmul.f32 %v1984, %v2046
        %v2054 = vmul.f32 %v1986, %v2046
        %v2055 = vmul.f32 %v1988, %v2046
        %v2056 = vsel %vm398, %v2048, 0.0
        %v2057 = vrot.slane %v2056, 4
        %v2058 = vadd.f32 %v2056, %v2057
        %v2059 = vrot.slane %v2058, 2
        %v2060 = vadd.f32 %v2058, %v2059
        %v2061 = vrot.slane %v2060, 1
        %v2062 = vadd.f32 %v2060, %v2061
        %v2063 = vsel %vm398, %v2049, 0.0
        %v2064 = vrot.slane %v2063, 4
        %v2065 = vadd.f32 %v2063, %v2064
        %v2066 = vrot.slane %v2065, 2
        %v2067 = vadd.f32 %v2065, %v2066
        %v2068 = vrot.slane %v2067, 1
        %v2069 = vadd.f32 %v2067, %v2068
        %v2070 = vsel %vm398, %v2050, 0.0
        %v2071 = vrot.slane %v2070, 4
        %v2072 = vadd.f32 %v2070, %v2071
        %v2073 = vrot.slane %v2072, 2
        %v2074 = vadd.f32 %v2072, %v2073
        %v2075 = vrot.slane %v2074, 1
        %v2076 = vadd.f32 %v2074, %v2075
        %v2077 = vsel %vm398, %v2051, 0.0
        %v2078 = vrot.slane %v2077, 4
        %v2079 = vadd.f32 %v2077, %v2078
        %v2080 = vrot.slane %v2079, 2
        %v2081 = vadd.f32 %v2079, %v2080
        %v2082 = vrot.slane %v2081, 1
        %v2083 = vadd.f32 %v2081, %v2082
        %v2084 = vsel %vm398, %v2052, 0.0
        %v2085 = vrot.slane %v2084, 4
        %v2086 = vadd.f32 %v2084, %v2085
        %v2087 = vrot.slane %v2086, 2
        %v2088 = vadd.f32 %v2086, %v2087
        %v2089 = vrot.slane %v2088, 1
        %v2090 = vadd.f32 %v2088, %v2089
        %v2091 = vsel %vm398, %v2053, 0.0
        %v2092 = vrot.slane %v2091, 4
        %v2093 = vadd.f32 %v2091, %v2092
        %v2094 = vrot.slane %v2093, 2
        %v2095 = vadd.f32 %v2093, %v2094
        %v2096 = vrot.slane %v2095, 1
        %v2097 = vadd.f32 %v2095, %v2096
        %v2098 = vsel %vm398, %v2054, 0.0
        %v2099 = vrot.slane %v2098, 4
        %v2100 = vadd.f32 %v2098, %v2099
        %v2101 = vrot.slane %v2100, 2
        %v2102 = vadd.f32 %v2100, %v2101
        %v2103 = vrot.slane %v2102, 1
        %v2104 = vadd.f32 %v2102, %v2103
        %v2105 = vsel %vm398, %v2055, 0.0
        %v2106 = vrot.slane %v2105, 4
        %v2107 = vadd.f32 %v2105, %v2106
        %v2108 = vrot.slane %v2107, 2
        %v2109 = vadd.f32 %v2107, %v2108
        %v2110 = vrot.slane %v2109, 1
        %v2111 = vadd.f32 %v2109, %v2110
        %v2112 = vrcp.pop %v1995
        %v2113 = vmul.f32 %v2062, %v2112
        %v2114 = vrcp.pop %v2002
        %v2115 = vmul.f32 %v2069, %v2114
        %v2116 = vrcp.pop %v2009
        %v2117 = vmul.f32 %v2076, %v2116
        %v2118 = vrcp.pop %v2016
        %v2119 = vmul.f32 %v2083, %v2118
        %v2120 = vrcp.pop %v2023
        %v2121 = vmul.f32 %v2090, %v2120
        %v2122 = vrcp.pop %v2030
        %v2123 = vmul.f32 %v2097, %v2122
        %v2124 = vrcp.pop %v2037
        %v2125 = vmul.f32 %v2104, %v2124
        %v2126 = vrcp.pop %v2044
        %v2127 = vmul.f32 %v2111, %v2126
        %v2129 = vcombine.high %v515, %v515
        %v2131 = vunpack.c.l.s4 1966171168
        %v2132 = vunpack.c.0.s8 %v2131
        %v2133 = vlaneseq
        %v2134 = vshrl.u32 %v2133, 7
        %v2135 = vsub.s32 %v2132, %v2134
        %v2136 = vrot.slane %v515, %v2135
        %v2138 = vunpack.c.l.s4 1966171168
        %v2139 = vunpack.c.0.s8 %v2138
        %v2140 = vlaneseq
        %v2141 = vshrl.u32 %v2140, 7
        %v2142 = vsub.s32 %v2139, %v2141
        %v2143 = vrot.slane %v2129, %v2142
        %v2144 = vcombine.high %v2136, %v2136
        %v2145 = vcombine.high %v2143, %v2143
        %v2147 = vunpack.c.l.s4 1966171168
        %v2148 = vunpack.c.0.s8 %v2147
        %v2149 = vlaneseq
        %v2150 = vshrl.u32 %v2149, 7
        %v2151 = vsub.s32 %v2148, %v2150
        %v2152 = vrot.slane %v2136, %v2151
        %v2154 = vunpack.c.l.s4 1966171168
        %v2155 = vunpack.c.0.s8 %v2154
        %v2156 = vlaneseq
        %v2157 = vshrl.u32 %v2156, 7
        %v2158 = vsub.s32 %v2155, %v2157
        %v2159 = vrot.slane %v2143, %v2158
        %v2161 = vunpack.c.l.s4 1966171168
        %v2162 = vunpack.c.0.s8 %v2161
        %v2163 = vlaneseq
        %v2164 = vshrl.u32 %v2163, 7
        %v2165 = vsub.s32 %v2162, %v2164
        %v2166 = vrot.slane %v2144, %v2165
        %v2168 = vunpack.c.l.s4 1966171168
        %v2169 = vunpack.c.0.s8 %v2168
        %v2170 = vlaneseq
        %v2171 = vshrl.u32 %v2170, 7
        %v2172 = vsub.s32 %v2169, %v2171
        %v2173 = vrot.slane %v2145, %v2172
        %v2174 = vcombine.high %v2152, %v2152
        %v2175 = vcombine.high %v2159, %v2159
        %v2176 = vcombine.high %v2166, %v2166
        %v2177 = vcombine.high %v2173, %v2173
        %v2178 = vlaneseq
        %v2179 = vshrl.u32 %v2178, 7
        %v2180 = vsub.s32 0, %v2179
        %v2181 = vrot.slane %v2152, %v2180
        %v2182 = vlaneseq
        %v2183 = vshrl.u32 %v2182, 7
        %v2184 = vsub.s32 0, %v2183
        %v2185 = vrot.slane %v2166, %v2184
        %v2186 = vlaneseq
        %v2187 = vshrl.u32 %v2186, 7
        %v2188 = vsub.s32 0, %v2187
        %v2189 = vrot.slane %v2174, %v2188
        %v2190 = vlaneseq
        %v2191 = vshrl.u32 %v2190, 7
        %v2192 = vsub.s32 0, %v2191
        %v2193 = vrot.slane %v2176, %v2192
        %v2194 = vlaneseq
        %v2195 = vshrl.u32 %v2194, 7
        %v2196 = vsub.s32 0, %v2195
        %v2197 = vrot.slane %v2159, %v2196
        %v2198 = vlaneseq
        %v2199 = vshrl.u32 %v2198, 7
        %v2200 = vsub.s32 0, %v2199
        %v2201 = vrot.slane %v2173, %v2200
        %v2202 = vlaneseq
        %v2203 = vshrl.u32 %v2202, 7
        %v2204 = vsub.s32 0, %v2203
        %v2205 = vrot.slane %v2175, %v2204
        %v2206 = vlaneseq
        %v2207 = vshrl.u32 %v2206, 7
        %v2208 = vsub.s32 0, %v2207
        %v2209 = vrot.slane %v2177, %v2208
        %2218 = vrot.lane.b32.xlu0 %v515, 112
        %v2219 = vpop.permute.xlu0 %2218
        %v2221 = vmul.f32 %v2181, %v2219
        %v2222 = vmul.f32 %v2185, %v2219
        %v2223 = vmul.f32 %v2189, %v2219
        %v2224 = vmul.f32 %v2193, %v2219
        %v2225 = vmul.f32 %v2197, %v2219
        %v2226 = vmul.f32 %v2201, %v2219
        %v2227 = vmul.f32 %v2205, %v2219
        %v2228 = vmul.f32 %v2209, %v2219
        %v2229 = vsel %vm398, %v2221, -inf
        %v2230 = vrot.slane %v2229, 4
        %v2231 = vmax.f32 %v2229, %v2230
        %v2232 = vrot.slane %v2231, 2
        %v2233 = vmax.f32 %v2231, %v2232
        %v2234 = vrot.slane %v2233, 1
        %v2235 = vmax.f32 %v2233, %v2234
        %v2236 = vsel %vm398, %v2222, -inf
        %v2237 = vrot.slane %v2236, 4
        %v2238 = vmax.f32 %v2236, %v2237
        %v2239 = vrot.slane %v2238, 2
        %v2240 = vmax.f32 %v2238, %v2239
        %v2241 = vrot.slane %v2240, 1
        %v2242 = vmax.f32 %v2240, %v2241
        %v2243 = vsel %vm398, %v2223, -inf
        %v2244 = vrot.slane %v2243, 4
        %v2245 = vmax.f32 %v2243, %v2244
        %v2246 = vrot.slane %v2245, 2
        %v2247 = vmax.f32 %v2245, %v2246
        %v2248 = vrot.slane %v2247, 1
        %v2249 = vmax.f32 %v2247, %v2248
        %v2250 = vsel %vm398, %v2224, -inf
        %v2251 = vrot.slane %v2250, 4
        %v2252 = vmax.f32 %v2250, %v2251
        %v2253 = vrot.slane %v2252, 2
        %v2254 = vmax.f32 %v2252, %v2253
        %v2255 = vrot.slane %v2254, 1
        %v2256 = vmax.f32 %v2254, %v2255
        %v2257 = vsel %vm398, %v2225, -inf
        %v2258 = vrot.slane %v2257, 4
        %v2259 = vmax.f32 %v2257, %v2258
        %v2260 = vrot.slane %v2259, 2
        %v2261 = vmax.f32 %v2259, %v2260
        %v2262 = vrot.slane %v2261, 1
        %v2263 = vmax.f32 %v2261, %v2262
        %v2264 = vsel %vm398, %v2226, -inf
        %v2265 = vrot.slane %v2264, 4
        %v2266 = vmax.f32 %v2264, %v2265
        %v2267 = vrot.slane %v2266, 2
        %v2268 = vmax.f32 %v2266, %v2267
        %v2269 = vrot.slane %v2268, 1
        %v2270 = vmax.f32 %v2268, %v2269
        %v2271 = vsel %vm398, %v2227, -inf
        %v2272 = vrot.slane %v2271, 4
        %v2273 = vmax.f32 %v2271, %v2272
        %v2274 = vrot.slane %v2273, 2
        %v2275 = vmax.f32 %v2273, %v2274
        %v2276 = vrot.slane %v2275, 1
        %v2277 = vmax.f32 %v2275, %v2276
        %v2278 = vsel %vm398, %v2228, -inf
        %v2279 = vrot.slane %v2278, 4
        %v2280 = vmax.f32 %v2278, %v2279
        %v2281 = vrot.slane %v2280, 2
        %v2282 = vmax.f32 %v2280, %v2281
        %v2283 = vrot.slane %v2282, 1
        %v2284 = vmax.f32 %v2282, %v2283
        %v2285 = vsub.f32 %v2221, %v2235
        %v2286 = vsub.f32 %v2222, %v2242
        %v2287 = vsub.f32 %v2223, %v2249
        %v2288 = vsub.f32 %v2224, %v2256
        %v2289 = vsub.f32 %v2225, %v2263
        %v2290 = vsub.f32 %v2226, %v2270
        %v2291 = vsub.f32 %v2227, %v2277
        %v2292 = vsub.f32 %v2228, %v2284
        %v2293 = vmul.f32 %v2285, 1.442695
        %v2294 = vpow.pop %v2293
        %v2295 = vmul.f32 %v2286, 1.442695
        %v2296 = vpow.pop %v2295
        %v2297 = vmul.f32 %v2287, 1.442695
        %v2298 = vpow.pop %v2297
        %v2299 = vmul.f32 %v2288, 1.442695
        %v2300 = vpow.pop %v2299
        %v2301 = vmul.f32 %v2289, 1.442695
        %v2302 = vpow.pop %v2301
        %v2303 = vmul.f32 %v2290, 1.442695
        %v2304 = vpow.pop %v2303
        %v2305 = vmul.f32 %v2291, 1.442695
        %v2306 = vpow.pop %v2305
        %v2307 = vmul.f32 %v2292, 1.442695
        %v2308 = vpow.pop %v2307
        %v2309 = vsel %vm398, %v2294, 0.0
        %v2310 = vrot.slane %v2309, 4
        %v2311 = vadd.f32 %v2309, %v2310
        %v2312 = vrot.slane %v2311, 2
        %v2313 = vadd.f32 %v2311, %v2312
        %v2314 = vrot.slane %v2313, 1
        %v2315 = vadd.f32 %v2313, %v2314
        %v2316 = vsel %vm398, %v2296, 0.0
        %v2317 = vrot.slane %v2316, 4
        %v2318 = vadd.f32 %v2316, %v2317
        %v2319 = vrot.slane %v2318, 2
        %v2320 = vadd.f32 %v2318, %v2319
        %v2321 = vrot.slane %v2320, 1
        %v2322 = vadd.f32 %v2320, %v2321
        %v2323 = vsel %vm398, %v2298, 0.0
        %v2324 = vrot.slane %v2323, 4
        %v2325 = vadd.f32 %v2323, %v2324
        %v2326 = vrot.slane %v2325, 2
        %v2327 = vadd.f32 %v2325, %v2326
        %v2328 = vrot.slane %v2327, 1
        %v2329 = vadd.f32 %v2327, %v2328
        %v2330 = vsel %vm398, %v2300, 0.0
        %v2331 = vrot.slane %v2330, 4
        %v2332 = vadd.f32 %v2330, %v2331
        %v2333 = vrot.slane %v2332, 2
        %v2334 = vadd.f32 %v2332, %v2333
        %v2335 = vrot.slane %v2334, 1
        %v2336 = vadd.f32 %v2334, %v2335
        %v2337 = vsel %vm398, %v2302, 0.0
        %v2338 = vrot.slane %v2337, 4
        %v2339 = vadd.f32 %v2337, %v2338
        %v2340 = vrot.slane %v2339, 2
        %v2341 = vadd.f32 %v2339, %v2340
        %v2342 = vrot.slane %v2341, 1
        %v2343 = vadd.f32 %v2341, %v2342
        %v2344 = vsel %vm398, %v2304, 0.0
        %v2345 = vrot.slane %v2344, 4
        %v2346 = vadd.f32 %v2344, %v2345
        %v2347 = vrot.slane %v2346, 2
        %v2348 = vadd.f32 %v2346, %v2347
        %v2349 = vrot.slane %v2348, 1
        %v2350 = vadd.f32 %v2348, %v2349
        %v2351 = vsel %vm398, %v2306, 0.0
        %v2352 = vrot.slane %v2351, 4
        %v2353 = vadd.f32 %v2351, %v2352
        %v2354 = vrot.slane %v2353, 2
        %v2355 = vadd.f32 %v2353, %v2354
        %v2356 = vrot.slane %v2355, 1
        %v2357 = vadd.f32 %v2355, %v2356
        %v2358 = vsel %vm398, %v2308, 0.0
        %v2359 = vrot.slane %v2358, 4
        %v2360 = vadd.f32 %v2358, %v2359
        %v2361 = vrot.slane %v2360, 2
        %v2362 = vadd.f32 %v2360, %v2361
        %v2363 = vrot.slane %v2362, 1
        %v2364 = vadd.f32 %v2362, %v2363
        %2365 = vrot.lane.b32.xlu0 %v515, 96
        %v2366 = vpop.permute.xlu0 %2365
        %v2368 = vmul.f32 %v2294, %v2366
        %v2369 = vmul.f32 %v2296, %v2366
        %v2370 = vmul.f32 %v2298, %v2366
        %v2371 = vmul.f32 %v2300, %v2366
        %v2372 = vmul.f32 %v2302, %v2366
        %v2373 = vmul.f32 %v2304, %v2366
        %v2374 = vmul.f32 %v2306, %v2366
        %v2375 = vmul.f32 %v2308, %v2366
        %v2376 = vsel %vm398, %v2368, 0.0
        %v2377 = vrot.slane %v2376, 4
        %v2378 = vadd.f32 %v2376, %v2377
        %v2379 = vrot.slane %v2378, 2
        %v2380 = vadd.f32 %v2378, %v2379
        %v2381 = vrot.slane %v2380, 1
        %v2382 = vadd.f32 %v2380, %v2381
        %v2383 = vsel %vm398, %v2369, 0.0
        %v2384 = vrot.slane %v2383, 4
        %v2385 = vadd.f32 %v2383, %v2384
        %v2386 = vrot.slane %v2385, 2
        %v2387 = vadd.f32 %v2385, %v2386
        %v2388 = vrot.slane %v2387, 1
        %v2389 = vadd.f32 %v2387, %v2388
        %v2390 = vsel %vm398, %v2370, 0.0
        %v2391 = vrot.slane %v2390, 4
        %v2392 = vadd.f32 %v2390, %v2391
        %v2393 = vrot.slane %v2392, 2
        %v2394 = vadd.f32 %v2392, %v2393
        %v2395 = vrot.slane %v2394, 1
        %v2396 = vadd.f32 %v2394, %v2395
        %v2397 = vsel %vm398, %v2371, 0.0
        %v2398 = vrot.slane %v2397, 4
        %v2399 = vadd.f32 %v2397, %v2398
        %v2400 = vrot.slane %v2399, 2
        %v2401 = vadd.f32 %v2399, %v2400
        %v2402 = vrot.slane %v2401, 1
        %v2403 = vadd.f32 %v2401, %v2402
        %v2404 = vsel %vm398, %v2372, 0.0
        %v2405 = vrot.slane %v2404, 4
        %v2406 = vadd.f32 %v2404, %v2405
        %v2407 = vrot.slane %v2406, 2
        %v2408 = vadd.f32 %v2406, %v2407
        %v2409 = vrot.slane %v2408, 1
        %v2410 = vadd.f32 %v2408, %v2409
        %v2411 = vsel %vm398, %v2373, 0.0
        %v2412 = vrot.slane %v2411, 4
        %v2413 = vadd.f32 %v2411, %v2412
        %v2414 = vrot.slane %v2413, 2
        %v2415 = vadd.f32 %v2413, %v2414
        %v2416 = vrot.slane %v2415, 1
        %v2417 = vadd.f32 %v2415, %v2416
        %v2418 = vsel %vm398, %v2374, 0.0
        %v2419 = vrot.slane %v2418, 4
        %v2420 = vadd.f32 %v2418, %v2419
        %v2421 = vrot.slane %v2420, 2
        %v2422 = vadd.f32 %v2420, %v2421
        %v2423 = vrot.slane %v2422, 1
        %v2424 = vadd.f32 %v2422, %v2423
        %v2425 = vsel %vm398, %v2375, 0.0
        %v2426 = vrot.slane %v2425, 4
        %v2427 = vadd.f32 %v2425, %v2426
        %v2428 = vrot.slane %v2427, 2
        %v2429 = vadd.f32 %v2427, %v2428
        %v2430 = vrot.slane %v2429, 1
        %v2431 = vadd.f32 %v2429, %v2430
        %v2432 = vrcp.pop %v2315
        %v2433 = vmul.f32 %v2382, %v2432
        %v2434 = vrcp.pop %v2322
        %v2435 = vmul.f32 %v2389, %v2434
        %v2436 = vrcp.pop %v2329
        %v2437 = vmul.f32 %v2396, %v2436
        %v2438 = vrcp.pop %v2336
        %v2439 = vmul.f32 %v2403, %v2438
        %v2440 = vrcp.pop %v2343
        %v2441 = vmul.f32 %v2410, %v2440
        %v2442 = vrcp.pop %v2350
        %v2443 = vmul.f32 %v2417, %v2442
        %v2444 = vrcp.pop %v2357
        %v2445 = vmul.f32 %v2424, %v2444
        %v2446 = vrcp.pop %v2364
        %v2447 = vmul.f32 %v2431, %v2446
        %v2449 = vcombine.high %v520, %v520
        %v2451 = vunpack.c.l.s4 1966171168
        %v2452 = vunpack.c.0.s8 %v2451
        %v2453 = vlaneseq
        %v2454 = vshrl.u32 %v2453, 7
        %v2455 = vsub.s32 %v2452, %v2454
        %v2456 = vrot.slane %v520, %v2455
        %v2458 = vunpack.c.l.s4 1966171168
        %v2459 = vunpack.c.0.s8 %v2458
        %v2460 = vlaneseq
        %v2461 = vshrl.u32 %v2460, 7
        %v2462 = vsub.s32 %v2459, %v2461
        %v2463 = vrot.slane %v2449, %v2462
        %v2464 = vcombine.high %v2456, %v2456
        %v2465 = vcombine.high %v2463, %v2463
        %v2467 = vunpack.c.l.s4 1966171168
        %v2468 = vunpack.c.0.s8 %v2467
        %v2469 = vlaneseq
        %v2470 = vshrl.u32 %v2469, 7
        %v2471 = vsub.s32 %v2468, %v2470
        %v2472 = vrot.slane %v2456, %v2471
        %v2474 = vunpack.c.l.s4 1966171168
        %v2475 = vunpack.c.0.s8 %v2474
        %v2476 = vlaneseq
        %v2477 = vshrl.u32 %v2476, 7
        %v2478 = vsub.s32 %v2475, %v2477
        %v2479 = vrot.slane %v2463, %v2478
        %v2481 = vunpack.c.l.s4 1966171168
        %v2482 = vunpack.c.0.s8 %v2481
        %v2483 = vlaneseq
        %v2484 = vshrl.u32 %v2483, 7
        %v2485 = vsub.s32 %v2482, %v2484
        %v2486 = vrot.slane %v2464, %v2485
        %v2488 = vunpack.c.l.s4 1966171168
        %v2489 = vunpack.c.0.s8 %v2488
        %v2490 = vlaneseq
        %v2491 = vshrl.u32 %v2490, 7
        %v2492 = vsub.s32 %v2489, %v2491
        %v2493 = vrot.slane %v2465, %v2492
        %v2494 = vcombine.high %v2472, %v2472
        %v2495 = vcombine.high %v2479, %v2479
        %v2496 = vcombine.high %v2486, %v2486
        %v2497 = vcombine.high %v2493, %v2493
        %v2498 = vlaneseq
        %v2499 = vshrl.u32 %v2498, 7
        %v2500 = vsub.s32 0, %v2499
        %v2501 = vrot.slane %v2472, %v2500
        %v2502 = vlaneseq
        %v2503 = vshrl.u32 %v2502, 7
        %v2504 = vsub.s32 0, %v2503
        %v2505 = vrot.slane %v2486, %v2504
        %v2506 = vlaneseq
        %v2507 = vshrl.u32 %v2506, 7
        %v2508 = vsub.s32 0, %v2507
        %v2509 = vrot.slane %v2494, %v2508
        %v2510 = vlaneseq
        %v2511 = vshrl.u32 %v2510, 7
        %v2512 = vsub.s32 0, %v2511
        %v2513 = vrot.slane %v2496, %v2512
        %v2514 = vlaneseq
        %v2515 = vshrl.u32 %v2514, 7
        %v2516 = vsub.s32 0, %v2515
        %v2517 = vrot.slane %v2479, %v2516
        %v2518 = vlaneseq
        %v2519 = vshrl.u32 %v2518, 7
        %v2520 = vsub.s32 0, %v2519
        %v2521 = vrot.slane %v2493, %v2520
        %v2522 = vlaneseq
        %v2523 = vshrl.u32 %v2522, 7
        %v2524 = vsub.s32 0, %v2523
        %v2525 = vrot.slane %v2495, %v2524
        %v2526 = vlaneseq
        %v2527 = vshrl.u32 %v2526, 7
        %v2528 = vsub.s32 0, %v2527
        %v2529 = vrot.slane %v2497, %v2528
        %2538 = vrot.lane.b32.xlu0 %v520, 112
        %v2539 = vpop.permute.xlu0 %2538
        %v2541 = vmul.f32 %v2501, %v2539
        %v2542 = vmul.f32 %v2505, %v2539
        %v2543 = vmul.f32 %v2509, %v2539
        %v2544 = vmul.f32 %v2513, %v2539
        %v2545 = vmul.f32 %v2517, %v2539
        %v2546 = vmul.f32 %v2521, %v2539
        %v2547 = vmul.f32 %v2525, %v2539
        %v2548 = vmul.f32 %v2529, %v2539
        %v2549 = vsel %vm398, %v2541, -inf
        %v2550 = vrot.slane %v2549, 4
        %v2551 = vmax.f32 %v2549, %v2550
        %v2552 = vrot.slane %v2551, 2
        %v2553 = vmax.f32 %v2551, %v2552
        %v2554 = vrot.slane %v2553, 1
        %v2555 = vmax.f32 %v2553, %v2554
        %v2556 = vsel %vm398, %v2542, -inf
        %v2557 = vrot.slane %v2556, 4
        %v2558 = vmax.f32 %v2556, %v2557
        %v2559 = vrot.slane %v2558, 2
        %v2560 = vmax.f32 %v2558, %v2559
        %v2561 = vrot.slane %v2560, 1
        %v2562 = vmax.f32 %v2560, %v2561
        %v2563 = vsel %vm398, %v2543, -inf
        %v2564 = vrot.slane %v2563, 4
        %v2565 = vmax.f32 %v2563, %v2564
        %v2566 = vrot.slane %v2565, 2
        %v2567 = vmax.f32 %v2565, %v2566
        %v2568 = vrot.slane %v2567, 1
        %v2569 = vmax.f32 %v2567, %v2568
        %v2570 = vsel %vm398, %v2544, -inf
        %v2571 = vrot.slane %v2570, 4
        %v2572 = vmax.f32 %v2570, %v2571
        %v2573 = vrot.slane %v2572, 2
        %v2574 = vmax.f32 %v2572, %v2573
        %v2575 = vrot.slane %v2574, 1
        %v2576 = vmax.f32 %v2574, %v2575
        %v2577 = vsel %vm398, %v2545, -inf
        %v2578 = vrot.slane %v2577, 4
        %v2579 = vmax.f32 %v2577, %v2578
        %v2580 = vrot.slane %v2579, 2
        %v2581 = vmax.f32 %v2579, %v2580
        %v2582 = vrot.slane %v2581, 1
        %v2583 = vmax.f32 %v2581, %v2582
        %v2584 = vsel %vm398, %v2546, -inf
        %v2585 = vrot.slane %v2584, 4
        %v2586 = vmax.f32 %v2584, %v2585
        %v2587 = vrot.slane %v2586, 2
        %v2588 = vmax.f32 %v2586, %v2587
        %v2589 = vrot.slane %v2588, 1
        %v2590 = vmax.f32 %v2588, %v2589
        %v2591 = vsel %vm398, %v2547, -inf
        %v2592 = vrot.slane %v2591, 4
        %v2593 = vmax.f32 %v2591, %v2592
        %v2594 = vrot.slane %v2593, 2
        %v2595 = vmax.f32 %v2593, %v2594
        %v2596 = vrot.slane %v2595, 1
        %v2597 = vmax.f32 %v2595, %v2596
        %v2598 = vsel %vm398, %v2548, -inf
        %v2599 = vrot.slane %v2598, 4
        %v2600 = vmax.f32 %v2598, %v2599
        %v2601 = vrot.slane %v2600, 2
        %v2602 = vmax.f32 %v2600, %v2601
        %v2603 = vrot.slane %v2602, 1
        %v2604 = vmax.f32 %v2602, %v2603
        %v2605 = vsub.f32 %v2541, %v2555
        %v2606 = vsub.f32 %v2542, %v2562
        %v2607 = vsub.f32 %v2543, %v2569
        %v2608 = vsub.f32 %v2544, %v2576
        %v2609 = vsub.f32 %v2545, %v2583
        %v2610 = vsub.f32 %v2546, %v2590
        %v2611 = vsub.f32 %v2547, %v2597
        %v2612 = vsub.f32 %v2548, %v2604
        %v2613 = vmul.f32 %v2605, 1.442695
        %v2614 = vpow.pop %v2613
        %v2615 = vmul.f32 %v2606, 1.442695
        %v2616 = vpow.pop %v2615
        %v2617 = vmul.f32 %v2607, 1.442695
        %v2618 = vpow.pop %v2617
        %v2619 = vmul.f32 %v2608, 1.442695
        %v2620 = vpow.pop %v2619
        %v2621 = vmul.f32 %v2609, 1.442695
        %v2622 = vpow.pop %v2621
        %v2623 = vmul.f32 %v2610, 1.442695
        %v2624 = vpow.pop %v2623
        %v2625 = vmul.f32 %v2611, 1.442695
        %v2626 = vpow.pop %v2625
        %v2627 = vmul.f32 %v2612, 1.442695
        %v2628 = vpow.pop %v2627
        %v2629 = vsel %vm398, %v2614, 0.0
        %v2630 = vrot.slane %v2629, 4
        %v2631 = vadd.f32 %v2629, %v2630
        %v2632 = vrot.slane %v2631, 2
        %v2633 = vadd.f32 %v2631, %v2632
        %v2634 = vrot.slane %v2633, 1
        %v2635 = vadd.f32 %v2633, %v2634
        %v2636 = vsel %vm398, %v2616, 0.0
        %v2637 = vrot.slane %v2636, 4
        %v2638 = vadd.f32 %v2636, %v2637
        %v2639 = vrot.slane %v2638, 2
        %v2640 = vadd.f32 %v2638, %v2639
        %v2641 = vrot.slane %v2640, 1
        %v2642 = vadd.f32 %v2640, %v2641
        %v2643 = vsel %vm398, %v2618, 0.0
        %v2644 = vrot.slane %v2643, 4
        %v2645 = vadd.f32 %v2643, %v2644
        %v2646 = vrot.slane %v2645, 2
        %v2647 = vadd.f32 %v2645, %v2646
        %v2648 = vrot.slane %v2647, 1
        %v2649 = vadd.f32 %v2647, %v2648
        %v2650 = vsel %vm398, %v2620, 0.0
        %v2651 = vrot.slane %v2650, 4
        %v2652 = vadd.f32 %v2650, %v2651
        %v2653 = vrot.slane %v2652, 2
        %v2654 = vadd.f32 %v2652, %v2653
        %v2655 = vrot.slane %v2654, 1
        %v2656 = vadd.f32 %v2654, %v2655
        %v2657 = vsel %vm398, %v2622, 0.0
        %v2658 = vrot.slane %v2657, 4
        %v2659 = vadd.f32 %v2657, %v2658
        %v2660 = vrot.slane %v2659, 2
        %v2661 = vadd.f32 %v2659, %v2660
        %v2662 = vrot.slane %v2661, 1
        %v2663 = vadd.f32 %v2661, %v2662
        %v2664 = vsel %vm398, %v2624, 0.0
        %v2665 = vrot.slane %v2664, 4
        %v2666 = vadd.f32 %v2664, %v2665
        %v2667 = vrot.slane %v2666, 2
        %v2668 = vadd.f32 %v2666, %v2667
        %v2669 = vrot.slane %v2668, 1
        %v2670 = vadd.f32 %v2668, %v2669
        %v2671 = vsel %vm398, %v2626, 0.0
        %v2672 = vrot.slane %v2671, 4
        %v2673 = vadd.f32 %v2671, %v2672
        %v2674 = vrot.slane %v2673, 2
        %v2675 = vadd.f32 %v2673, %v2674
        %v2676 = vrot.slane %v2675, 1
        %v2677 = vadd.f32 %v2675, %v2676
        %v2678 = vsel %vm398, %v2628, 0.0
        %v2679 = vrot.slane %v2678, 4
        %v2680 = vadd.f32 %v2678, %v2679
        %v2681 = vrot.slane %v2680, 2
        %v2682 = vadd.f32 %v2680, %v2681
        %v2683 = vrot.slane %v2682, 1
        %v2684 = vadd.f32 %v2682, %v2683
        %2685 = vrot.lane.b32.xlu0 %v520, 96
        %v2686 = vpop.permute.xlu0 %2685
        %v2688 = vmul.f32 %v2614, %v2686
        %v2689 = vmul.f32 %v2616, %v2686
        %v2690 = vmul.f32 %v2618, %v2686
        %v2691 = vmul.f32 %v2620, %v2686
        %v2692 = vmul.f32 %v2622, %v2686
        %v2693 = vmul.f32 %v2624, %v2686
        %v2694 = vmul.f32 %v2626, %v2686
        %v2695 = vmul.f32 %v2628, %v2686
        %v2696 = vsel %vm398, %v2688, 0.0
        %v2697 = vrot.slane %v2696, 4
        %v2698 = vadd.f32 %v2696, %v2697
        %v2699 = vrot.slane %v2698, 2
        %v2700 = vadd.f32 %v2698, %v2699
        %v2701 = vrot.slane %v2700, 1
        %v2702 = vadd.f32 %v2700, %v2701
        %v2703 = vsel %vm398, %v2689, 0.0
        %v2704 = vrot.slane %v2703, 4
        %v2705 = vadd.f32 %v2703, %v2704
        %v2706 = vrot.slane %v2705, 2
        %v2707 = vadd.f32 %v2705, %v2706
        %v2708 = vrot.slane %v2707, 1
        %v2709 = vadd.f32 %v2707, %v2708
        %v2710 = vsel %vm398, %v2690, 0.0
        %v2711 = vrot.slane %v2710, 4
        %v2712 = vadd.f32 %v2710, %v2711
        %v2713 = vrot.slane %v2712, 2
        %v2714 = vadd.f32 %v2712, %v2713
        %v2715 = vrot.slane %v2714, 1
        %v2716 = vadd.f32 %v2714, %v2715
        %v2717 = vsel %vm398, %v2691, 0.0
        %v2718 = vrot.slane %v2717, 4
        %v2719 = vadd.f32 %v2717, %v2718
        %v2720 = vrot.slane %v2719, 2
        %v2721 = vadd.f32 %v2719, %v2720
        %v2722 = vrot.slane %v2721, 1
        %v2723 = vadd.f32 %v2721, %v2722
        %v2724 = vsel %vm398, %v2692, 0.0
        %v2725 = vrot.slane %v2724, 4
        %v2726 = vadd.f32 %v2724, %v2725
        %v2727 = vrot.slane %v2726, 2
        %v2728 = vadd.f32 %v2726, %v2727
        %v2729 = vrot.slane %v2728, 1
        %v2730 = vadd.f32 %v2728, %v2729
        %v2731 = vsel %vm398, %v2693, 0.0
        %v2732 = vrot.slane %v2731, 4
        %v2733 = vadd.f32 %v2731, %v2732
        %v2734 = vrot.slane %v2733, 2
        %v2735 = vadd.f32 %v2733, %v2734
        %v2736 = vrot.slane %v2735, 1
        %v2737 = vadd.f32 %v2735, %v2736
        %v2738 = vsel %vm398, %v2694, 0.0
        %v2739 = vrot.slane %v2738, 4
        %v2740 = vadd.f32 %v2738, %v2739
        %v2741 = vrot.slane %v2740, 2
        %v2742 = vadd.f32 %v2740, %v2741
        %v2743 = vrot.slane %v2742, 1
        %v2744 = vadd.f32 %v2742, %v2743
        %v2745 = vsel %vm398, %v2695, 0.0
        %v2746 = vrot.slane %v2745, 4
        %v2747 = vadd.f32 %v2745, %v2746
        %v2748 = vrot.slane %v2747, 2
        %v2749 = vadd.f32 %v2747, %v2748
        %v2750 = vrot.slane %v2749, 1
        %v2751 = vadd.f32 %v2749, %v2750
        %v2752 = vrcp.pop %v2635
        %v2753 = vmul.f32 %v2702, %v2752
        %v2754 = vrcp.pop %v2642
        %v2755 = vmul.f32 %v2709, %v2754
        %v2756 = vrcp.pop %v2649
        %v2757 = vmul.f32 %v2716, %v2756
        %v2758 = vrcp.pop %v2656
        %v2759 = vmul.f32 %v2723, %v2758
        %v2760 = vrcp.pop %v2663
        %v2761 = vmul.f32 %v2730, %v2760
        %v2762 = vrcp.pop %v2670
        %v2763 = vmul.f32 %v2737, %v2762
        %v2764 = vrcp.pop %v2677
        %v2765 = vmul.f32 %v2744, %v2764
        %v2766 = vrcp.pop %v2684
        %v2767 = vmul.f32 %v2751, %v2766
        %v2769 = vcombine.high %v525, %v525
        %v2771 = vunpack.c.l.s4 1966171168
        %v2772 = vunpack.c.0.s8 %v2771
        %v2773 = vlaneseq
        %v2774 = vshrl.u32 %v2773, 7
        %v2775 = vsub.s32 %v2772, %v2774
        %v2776 = vrot.slane %v525, %v2775
        %v2778 = vunpack.c.l.s4 1966171168
        %v2779 = vunpack.c.0.s8 %v2778
        %v2780 = vlaneseq
        %v2781 = vshrl.u32 %v2780, 7
        %v2782 = vsub.s32 %v2779, %v2781
        %v2783 = vrot.slane %v2769, %v2782
        %v2784 = vcombine.high %v2776, %v2776
        %v2785 = vcombine.high %v2783, %v2783
        %v2787 = vunpack.c.l.s4 1966171168
        %v2788 = vunpack.c.0.s8 %v2787
        %v2789 = vlaneseq
        %v2790 = vshrl.u32 %v2789, 7
        %v2791 = vsub.s32 %v2788, %v2790
        %v2792 = vrot.slane %v2776, %v2791
        %v2794 = vunpack.c.l.s4 1966171168
        %v2795 = vunpack.c.0.s8 %v2794
        %v2796 = vlaneseq
        %v2797 = vshrl.u32 %v2796, 7
        %v2798 = vsub.s32 %v2795, %v2797
        %v2799 = vrot.slane %v2783, %v2798
        %v2801 = vunpack.c.l.s4 1966171168
        %v2802 = vunpack.c.0.s8 %v2801
        %v2803 = vlaneseq
        %v2804 = vshrl.u32 %v2803, 7
        %v2805 = vsub.s32 %v2802, %v2804
        %v2806 = vrot.slane %v2784, %v2805
        %v2808 = vunpack.c.l.s4 1966171168
        %v2809 = vunpack.c.0.s8 %v2808
        %v2810 = vlaneseq
        %v2811 = vshrl.u32 %v2810, 7
        %v2812 = vsub.s32 %v2809, %v2811
        %v2813 = vrot.slane %v2785, %v2812
        %v2814 = vcombine.high %v2792, %v2792
        %v2815 = vcombine.high %v2799, %v2799
        %v2816 = vcombine.high %v2806, %v2806
        %v2817 = vcombine.high %v2813, %v2813
        %v2818 = vlaneseq
        %v2819 = vshrl.u32 %v2818, 7
        %v2820 = vsub.s32 0, %v2819
        %v2821 = vrot.slane %v2792, %v2820
        %v2822 = vlaneseq
        %v2823 = vshrl.u32 %v2822, 7
        %v2824 = vsub.s32 0, %v2823
        %v2825 = vrot.slane %v2806, %v2824
        %v2826 = vlaneseq
        %v2827 = vshrl.u32 %v2826, 7
        %v2828 = vsub.s32 0, %v2827
        %v2829 = vrot.slane %v2814, %v2828
        %v2830 = vlaneseq
        %v2831 = vshrl.u32 %v2830, 7
        %v2832 = vsub.s32 0, %v2831
        %v2833 = vrot.slane %v2816, %v2832
        %v2834 = vlaneseq
        %v2835 = vshrl.u32 %v2834, 7
        %v2836 = vsub.s32 0, %v2835
        %v2837 = vrot.slane %v2799, %v2836
        %v2838 = vlaneseq
        %v2839 = vshrl.u32 %v2838, 7
        %v2840 = vsub.s32 0, %v2839
        %v2841 = vrot.slane %v2813, %v2840
        %v2842 = vlaneseq
        %v2843 = vshrl.u32 %v2842, 7
        %v2844 = vsub.s32 0, %v2843
        %v2845 = vrot.slane %v2815, %v2844
        %v2846 = vlaneseq
        %v2847 = vshrl.u32 %v2846, 7
        %v2848 = vsub.s32 0, %v2847
        %v2849 = vrot.slane %v2817, %v2848
        %2858 = vrot.lane.b32.xlu0 %v525, 112
        %v2859 = vpop.permute.xlu0 %2858
        %v2861 = vmul.f32 %v2821, %v2859
        %v2862 = vmul.f32 %v2825, %v2859
        %v2863 = vmul.f32 %v2829, %v2859
        %v2864 = vmul.f32 %v2833, %v2859
        %v2865 = vmul.f32 %v2837, %v2859
        %v2866 = vmul.f32 %v2841, %v2859
        %v2867 = vmul.f32 %v2845, %v2859
        %v2868 = vmul.f32 %v2849, %v2859
        %v2869 = vsel %vm398, %v2861, -inf
        %v2870 = vrot.slane %v2869, 4
        %v2871 = vmax.f32 %v2869, %v2870
        %v2872 = vrot.slane %v2871, 2
        %v2873 = vmax.f32 %v2871, %v2872
        %v2874 = vrot.slane %v2873, 1
        %v2875 = vmax.f32 %v2873, %v2874
        %v2876 = vsel %vm398, %v2862, -inf
        %v2877 = vrot.slane %v2876, 4
        %v2878 = vmax.f32 %v2876, %v2877
        %v2879 = vrot.slane %v2878, 2
        %v2880 = vmax.f32 %v2878, %v2879
        %v2881 = vrot.slane %v2880, 1
        %v2882 = vmax.f32 %v2880, %v2881
        %v2883 = vsel %vm398, %v2863, -inf
        %v2884 = vrot.slane %v2883, 4
        %v2885 = vmax.f32 %v2883, %v2884
        %v2886 = vrot.slane %v2885, 2
        %v2887 = vmax.f32 %v2885, %v2886
        %v2888 = vrot.slane %v2887, 1
        %v2889 = vmax.f32 %v2887, %v2888
        %v2890 = vsel %vm398, %v2864, -inf
        %v2891 = vrot.slane %v2890, 4
        %v2892 = vmax.f32 %v2890, %v2891
        %v2893 = vrot.slane %v2892, 2
        %v2894 = vmax.f32 %v2892, %v2893
        %v2895 = vrot.slane %v2894, 1
        %v2896 = vmax.f32 %v2894, %v2895
        %v2897 = vsel %vm398, %v2865, -inf
        %v2898 = vrot.slane %v2897, 4
        %v2899 = vmax.f32 %v2897, %v2898
        %v2900 = vrot.slane %v2899, 2
        %v2901 = vmax.f32 %v2899, %v2900
        %v2902 = vrot.slane %v2901, 1
        %v2903 = vmax.f32 %v2901, %v2902
        %v2904 = vsel %vm398, %v2866, -inf
        %v2905 = vrot.slane %v2904, 4
        %v2906 = vmax.f32 %v2904, %v2905
        %v2907 = vrot.slane %v2906, 2
        %v2908 = vmax.f32 %v2906, %v2907
        %v2909 = vrot.slane %v2908, 1
        %v2910 = vmax.f32 %v2908, %v2909
        %v2911 = vsel %vm398, %v2867, -inf
        %v2912 = vrot.slane %v2911, 4
        %v2913 = vmax.f32 %v2911, %v2912
        %v2914 = vrot.slane %v2913, 2
        %v2915 = vmax.f32 %v2913, %v2914
        %v2916 = vrot.slane %v2915, 1
        %v2917 = vmax.f32 %v2915, %v2916
        %v2918 = vsel %vm398, %v2868, -inf
        %v2919 = vrot.slane %v2918, 4
        %v2920 = vmax.f32 %v2918, %v2919
        %v2921 = vrot.slane %v2920, 2
        %v2922 = vmax.f32 %v2920, %v2921
        %v2923 = vrot.slane %v2922, 1
        %v2924 = vmax.f32 %v2922, %v2923
        %v2925 = vsub.f32 %v2861, %v2875
        %v2926 = vsub.f32 %v2862, %v2882
        %v2927 = vsub.f32 %v2863, %v2889
        %v2928 = vsub.f32 %v2864, %v2896
        %v2929 = vsub.f32 %v2865, %v2903
        %v2930 = vsub.f32 %v2866, %v2910
        %v2931 = vsub.f32 %v2867, %v2917
        %v2932 = vsub.f32 %v2868, %v2924
        %v2933 = vmul.f32 %v2925, 1.442695
        %v2934 = vpow.pop %v2933
        %v2935 = vmul.f32 %v2926, 1.442695
        %v2936 = vpow.pop %v2935
        %v2937 = vmul.f32 %v2927, 1.442695
        %v2938 = vpow.pop %v2937
        %v2939 = vmul.f32 %v2928, 1.442695
        %v2940 = vpow.pop %v2939
        %v2941 = vmul.f32 %v2929, 1.442695
        %v2942 = vpow.pop %v2941
        %v2943 = vmul.f32 %v2930, 1.442695
        %v2944 = vpow.pop %v2943
        %v2945 = vmul.f32 %v2931, 1.442695
        %v2946 = vpow.pop %v2945
        %v2947 = vmul.f32 %v2932, 1.442695
        %v2948 = vpow.pop %v2947
        %v2949 = vsel %vm398, %v2934, 0.0
        %v2950 = vrot.slane %v2949, 4
        %v2951 = vadd.f32 %v2949, %v2950
        %v2952 = vrot.slane %v2951, 2
        %v2953 = vadd.f32 %v2951, %v2952
        %v2954 = vrot.slane %v2953, 1
        %v2955 = vadd.f32 %v2953, %v2954
        %v2956 = vsel %vm398, %v2936, 0.0
        %v2957 = vrot.slane %v2956, 4
        %v2958 = vadd.f32 %v2956, %v2957
        %v2959 = vrot.slane %v2958, 2
        %v2960 = vadd.f32 %v2958, %v2959
        %v2961 = vrot.slane %v2960, 1
        %v2962 = vadd.f32 %v2960, %v2961
        %v2963 = vsel %vm398, %v2938, 0.0
        %v2964 = vrot.slane %v2963, 4
        %v2965 = vadd.f32 %v2963, %v2964
        %v2966 = vrot.slane %v2965, 2
        %v2967 = vadd.f32 %v2965, %v2966
        %v2968 = vrot.slane %v2967, 1
        %v2969 = vadd.f32 %v2967, %v2968
        %v2970 = vsel %vm398, %v2940, 0.0
        %v2971 = vrot.slane %v2970, 4
        %v2972 = vadd.f32 %v2970, %v2971
        %v2973 = vrot.slane %v2972, 2
        %v2974 = vadd.f32 %v2972, %v2973
        %v2975 = vrot.slane %v2974, 1
        %v2976 = vadd.f32 %v2974, %v2975
        %v2977 = vsel %vm398, %v2942, 0.0
        %v2978 = vrot.slane %v2977, 4
        %v2979 = vadd.f32 %v2977, %v2978
        %v2980 = vrot.slane %v2979, 2
        %v2981 = vadd.f32 %v2979, %v2980
        %v2982 = vrot.slane %v2981, 1
        %v2983 = vadd.f32 %v2981, %v2982
        %v2984 = vsel %vm398, %v2944, 0.0
        %v2985 = vrot.slane %v2984, 4
        %v2986 = vadd.f32 %v2984, %v2985
        %v2987 = vrot.slane %v2986, 2
        %v2988 = vadd.f32 %v2986, %v2987
        %v2989 = vrot.slane %v2988, 1
        %v2990 = vadd.f32 %v2988, %v2989
        %v2991 = vsel %vm398, %v2946, 0.0
        %v2992 = vrot.slane %v2991, 4
        %v2993 = vadd.f32 %v2991, %v2992
        %v2994 = vrot.slane %v2993, 2
        %v2995 = vadd.f32 %v2993, %v2994
        %v2996 = vrot.slane %v2995, 1
        %v2997 = vadd.f32 %v2995, %v2996
        %v2998 = vsel %vm398, %v2948, 0.0
        %v2999 = vrot.slane %v2998, 4
        %v3000 = vadd.f32 %v2998, %v2999
        %v3001 = vrot.slane %v3000, 2
        %v3002 = vadd.f32 %v3000, %v3001
        %v3003 = vrot.slane %v3002, 1
        %v3004 = vadd.f32 %v3002, %v3003
        %3005 = vrot.lane.b32.xlu0 %v525, 96
        %v3006 = vpop.permute.xlu0 %3005
        %v3008 = vmul.f32 %v2934, %v3006
        %v3009 = vmul.f32 %v2936, %v3006
        %v3010 = vmul.f32 %v2938, %v3006
        %v3011 = vmul.f32 %v2940, %v3006
        %v3012 = vmul.f32 %v2942, %v3006
        %v3013 = vmul.f32 %v2944, %v3006
        %v3014 = vmul.f32 %v2946, %v3006
        %v3015 = vmul.f32 %v2948, %v3006
        %v3016 = vsel %vm398, %v3008, 0.0
        %v3017 = vrot.slane %v3016, 4
        %v3018 = vadd.f32 %v3016, %v3017
        %v3019 = vrot.slane %v3018, 2
        %v3020 = vadd.f32 %v3018, %v3019
        %v3021 = vrot.slane %v3020, 1
        %v3022 = vadd.f32 %v3020, %v3021
        %v3023 = vsel %vm398, %v3009, 0.0
        %v3024 = vrot.slane %v3023, 4
        %v3025 = vadd.f32 %v3023, %v3024
        %v3026 = vrot.slane %v3025, 2
        %v3027 = vadd.f32 %v3025, %v3026
        %v3028 = vrot.slane %v3027, 1
        %v3029 = vadd.f32 %v3027, %v3028
        %v3030 = vsel %vm398, %v3010, 0.0
        %v3031 = vrot.slane %v3030, 4
        %v3032 = vadd.f32 %v3030, %v3031
        %v3033 = vrot.slane %v3032, 2
        %v3034 = vadd.f32 %v3032, %v3033
        %v3035 = vrot.slane %v3034, 1
        %v3036 = vadd.f32 %v3034, %v3035
        %v3037 = vsel %vm398, %v3011, 0.0
        %v3038 = vrot.slane %v3037, 4
        %v3039 = vadd.f32 %v3037, %v3038
        %v3040 = vrot.slane %v3039, 2
        %v3041 = vadd.f32 %v3039, %v3040
        %v3042 = vrot.slane %v3041, 1
        %v3043 = vadd.f32 %v3041, %v3042
        %v3044 = vsel %vm398, %v3012, 0.0
        %v3045 = vrot.slane %v3044, 4
        %v3046 = vadd.f32 %v3044, %v3045
        %v3047 = vrot.slane %v3046, 2
        %v3048 = vadd.f32 %v3046, %v3047
        %v3049 = vrot.slane %v3048, 1
        %v3050 = vadd.f32 %v3048, %v3049
        %v3051 = vsel %vm398, %v3013, 0.0
        %v3052 = vrot.slane %v3051, 4
        %v3053 = vadd.f32 %v3051, %v3052
        %v3054 = vrot.slane %v3053, 2
        %v3055 = vadd.f32 %v3053, %v3054
        %v3056 = vrot.slane %v3055, 1
        %v3057 = vadd.f32 %v3055, %v3056
        %v3058 = vsel %vm398, %v3014, 0.0
        %v3059 = vrot.slane %v3058, 4
        %v3060 = vadd.f32 %v3058, %v3059
        %v3061 = vrot.slane %v3060, 2
        %v3062 = vadd.f32 %v3060, %v3061
        %v3063 = vrot.slane %v3062, 1
        %v3064 = vadd.f32 %v3062, %v3063
        %v3065 = vsel %vm398, %v3015, 0.0
        %v3066 = vrot.slane %v3065, 4
        %v3067 = vadd.f32 %v3065, %v3066
        %v3068 = vrot.slane %v3067, 2
        %v3069 = vadd.f32 %v3067, %v3068
        %v3070 = vrot.slane %v3069, 1
        %v3071 = vadd.f32 %v3069, %v3070
        %v3072 = vrcp.pop %v2955
        %v3073 = vmul.f32 %v3022, %v3072
        %v3074 = vrcp.pop %v2962
        %v3075 = vmul.f32 %v3029, %v3074
        %v3076 = vrcp.pop %v2969
        %v3077 = vmul.f32 %v3036, %v3076
        %v3078 = vrcp.pop %v2976
        %v3079 = vmul.f32 %v3043, %v3078
        %v3080 = vrcp.pop %v2983
        %v3081 = vmul.f32 %v3050, %v3080
        %v3082 = vrcp.pop %v2990
        %v3083 = vmul.f32 %v3057, %v3082
        %v3084 = vrcp.pop %v2997
        %v3085 = vmul.f32 %v3064, %v3084
        %v3086 = vrcp.pop %v3004
        %v3087 = vmul.f32 %v3071, %v3086
        %vm3096 = vcmask 1041409
        %v3097 = vsel %vm3096, %v835, %v833
        %vm3098 = vcmask 1042434
        %v3099 = vsel %vm3098, %v837, %v3097
        %vm3100 = vcmask 1043459
        %v3101 = vsel %vm3100, %v839, %v3099
        %vm3102 = vcmask 1044484
        %v3103 = vsel %vm3102, %v841, %v3101
        %vm3104 = vcmask 1045509
        %v3105 = vsel %vm3104, %v843, %v3103
        %vm3106 = vcmask 1046534
        %v3107 = vsel %vm3106, %v845, %v3105
        %vm3108 = vcmask 1047559
        %v3109 = vsel %vm3108, %v847, %v3107
        %v3118 = vsel %vm3096, %v1155, %v1153
        %v3119 = vsel %vm3098, %v1157, %v3118
        %v3120 = vsel %vm3100, %v1159, %v3119
        %v3121 = vsel %vm3102, %v1161, %v3120
        %v3122 = vsel %vm3104, %v1163, %v3121
        %v3123 = vsel %vm3106, %v1165, %v3122
        %v3124 = vsel %vm3108, %v1167, %v3123
        %v3133 = vsel %vm3096, %v1475, %v1473
        %v3134 = vsel %vm3098, %v1477, %v3133
        %v3135 = vsel %vm3100, %v1479, %v3134
        %v3136 = vsel %vm3102, %v1481, %v3135
        %v3137 = vsel %vm3104, %v1483, %v3136
        %v3138 = vsel %vm3106, %v1485, %v3137
        %v3139 = vsel %vm3108, %v1487, %v3138
        %v3148 = vsel %vm3096, %v1795, %v1793
        %v3149 = vsel %vm3098, %v1797, %v3148
        %v3150 = vsel %vm3100, %v1799, %v3149
        %v3151 = vsel %vm3102, %v1801, %v3150
        %v3152 = vsel %vm3104, %v1803, %v3151
        %v3153 = vsel %vm3106, %v1805, %v3152
        %v3154 = vsel %vm3108, %v1807, %v3153
        %v3163 = vsel %vm3096, %v2115, %v2113
        %v3164 = vsel %vm3098, %v2117, %v3163
        %v3165 = vsel %vm3100, %v2119, %v3164
        %v3166 = vsel %vm3102, %v2121, %v3165
        %v3167 = vsel %vm3104, %v2123, %v3166
        %v3168 = vsel %vm3106, %v2125, %v3167
        %v3169 = vsel %vm3108, %v2127, %v3168
        %v3178 = vsel %vm3096, %v2435, %v2433
        %v3179 = vsel %vm3098, %v2437, %v3178
        %v3180 = vsel %vm3100, %v2439, %v3179
        %v3181 = vsel %vm3102, %v2441, %v3180
        %v3182 = vsel %vm3104, %v2443, %v3181
        %v3183 = vsel %vm3106, %v2445, %v3182
        %v3184 = vsel %vm3108, %v2447, %v3183
        %v3193 = vsel %vm3096, %v2755, %v2753
        %v3194 = vsel %vm3098, %v2757, %v3193
        %v3195 = vsel %vm3100, %v2759, %v3194
        %v3196 = vsel %vm3102, %v2761, %v3195
        %v3197 = vsel %vm3104, %v2763, %v3196
        %v3198 = vsel %vm3106, %v2765, %v3197
        %v3199 = vsel %vm3108, %v2767, %v3198
        %v3208 = vsel %vm3096, %v3075, %v3073
        %v3209 = vsel %vm3098, %v3077, %v3208
        %v3210 = vsel %vm3100, %v3079, %v3209
        %v3211 = vsel %vm3102, %v3081, %v3210
        %v3212 = vsel %vm3104, %v3083, %v3211
        %v3213 = vsel %vm3106, %v3085, %v3212
        %v3214 = vsel %vm3108, %v3087, %v3213
        %v3215 = vld [vmem:[#allocation5] sm:$0xff]
        %v3216 = vld [vmem:[#allocation5 + $0x8] sm:$0xff]
        %v3217 = vld [vmem:[%s4] sm:$0x1]
        %v3219 = vlaneseq
        %v3220 = vshrl.u32 %v3219, 7
        %v3221 = vsub.s32 0, %v3220
        %v3222 = vrot.slane %v3217, %v3221
        %v3224 = vsel %vm398, %v3109, 0
        %v3226 = vsel %vm398, %v3124, 0
        %v3228 = vsel %vm398, %v3139, 0
        %v3230 = vsel %vm398, %v3154, 0
        %v3232 = vsel %vm398, %v3169, 0
        %v3234 = vsel %vm398, %v3184, 0
        %v3236 = vsel %vm398, %v3199, 0
        %v3238 = vsel %vm398, %v3214, 0
        %3240 = vmatprep.subr.mxu0 0.0
        %3241 = vmatpush1.msra.mxu0 %v3215
        %3242 = vmatprep.subr.mxu0 0.0
        %3243 = vmatpush1.msra.mxu0 %v3216
        %3244 = vmatprep.subr.mxu0 0.0
        %3245 = vmatpush1.msra.mxu0 0.0
        %3246 = vmatprep.subr.mxu0 0.0
        %3247 = vmatpush1.msra.mxu0 0.0
        %3248 = vmatprep.subr.mxu0 0.0
        %3249 = vmatpush1.msra.mxu0 0.0
        %3250 = vmatprep.subr.mxu0 0.0
        %3251 = vmatpush1.msra.mxu0 0.0
        %3252 = vmatprep.subr.mxu0 0.0
        %3253 = vmatpush1.msra.mxu0 0.0
        %3254 = vmatprep.subr.mxu0 0.0
        %3255 = vmatpush1.msra.mxu0 0.0
        %3256 = vmatprep.subr.mxu0 0.0
        %3257 = vmatpush1.msra.mxu0 0.0
        %3258 = vmatprep.subr.mxu0 0.0
        %3259 = vmatpush1.msra.mxu0 0.0
        %3260 = vmatprep.subr.mxu0 0.0
        %3261 = vmatpush1.msra.mxu0 0.0
        %3262 = vmatprep.subr.mxu0 0.0
        %3263 = vmatpush1.msra.mxu0 0.0
        %3264 = vmatprep.subr.mxu0 0.0
        %3265 = vmatpush1.msra.mxu0 0.0
        %3266 = vmatprep.subr.mxu0 0.0
        %3267 = vmatpush1.msra.mxu0 0.0
        %3268 = vmatprep.subr.mxu0 0.0
        %3269 = vmatpush1.msra.mxu0 0.0
        %3270 = vmatprep.subr.mxu0 0.0
        %3271 = vmatpush1.msra.mxu0 0.0
        %3272 = vmatprep.subr.mxu0 0.0
        %3273 = vmatpush1.msra.mxu0 0.0
        %3274 = vmatprep.subr.mxu0 0.0
        %3275 = vmatpush1.msra.mxu0 0.0
        %3276 = vmatprep.subr.mxu0 0.0
        %3277 = vmatpush1.msra.mxu0 0.0
        %3278 = vmatprep.subr.mxu0 0.0
        %3279 = vmatpush1.msra.mxu0 0.0
        %3280 = vmatprep.subr.mxu0 0.0
        %3281 = vmatpush1.msra.mxu0 0.0
        %3282 = vmatprep.subr.mxu0 0.0
        %3283 = vmatpush1.msra.mxu0 0.0
        %3284 = vmatprep.subr.mxu0 0.0
        %3285 = vmatpush1.msra.mxu0 0.0
        %3286 = vmatprep.subr.mxu0 0.0
        %3287 = vmatpush1.msra.mxu0 0.0
        %3288 = vmatprep.subr.mxu0 0.0
        %3289 = vmatpush1.msra.mxu0 0.0
        %3290 = vmatprep.subr.mxu0 0.0
        %3291 = vmatpush1.msra.mxu0 0.0
        %3292 = vmatprep.subr.mxu0 0.0
        %3293 = vmatpush1.msra.mxu0 0.0
        %3294 = vmatprep.subr.mxu0 0.0
        %3295 = vmatpush1.msra.mxu0 0.0
        %3296 = vmatprep.subr.mxu0 0.0
        %3297 = vmatpush1.msra.mxu0 0.0
        %3298 = vmatprep.subr.mxu0 0.0
        %3299 = vmatpush1.msra.mxu0 0.0
        %3300 = vmatprep.subr.mxu0 0.0
        %3301 = vmatpush1.msra.mxu0 0.0
        %3302 = vmatprep.subr.mxu0 0.0
        %3303 = vmatpush1.msra.mxu0 0.0
        %3304 = vmatprep.mubr.f32.mxu0 0.0
        %3305 = vmatmul.mubr.f32.gmra.mrb[0].mxu0 %v3224
        %v3306 = vpop.f32.mrb[0].mxu0
        %v3307 = vadd.f32 %v3222, %v3306
        %v3308 = vpop.f32.mrb[0].mxu0
        %3309 = vmatprep.mubr.f32.mxu0 0.0
        %3310 = vmatmul.mubr.f32.gmra.mrb[0].mxu0 %v3226
        %v3311 = vpop.f32.mrb[0].mxu0
        %v3312 = vadd.f32 %v3222, %v3311
        %v3313 = vpop.f32.mrb[0].mxu0
        %3314 = vmatprep.mubr.f32.mxu0 0.0
        %3315 = vmatmul.mubr.f32.gmra.mrb[0].mxu0 %v3228
        %v3316 = vpop.f32.mrb[0].mxu0
        %v3317 = vadd.f32 %v3222, %v3316
        %v3318 = vpop.f32.mrb[0].mxu0
        %3319 = vmatprep.mubr.f32.mxu0 0.0
        %3320 = vmatmul.mubr.f32.gmra.mrb[0].mxu0 %v3230
        %v3321 = vpop.f32.mrb[0].mxu0
        %v3322 = vadd.f32 %v3222, %v3321
        %v3323 = vpop.f32.mrb[0].mxu0
        %3324 = vmatprep.mubr.f32.mxu0 0.0
        %3325 = vmatmul.mubr.f32.gmra.mrb[0].mxu0 %v3232
        %v3326 = vpop.f32.mrb[0].mxu0
        %v3327 = vadd.f32 %v3222, %v3326
        %v3328 = vpop.f32.mrb[0].mxu0
        %3329 = vmatprep.mubr.f32.mxu0 0.0
        %3330 = vmatmul.mubr.f32.gmra.mrb[0].mxu0 %v3234
        %v3331 = vpop.f32.mrb[0].mxu0
        %v3332 = vadd.f32 %v3222, %v3331
        %v3333 = vpop.f32.mrb[0].mxu0
        %3334 = vmatprep.mubr.f32.mxu0 0.0
        %3335 = vmatmul.mubr.f32.gmra.mrb[0].mxu0 %v3236
        %v3336 = vpop.f32.mrb[0].mxu0
        %v3337 = vadd.f32 %v3222, %v3336
        %v3338 = vpop.f32.mrb[0].mxu0
        %3339 = vmatprep.mubr.f32.mxu0 0.0
        %3340 = vmatmul.mubr.f32.gmra.mrb[0].mxu0 %v3238
        %v3341 = vpop.f32.mrb[0].mxu0
        %v3342 = vadd.f32 %v3222, %v3341
        %v3343 = vpop.f32.mrb[0].mxu0
        %3344 = vdwg.mxu0
        %s3345 = scalar_lea.vmem [#allocation5], 16
        %v3346 = vld [vmem:[%s3345] sm:$0xff]
        %v3347 = vld [vmem:[%s3345 + $0x8] sm:$0xff]
        %s3348 = scalar_lea.vmem %s4, 1
        %v3349 = vld [vmem:[%s3348] sm:$0x1]
        %v3351 = vlaneseq
        %v3352 = vshrl.u32 %v3351, 7
        %v3353 = vsub.s32 0, %v3352
        %v3354 = vrot.slane %v3349, %v3353
        %v3357 = vsel %vm398, %v3307, 0
        %v3360 = vsel %vm398, %v3312, 0
        %v3363 = vsel %vm398, %v3317, 0
        %v3366 = vsel %vm398, %v3322, 0
        %v3369 = vsel %vm398, %v3327, 0
        %v3372 = vsel %vm398, %v3332, 0
        %v3375 = vsel %vm398, %v3337, 0
        %v3378 = vsel %vm398, %v3342, 0
        %3380 = vmatprep.subr.mxu0 0.0
        %3381 = vmatpush1.msra.mxu0 %v3346
        %3382 = vmatprep.subr.mxu0 0.0
        %3383 = vmatpush1.msra.mxu0 %v3347
        %3384 = vmatprep.subr.mxu0 0.0
        %3385 = vmatpush1.msra.mxu0 0.0
        %3386 = vmatprep.subr.mxu0 0.0
        %3387 = vmatpush1.msra.mxu0 0.0
        %3388 = vmatprep.subr.mxu0 0.0
        %3389 = vmatpush1.msra.mxu0 0.0
        %3390 = vmatprep.subr.mxu0 0.0
        %3391 = vmatpush1.msra.mxu0 0.0
        %3392 = vmatprep.subr.mxu0 0.0
        %3393 = vmatpush1.msra.mxu0 0.0
        %3394 = vmatprep.subr.mxu0 0.0
        %3395 = vmatpush1.msra.mxu0 0.0
        %3396 = vmatprep.subr.mxu0 0.0
        %3397 = vmatpush1.msra.mxu0 0.0
        %3398 = vmatprep.subr.mxu0 0.0
        %3399 = vmatpush1.msra.mxu0 0.0
        %3400 = vmatprep.subr.mxu0 0.0
        %3401 = vmatpush1.msra.mxu0 0.0
        %3402 = vmatprep.subr.mxu0 0.0
        %3403 = vmatpush1.msra.mxu0 0.0
        %3404 = vmatprep.subr.mxu0 0.0
        %3405 = vmatpush1.msra.mxu0 0.0
        %3406 = vmatprep.subr.mxu0 0.0
        %3407 = vmatpush1.msra.mxu0 0.0
        %3408 = vmatprep.subr.mxu0 0.0
        %3409 = vmatpush1.msra.mxu0 0.0
        %3410 = vmatprep.subr.mxu0 0.0
        %3411 = vmatpush1.msra.mxu0 0.0
        %3412 = vmatprep.subr.mxu0 0.0
        %3413 = vmatpush1.msra.mxu0 0.0
        %3414 = vmatprep.subr.mxu0 0.0
        %3415 = vmatpush1.msra.mxu0 0.0
        %3416 = vmatprep.subr.mxu0 0.0
        %3417 = vmatpush1.msra.mxu0 0.0
        %3418 = vmatprep.subr.mxu0 0.0
        %3419 = vmatpush1.msra.mxu0 0.0
        %3420 = vmatprep.subr.mxu0 0.0
        %3421 = vmatpush1.msra.mxu0 0.0
        %3422 = vmatprep.subr.mxu0 0.0
        %3423 = vmatpush1.msra.mxu0 0.0
        %3424 = vmatprep.subr.mxu0 0.0
        %3425 = vmatpush1.msra.mxu0 0.0
        %3426 = vmatprep.subr.mxu0 0.0
        %3427 = vmatpush1.msra.mxu0 0.0
        %3428 = vmatprep.subr.mxu0 0.0
        %3429 = vmatpush1.msra.mxu0 0.0
        %3430 = vmatprep.subr.mxu0 0.0
        %3431 = vmatpush1.msra.mxu0 0.0
        %3432 = vmatprep.subr.mxu0 0.0
        %3433 = vmatpush1.msra.mxu0 0.0
        %3434 = vmatprep.subr.mxu0 0.0
        %3435 = vmatpush1.msra.mxu0 0.0
        %3436 = vmatprep.subr.mxu0 0.0
        %3437 = vmatpush1.msra.mxu0 0.0
        %3438 = vmatprep.subr.mxu0 0.0
        %3439 = vmatpush1.msra.mxu0 0.0
        %3440 = vmatprep.subr.mxu0 0.0
        %3441 = vmatpush1.msra.mxu0 0.0
        %3442 = vmatprep.subr.mxu0 0.0
        %3443 = vmatpush1.msra.mxu0 0.0
        %3444 = vmatprep.mubr.f32.mxu0 0.0
        %3445 = vmatmul.mubr.f32.gmra.mrb[0].mxu0 %v3357
        %v3446 = vpop.f32.mrb[0].mxu0
        %v3447 = vadd.f32 %v3354, %v3446
        %v3448 = vpop.f32.mrb[0].mxu0
        %3449 = vmatprep.mubr.f32.mxu0 0.0
        %3450 = vmatmul.mubr.f32.gmra.mrb[0].mxu0 %v3360
        %v3451 = vpop.f32.mrb[0].mxu0
        %v3452 = vadd.f32 %v3354, %v3451
        %v3453 = vpop.f32.mrb[0].mxu0
        %3454 = vmatprep.mubr.f32.mxu0 0.0
        %3455 = vmatmul.mubr.f32.gmra.mrb[0].mxu0 %v3363
        %v3456 = vpop.f32.mrb[0].mxu0
        %v3457 = vadd.f32 %v3354, %v3456
        %v3458 = vpop.f32.mrb[0].mxu0
        %3459 = vmatprep.mubr.f32.mxu0 0.0
        %3460 = vmatmul.mubr.f32.gmra.mrb[0].mxu0 %v3366
        %v3461 = vpop.f32.mrb[0].mxu0
        %v3462 = vadd.f32 %v3354, %v3461
        %v3463 = vpop.f32.mrb[0].mxu0
        %3464 = vmatprep.mubr.f32.mxu0 0.0
        %3465 = vmatmul.mubr.f32.gmra.mrb[0].mxu0 %v3369
        %v3466 = vpop.f32.mrb[0].mxu0
        %v3467 = vadd.f32 %v3354, %v3466
        %v3468 = vpop.f32.mrb[0].mxu0
        %3469 = vmatprep.mubr.f32.mxu0 0.0
        %3470 = vmatmul.mubr.f32.gmra.mrb[0].mxu0 %v3372
        %v3471 = vpop.f32.mrb[0].mxu0
        %v3472 = vadd.f32 %v3354, %v3471
        %v3473 = vpop.f32.mrb[0].mxu0
        %3474 = vmatprep.mubr.f32.mxu0 0.0
        %3475 = vmatmul.mubr.f32.gmra.mrb[0].mxu0 %v3375
        %v3476 = vpop.f32.mrb[0].mxu0
        %v3477 = vadd.f32 %v3354, %v3476
        %v3478 = vpop.f32.mrb[0].mxu0
        %3479 = vmatprep.mubr.f32.mxu0 0.0
        %3480 = vmatmul.mubr.f32.gmra.mrb[0].mxu0 %v3378
        %v3481 = vpop.f32.mrb[0].mxu0
        %v3482 = vadd.f32 %v3354, %v3481
        %v3483 = vpop.f32.mrb[0].mxu0
        %3484 = vdwg.mxu0
        %vm3485 = vcmp.gt.f32.partialorder %v3447, 0.0
        %vm3486 = vcmp.gt.f32.partialorder %v3452, 0.0
        %vm3487 = vcmp.gt.f32.partialorder %v3457, 0.0
        %vm3488 = vcmp.gt.f32.partialorder %v3462, 0.0
        %vm3489 = vcmp.gt.f32.partialorder %v3467, 0.0
        %vm3490 = vcmp.gt.f32.partialorder %v3472, 0.0
        %vm3491 = vcmp.gt.f32.partialorder %v3477, 0.0
        %vm3492 = vcmp.gt.f32.partialorder %v3482, 0.0
        %v3493 = vmul.f32 %v3447, 0.01
        %v3494 = vmul.f32 %v3452, 0.01
        %v3495 = vmul.f32 %v3457, 0.01
        %v3496 = vmul.f32 %v3462, 0.01
        %v3497 = vmul.f32 %v3467, 0.01
        %v3498 = vmul.f32 %v3472, 0.01
        %v3499 = vmul.f32 %v3477, 0.01
        %v3500 = vmul.f32 %v3482, 0.01
        %v3501 = vsel %vm3485, %v3447, %v3493
        %v3502 = vsel %vm3486, %v3452, %v3494
        %v3503 = vsel %vm3487, %v3457, %v3495
        %v3504 = vsel %vm3488, %v3462, %v3496
        %v3505 = vsel %vm3489, %v3467, %v3497
        %v3506 = vsel %vm3490, %v3472, %v3498
        %v3507 = vsel %vm3491, %v3477, %v3499
        %v3508 = vsel %vm3492, %v3482, %v3500
        %s3509 = scalar_lea.vmem [#allocation5], 32
        %v3510 = vld [vmem:[%s3509] sm:$0xff]
        %v3511 = vld [vmem:[%s3509 + $0x8] sm:$0xff]
        %s3512 = scalar_lea.vmem %s4, 2
        %v3513 = vld [vmem:[%s3512] sm:$0x1]
        %v3515 = vlaneseq
        %v3516 = vshrl.u32 %v3515, 7
        %v3517 = vsub.s32 0, %v3516
        %v3518 = vrot.slane %v3513, %v3517
        %v3521 = vsel %vm398, %v3501, 0
        %v3524 = vsel %vm398, %v3502, 0
        %v3527 = vsel %vm398, %v3503, 0
        %v3530 = vsel %vm398, %v3504, 0
        %v3533 = vsel %vm398, %v3505, 0
        %v3536 = vsel %vm398, %v3506, 0
        %v3539 = vsel %vm398, %v3507, 0
        %v3542 = vsel %vm398, %v3508, 0
        %3544 = vmatprep.subr.mxu0 0.0
        %3545 = vmatpush1.msra.mxu0 %v3510
        %3546 = vmatprep.subr.mxu0 0.0
        %3547 = vmatpush1.msra.mxu0 %v3511
        %3548 = vmatprep.subr.mxu0 0.0
        %3549 = vmatpush1.msra.mxu0 0.0
        %3550 = vmatprep.subr.mxu0 0.0
        %3551 = vmatpush1.msra.mxu0 0.0
        %3552 = vmatprep.subr.mxu0 0.0
        %3553 = vmatpush1.msra.mxu0 0.0
        %3554 = vmatprep.subr.mxu0 0.0
        %3555 = vmatpush1.msra.mxu0 0.0
        %3556 = vmatprep.subr.mxu0 0.0
        %3557 = vmatpush1.msra.mxu0 0.0
        %3558 = vmatprep.subr.mxu0 0.0
        %3559 = vmatpush1.msra.mxu0 0.0
        %3560 = vmatprep.subr.mxu0 0.0
        %3561 = vmatpush1.msra.mxu0 0.0
        %3562 = vmatprep.subr.mxu0 0.0
        %3563 = vmatpush1.msra.mxu0 0.0
        %3564 = vmatprep.subr.mxu0 0.0
        %3565 = vmatpush1.msra.mxu0 0.0
        %3566 = vmatprep.subr.mxu0 0.0
        %3567 = vmatpush1.msra.mxu0 0.0
        %3568 = vmatprep.subr.mxu0 0.0
        %3569 = vmatpush1.msra.mxu0 0.0
        %3570 = vmatprep.subr.mxu0 0.0
        %3571 = vmatpush1.msra.mxu0 0.0
        %3572 = vmatprep.subr.mxu0 0.0
        %3573 = vmatpush1.msra.mxu0 0.0
        %3574 = vmatprep.subr.mxu0 0.0
        %3575 = vmatpush1.msra.mxu0 0.0
        %3576 = vmatprep.subr.mxu0 0.0
        %3577 = vmatpush1.msra.mxu0 0.0
        %3578 = vmatprep.subr.mxu0 0.0
        %3579 = vmatpush1.msra.mxu0 0.0
        %3580 = vmatprep.subr.mxu0 0.0
        %3581 = vmatpush1.msra.mxu0 0.0
        %3582 = vmatprep.subr.mxu0 0.0
        %3583 = vmatpush1.msra.mxu0 0.0
        %3584 = vmatprep.subr.mxu0 0.0
        %3585 = vmatpush1.msra.mxu0 0.0
        %3586 = vmatprep.subr.mxu0 0.0
        %3587 = vmatpush1.msra.mxu0 0.0
        %3588 = vmatprep.subr.mxu0 0.0
        %3589 = vmatpush1.msra.mxu0 0.0
        %3590 = vmatprep.subr.mxu0 0.0
        %3591 = vmatpush1.msra.mxu0 0.0
        %3592 = vmatprep.subr.mxu0 0.0
        %3593 = vmatpush1.msra.mxu0 0.0
        %3594 = vmatprep.subr.mxu0 0.0
        %3595 = vmatpush1.msra.mxu0 0.0
        %3596 = vmatprep.subr.mxu0 0.0
        %3597 = vmatpush1.msra.mxu0 0.0
        %3598 = vmatprep.subr.mxu0 0.0
        %3599 = vmatpush1.msra.mxu0 0.0
        %3600 = vmatprep.subr.mxu0 0.0
        %3601 = vmatpush1.msra.mxu0 0.0
        %3602 = vmatprep.subr.mxu0 0.0
        %3603 = vmatpush1.msra.mxu0 0.0
        %3604 = vmatprep.subr.mxu0 0.0
        %3605 = vmatpush1.msra.mxu0 0.0
        %3606 = vmatprep.subr.mxu0 0.0
        %3607 = vmatpush1.msra.mxu0 0.0
        %3608 = vmatprep.mubr.f32.mxu0 0.0
        %3609 = vmatmul.mubr.f32.gmra.mrb[0].mxu0 %v3521
        %v3610 = vpop.f32.mrb[0].mxu0
        %v3611 = vadd.f32 %v3518, %v3610
        %v3612 = vpop.f32.mrb[0].mxu0
        %3613 = vmatprep.mubr.f32.mxu0 0.0
        %3614 = vmatmul.mubr.f32.gmra.mrb[0].mxu0 %v3524
        %v3615 = vpop.f32.mrb[0].mxu0
        %v3616 = vadd.f32 %v3518, %v3615
        %v3617 = vpop.f32.mrb[0].mxu0
        %3618 = vmatprep.mubr.f32.mxu0 0.0
        %3619 = vmatmul.mubr.f32.gmra.mrb[0].mxu0 %v3527
        %v3620 = vpop.f32.mrb[0].mxu0
        %v3621 = vadd.f32 %v3518, %v3620
        %v3622 = vpop.f32.mrb[0].mxu0
        %3623 = vmatprep.mubr.f32.mxu0 0.0
        %3624 = vmatmul.mubr.f32.gmra.mrb[0].mxu0 %v3530
        %v3625 = vpop.f32.mrb[0].mxu0
        %v3626 = vadd.f32 %v3518, %v3625
        %v3627 = vpop.f32.mrb[0].mxu0
        %3628 = vmatprep.mubr.f32.mxu0 0.0
        %3629 = vmatmul.mubr.f32.gmra.mrb[0].mxu0 %v3533
        %v3630 = vpop.f32.mrb[0].mxu0
        %v3631 = vadd.f32 %v3518, %v3630
        %v3632 = vpop.f32.mrb[0].mxu0
        %3633 = vmatprep.mubr.f32.mxu0 0.0
        %3634 = vmatmul.mubr.f32.gmra.mrb[0].mxu0 %v3536
        %v3635 = vpop.f32.mrb[0].mxu0
        %v3636 = vadd.f32 %v3518, %v3635
        %v3637 = vpop.f32.mrb[0].mxu0
        %3638 = vmatprep.mubr.f32.mxu0 0.0
        %3639 = vmatmul.mubr.f32.gmra.mrb[0].mxu0 %v3539
        %v3640 = vpop.f32.mrb[0].mxu0
        %v3641 = vadd.f32 %v3518, %v3640
        %v3642 = vpop.f32.mrb[0].mxu0
        %3643 = vmatprep.mubr.f32.mxu0 0.0
        %3644 = vmatmul.mubr.f32.gmra.mrb[0].mxu0 %v3542
        %v3645 = vpop.f32.mrb[0].mxu0
        %v3646 = vadd.f32 %v3518, %v3645
        %v3647 = vpop.f32.mrb[0].mxu0
        %3648 = vdwg.mxu0
        %vm3649 = vcmp.gt.f32.partialorder %v3611, 0.0
        %vm3650 = vcmp.gt.f32.partialorder %v3616, 0.0
        %vm3651 = vcmp.gt.f32.partialorder %v3621, 0.0
        %vm3652 = vcmp.gt.f32.partialorder %v3626, 0.0
        %vm3653 = vcmp.gt.f32.partialorder %v3631, 0.0
        %vm3654 = vcmp.gt.f32.partialorder %v3636, 0.0
        %vm3655 = vcmp.gt.f32.partialorder %v3641, 0.0
        %vm3656 = vcmp.gt.f32.partialorder %v3646, 0.0
        %v3657 = vmul.f32 %v3611, 0.01
        %v3658 = vmul.f32 %v3616, 0.01
        %v3659 = vmul.f32 %v3621, 0.01
        %v3660 = vmul.f32 %v3626, 0.01
        %v3661 = vmul.f32 %v3631, 0.01
        %v3662 = vmul.f32 %v3636, 0.01
        %v3663 = vmul.f32 %v3641, 0.01
        %v3664 = vmul.f32 %v3646, 0.01
        %v3665 = vsel %vm3649, %v3611, %v3657
        %v3666 = vsel %vm3650, %v3616, %v3658
        %v3667 = vsel %vm3651, %v3621, %v3659
        %v3668 = vsel %vm3652, %v3626, %v3660
        %v3669 = vsel %vm3653, %v3631, %v3661
        %v3670 = vsel %vm3654, %v3636, %v3662
        %v3671 = vsel %vm3655, %v3641, %v3663
        %v3672 = vsel %vm3656, %v3646, %v3664
        %v3673 = vld [vmem:[%s5] sm:$0xff]
        %v3674 = vld [vmem:[%s5 + $0x8] sm:$0xff]
        %v3675 = vld [vmem:[%s6] sm:$0x1]
        %v3677 = vlaneseq
        %v3678 = vshrl.u32 %v3677, 7
        %v3679 = vsub.s32 0, %v3678
        %v3680 = vrot.slane %v3675, %v3679
        %v3683 = vsel %vm398, %v3665, 0
        %v3686 = vsel %vm398, %v3666, 0
        %v3689 = vsel %vm398, %v3667, 0
        %v3692 = vsel %vm398, %v3668, 0
        %v3695 = vsel %vm398, %v3669, 0
        %v3698 = vsel %vm398, %v3670, 0
        %v3701 = vsel %vm398, %v3671, 0
        %v3704 = vsel %vm398, %v3672, 0
        %3706 = vmatprep.subr.mxu0 0.0
        %3707 = vmatpush1.msra.mxu0 %v3673
        %3708 = vmatprep.subr.mxu0 0.0
        %3709 = vmatpush1.msra.mxu0 %v3674
        %3710 = vmatprep.subr.mxu0 0.0
        %3711 = vmatpush1.msra.mxu0 0.0
        %3712 = vmatprep.subr.mxu0 0.0
        %3713 = vmatpush1.msra.mxu0 0.0
        %3714 = vmatprep.subr.mxu0 0.0
        %3715 = vmatpush1.msra.mxu0 0.0
        %3716 = vmatprep.subr.mxu0 0.0
        %3717 = vmatpush1.msra.mxu0 0.0
        %3718 = vmatprep.subr.mxu0 0.0
        %3719 = vmatpush1.msra.mxu0 0.0
        %3720 = vmatprep.subr.mxu0 0.0
        %3721 = vmatpush1.msra.mxu0 0.0
        %3722 = vmatprep.subr.mxu0 0.0
        %3723 = vmatpush1.msra.mxu0 0.0
        %3724 = vmatprep.subr.mxu0 0.0
        %3725 = vmatpush1.msra.mxu0 0.0
        %3726 = vmatprep.subr.mxu0 0.0
        %3727 = vmatpush1.msra.mxu0 0.0
        %3728 = vmatprep.subr.mxu0 0.0
        %3729 = vmatpush1.msra.mxu0 0.0
        %3730 = vmatprep.subr.mxu0 0.0
        %3731 = vmatpush1.msra.mxu0 0.0
        %3732 = vmatprep.subr.mxu0 0.0
        %3733 = vmatpush1.msra.mxu0 0.0
        %3734 = vmatprep.subr.mxu0 0.0
        %3735 = vmatpush1.msra.mxu0 0.0
        %3736 = vmatprep.subr.mxu0 0.0
        %3737 = vmatpush1.msra.mxu0 0.0
        %3738 = vmatprep.subr.mxu0 0.0
        %3739 = vmatpush1.msra.mxu0 0.0
        %3740 = vmatprep.subr.mxu0 0.0
        %3741 = vmatpush1.msra.mxu0 0.0
        %3742 = vmatprep.subr.mxu0 0.0
        %3743 = vmatpush1.msra.mxu0 0.0
        %3744 = vmatprep.subr.mxu0 0.0
        %3745 = vmatpush1.msra.mxu0 0.0
        %3746 = vmatprep.subr.mxu0 0.0
        %3747 = vmatpush1.msra.mxu0 0.0
        %3748 = vmatprep.subr.mxu0 0.0
        %3749 = vmatpush1.msra.mxu0 0.0
        %3750 = vmatprep.subr.mxu0 0.0
        %3751 = vmatpush1.msra.mxu0 0.0
        %3752 = vmatprep.subr.mxu0 0.0
        %3753 = vmatpush1.msra.mxu0 0.0
        %3754 = vmatprep.subr.mxu0 0.0
        %3755 = vmatpush1.msra.mxu0 0.0
        %3756 = vmatprep.subr.mxu0 0.0
        %3757 = vmatpush1.msra.mxu0 0.0
        %3758 = vmatprep.subr.mxu0 0.0
        %3759 = vmatpush1.msra.mxu0 0.0
        %3760 = vmatprep.subr.mxu0 0.0
        %3761 = vmatpush1.msra.mxu0 0.0
        %3762 = vmatprep.subr.mxu0 0.0
        %3763 = vmatpush1.msra.mxu0 0.0
        %3764 = vmatprep.subr.mxu0 0.0
        %3765 = vmatpush1.msra.mxu0 0.0
        %3766 = vmatprep.subr.mxu0 0.0
        %3767 = vmatpush1.msra.mxu0 0.0
        %3768 = vmatprep.subr.mxu0 0.0
        %3769 = vmatpush1.msra.mxu0 0.0
        %3770 = vmatprep.mubr.f32.mxu0 0.0
        %3771 = vmatmul.mubr.f32.gmra.mrb[0].mxu0 %v3683
        %v3772 = vpop.f32.mrb[0].mxu0
        %v3773 = vadd.f32 %v3680, %v3772
        %v3774 = vpop.f32.mrb[0].mxu0
        %3775 = vmatprep.mubr.f32.mxu0 0.0
        %3776 = vmatmul.mubr.f32.gmra.mrb[0].mxu0 %v3686
        %v3777 = vpop.f32.mrb[0].mxu0
        %v3778 = vadd.f32 %v3680, %v3777
        %v3779 = vpop.f32.mrb[0].mxu0
        %3780 = vmatprep.mubr.f32.mxu0 0.0
        %3781 = vmatmul.mubr.f32.gmra.mrb[0].mxu0 %v3689
        %v3782 = vpop.f32.mrb[0].mxu0
        %v3783 = vadd.f32 %v3680, %v3782
        %v3784 = vpop.f32.mrb[0].mxu0
        %3785 = vmatprep.mubr.f32.mxu0 0.0
        %3786 = vmatmul.mubr.f32.gmra.mrb[0].mxu0 %v3692
        %v3787 = vpop.f32.mrb[0].mxu0
        %v3788 = vadd.f32 %v3680, %v3787
        %v3789 = vpop.f32.mrb[0].mxu0
        %3790 = vmatprep.mubr.f32.mxu0 0.0
        %3791 = vmatmul.mubr.f32.gmra.mrb[0].mxu0 %v3695
        %v3792 = vpop.f32.mrb[0].mxu0
        %v3793 = vadd.f32 %v3680, %v3792
        %v3794 = vpop.f32.mrb[0].mxu0
        %3795 = vmatprep.mubr.f32.mxu0 0.0
        %3796 = vmatmul.mubr.f32.gmra.mrb[0].mxu0 %v3698
        %v3797 = vpop.f32.mrb[0].mxu0
        %v3798 = vadd.f32 %v3680, %v3797
        %v3799 = vpop.f32.mrb[0].mxu0
        %3800 = vmatprep.mubr.f32.mxu0 0.0
        %3801 = vmatmul.mubr.f32.gmra.mrb[0].mxu0 %v3701
        %v3802 = vpop.f32.mrb[0].mxu0
        %v3803 = vadd.f32 %v3680, %v3802
        %v3804 = vpop.f32.mrb[0].mxu0
        %3805 = vmatprep.mubr.f32.mxu0 0.0
        %3806 = vmatmul.mubr.f32.gmra.mrb[0].mxu0 %v3704
        %v3807 = vpop.f32.mrb[0].mxu0
        %v3808 = vadd.f32 %v3680, %v3807
        %v3809 = vpop.f32.mrb[0].mxu0
        %3810 = vdwg.mxu0
        %vm3811 = vcmp.gt.f32.partialorder %v3773, 0.0
        %vm3812 = vcmp.gt.f32.partialorder %v3778, 0.0
        %vm3813 = vcmp.gt.f32.partialorder %v3783, 0.0
        %vm3814 = vcmp.gt.f32.partialorder %v3788, 0.0
        %vm3815 = vcmp.gt.f32.partialorder %v3793, 0.0
        %vm3816 = vcmp.gt.f32.partialorder %v3798, 0.0
        %vm3817 = vcmp.gt.f32.partialorder %v3803, 0.0
        %vm3818 = vcmp.gt.f32.partialorder %v3808, 0.0
        %v3819 = vmul.f32 %v3773, 0.01
        %v3820 = vmul.f32 %v3778, 0.01
        %v3821 = vmul.f32 %v3783, 0.01
        %v3822 = vmul.f32 %v3788, 0.01
        %v3823 = vmul.f32 %v3793, 0.01
        %v3824 = vmul.f32 %v3798, 0.01
        %v3825 = vmul.f32 %v3803, 0.01
        %v3826 = vmul.f32 %v3808, 0.01
        %v3827 = vsel %vm3811, %v3773, %v3819
        %v3828 = vsel %vm3812, %v3778, %v3820
        %v3829 = vsel %vm3813, %v3783, %v3821
        %v3830 = vsel %vm3814, %v3788, %v3822
        %v3831 = vsel %vm3815, %v3793, %v3823
        %v3832 = vsel %vm3816, %v3798, %v3824
        %v3833 = vsel %vm3817, %v3803, %v3825
        %v3834 = vsel %vm3818, %v3808, %v3826
        %v3835 = vld [vmem:[%s7] sm:$0x1]
        %v3837 = vlaneseq
        %v3838 = vshrl.u32 %v3837, 7
        %v3839 = vsub.s32 0, %v3838
        %v3840 = vrot.slane %v3835, %v3839
        %v3842 = vmul.f32 %v3827, %v3840
        %v3843 = vmul.f32 %v3828, %v3840
        %v3844 = vmul.f32 %v3829, %v3840
        %v3845 = vmul.f32 %v3830, %v3840
        %v3846 = vmul.f32 %v3831, %v3840
        %v3847 = vmul.f32 %v3832, %v3840
        %v3848 = vmul.f32 %v3833, %v3840
        %v3849 = vmul.f32 %v3834, %v3840
        %vm3850 = vcmask 64512
        %v3851 = vsel %vm3850, %v3842, 0.0
        %3852 = vadd.xlane.f32.xlu0 %v3851
        %v3853 = vpop.xlane.xlu0 %3852
        %v3854 = vsel %vm3850, %v3843, 0.0
        %3855 = vadd.xlane.f32.xlu0 %v3854
        %v3856 = vpop.xlane.xlu0 %3855
        %v3857 = vsel %vm3850, %v3844, 0.0
        %3858 = vadd.xlane.f32.xlu0 %v3857
        %v3859 = vpop.xlane.xlu0 %3858
        %v3860 = vsel %vm3850, %v3845, 0.0
        %3861 = vadd.xlane.f32.xlu0 %v3860
        %v3862 = vpop.xlane.xlu0 %3861
        %v3863 = vsel %vm3850, %v3846, 0.0
        %3864 = vadd.xlane.f32.xlu0 %v3863
        %v3865 = vpop.xlane.xlu0 %3864
        %v3866 = vsel %vm3850, %v3847, 0.0
        %3867 = vadd.xlane.f32.xlu0 %v3866
        %v3868 = vpop.xlane.xlu0 %3867
        %v3869 = vsel %vm3850, %v3848, 0.0
        %3870 = vadd.xlane.f32.xlu0 %v3869
        %v3871 = vpop.xlane.xlu0 %3870
        %v3872 = vsel %vm3850, %v3849, 0.0
        %3873 = vadd.xlane.f32.xlu0 %v3872
        %v3874 = vpop.xlane.xlu0 %3873
        %s3875 = sld [smem:[#allocation7]]
        %s3876 = sld [smem:[#allocation7 + $0x1]]
        %s3877 = sld [smem:[#allocation7 + $0x2]]
        %v3878 = vstv %s3877
        %v3879 = vadd.f32 %v3853, %v3878
        %v3880 = vadd.f32 %v3856, %v3878
        %v3881 = vadd.f32 %v3859, %v3878
        %v3882 = vadd.f32 %v3862, %v3878
        %v3883 = vadd.f32 %v3865, %v3878
        %v3884 = vadd.f32 %v3868, %v3878
        %v3885 = vadd.f32 %v3871, %v3878
        %v3886 = vadd.f32 %v3874, %v3878
        %v3887 = vstv %s3875
        %v3888 = vsub.f32 %v3879, %v3887
        %v3889 = vsub.f32 %v3880, %v3887
        %v3890 = vsub.f32 %v3881, %v3887
        %v3891 = vsub.f32 %v3882, %v3887
        %v3892 = vsub.f32 %v3883, %v3887
        %v3893 = vsub.f32 %v3884, %v3887
        %v3894 = vsub.f32 %v3885, %v3887
        %v3895 = vsub.f32 %v3886, %v3887
        %v3896 = vstv %s3876
        %v3897 = vmul.f32 %v3896, %v3888
        %v3898 = vmul.f32 %v3896, %v3889
        %v3899 = vmul.f32 %v3896, %v3890
        %v3900 = vmul.f32 %v3896, %v3891
        %v3901 = vmul.f32 %v3896, %v3892
        %v3902 = vmul.f32 %v3896, %v3893
        %v3903 = vmul.f32 %v3896, %v3894
        %v3904 = vmul.f32 %v3896, %v3895
        %v3905 = vxor.u32 %v3897, 2147483648
        %v3906 = vxor.u32 %v3898, 2147483648
        %v3907 = vxor.u32 %v3899, 2147483648
        %v3908 = vxor.u32 %v3900, 2147483648
        %v3909 = vxor.u32 %v3901, 2147483648
        %v3910 = vxor.u32 %v3902, 2147483648
        %v3911 = vxor.u32 %v3903, 2147483648
        %v3912 = vxor.u32 %v3904, 2147483648
        %v3913 = vmul.f32 %v3905, 1.442695
        %v3914 = vpow.pop %v3913
        %v3915 = vmul.f32 %v3906, 1.442695
        %v3916 = vpow.pop %v3915
        %v3917 = vmul.f32 %v3907, 1.442695
        %v3918 = vpow.pop %v3917
        %v3919 = vmul.f32 %v3908, 1.442695
        %v3920 = vpow.pop %v3919
        %v3921 = vmul.f32 %v3909, 1.442695
        %v3922 = vpow.pop %v3921
        %v3923 = vmul.f32 %v3910, 1.442695
        %v3924 = vpow.pop %v3923
        %v3925 = vmul.f32 %v3911, 1.442695
        %v3926 = vpow.pop %v3925
        %v3927 = vmul.f32 %v3912, 1.442695
        %v3928 = vpow.pop %v3927
        %v3929 = vadd.f32 %v3914, 1.0
        %v3930 = vadd.f32 %v3916, 1.0
        %v3931 = vadd.f32 %v3918, 1.0
        %v3932 = vadd.f32 %v3920, 1.0
        %v3933 = vadd.f32 %v3922, 1.0
        %v3934 = vadd.f32 %v3924, 1.0
        %v3935 = vadd.f32 %v3926, 1.0
        %v3936 = vadd.f32 %v3928, 1.0
        %v3937 = vrcp.pop %v3929
        %v3938 = vmul.f32 1.0, %v3937
        %v3939 = vrcp.pop %v3930
        %v3940 = vmul.f32 1.0, %v3939
        %v3941 = vrcp.pop %v3931
        %v3942 = vmul.f32 1.0, %v3941
        %v3943 = vrcp.pop %v3932
        %v3944 = vmul.f32 1.0, %v3943
        %v3945 = vrcp.pop %v3933
        %v3946 = vmul.f32 1.0, %v3945
        %v3947 = vrcp.pop %v3934
        %v3948 = vmul.f32 1.0, %v3947
        %v3949 = vrcp.pop %v3935
        %v3950 = vmul.f32 1.0, %v3949
        %v3951 = vrcp.pop %v3936
        %v3952 = vmul.f32 1.0, %v3951
        %v3961 = vlaneseq
        %v3962 = vand.u32 %v3961, 127
        %v3963 = vlaneseq
        %v3964 = vshrl.u32 %v3963, 7
        %v3965 = vsub.s32 %v3962, %v3964
        %v3966 = vrot.slane %v3938, %v3965
        %v3967 = vlaneseq
        %v3968 = vshrl.u32 %v3967, 7
        %v3969 = vsub.s32 %v3962, %v3968
        %v3970 = vrot.slane %v3940, %v3969
        %v3971 = vlaneseq
        %v3972 = vshrl.u32 %v3971, 7
        %v3973 = vsub.s32 %v3962, %v3972
        %v3974 = vrot.slane %v3942, %v3973
        %v3975 = vlaneseq
        %v3976 = vshrl.u32 %v3975, 7
        %v3977 = vsub.s32 %v3962, %v3976
        %v3978 = vrot.slane %v3944, %v3977
        %v3979 = vlaneseq
        %v3980 = vshrl.u32 %v3979, 7
        %v3981 = vsub.s32 %v3962, %v3980
        %v3982 = vrot.slane %v3946, %v3981
        %v3983 = vlaneseq
        %v3984 = vshrl.u32 %v3983, 7
        %v3985 = vsub.s32 %v3962, %v3984
        %v3986 = vrot.slane %v3948, %v3985
        %v3987 = vlaneseq
        %v3988 = vshrl.u32 %v3987, 7
        %v3989 = vsub.s32 %v3962, %v3988
        %v3990 = vrot.slane %v3950, %v3989
        %v3991 = vlaneseq
        %v3992 = vshrl.u32 %v3991, 7
        %v3993 = vsub.s32 %v3962, %v3992
        %v3994 = vrot.slane %v3952, %v3993
        %v3995 = vsel %vm3096, %v3970, %v3966
        %v3996 = vsel %vm3098, %v3974, %v3995
        %v3997 = vsel %vm3100, %v3978, %v3996
        %v3998 = vsel %vm3102, %v3982, %v3997
        %v3999 = vsel %vm3104, %v3986, %v3998
        %v4000 = vsel %vm3106, %v3990, %v3999
        %v4001 = vsel %vm3108, %v3994, %v4000
        %4003 = vst.msk [vmem:[%s380] sm:$0xff] %vm3850, %v4001
        %p4004 = scmp.lt.s32.totalorder %s25, 1
        %s4005 = scalar_select %p4004, %s25, 1
        %s4006 = smul.addr %s4005, 8
        %s4007 = scalar_lea.vmem %s9, %s4006
        // Predicated region
        $region69: #{tpu_custom_call.1} parent=55 // pred_check
          %p4008 = pneg %p237
        $region70: #{tpu_custom_call.1} parent=55 // pred_check_branch
          %4010 = sbr.rel (%p4008) target = $region72
        $region71: #{tpu_custom_call.1} parent=55 // pred_region
          _
        $region72: #{tpu_custom_call.1} parent=55 // pred_fallthru
          _
      $region56: #{tpu_custom_call.1} parent=5 // pred_fallthru
        _
      %p4011 = scmp.le.s32.totalorder 2, %s20
      // Predicated region
      $region73: #{tpu_custom_call.1} parent=5 // pred_check
        %p4012 = pneg %p4011
      $region74: #{tpu_custom_call.1} parent=5 // pred_check_branch
        %4014 = sbr.rel (%p4012) target = $region76
      $region75: #{tpu_custom_call.1} parent=5 // pred_region
        %s4015 = ssub.s32 %s20, 2
        // Predicated region
        $region77: #{tpu_custom_call.1} parent=75 // pred_check
          %p4016 = pneg %p243
        $region78: #{tpu_custom_call.1} parent=75 // pred_check_branch
          %4018 = sbr.rel (%p4016) target = $region80
        $region79: #{tpu_custom_call.1} parent=75 // pred_region
          %p4019 = scmp.lt.s32.totalorder %s26, 1
          %s4020 = scalar_select %p4019, %s26, 1
          %s4021 = smul.addr %s4020, 8
          %s4022 = scalar_lea.vmem %s9, %s4021
        $region80: #{tpu_custom_call.1} parent=75 // pred_fallthru
          _
      $region76: #{tpu_custom_call.1} parent=5 // pred_fallthru
        _
    $region6: #{tpu_custom_call.1} parent=1 // loop_footer
      %s24 = sadd.s32 1, %s20
    $region7: #{tpu_custom_call.1} parent=1 // loop_footer_branch
      %19 = sbr.rel target = $region3
    $region8: #{tpu_custom_call.1} parent=1 // loop_exit
      _
    %4023 = vsyncpa [#allocation3], 1
    %s4024 = scalar_lea.sflag [#allocation3], 1
    %4025 = vsyncpa %s4024, 1
    %4026 = vsyncpa [#allocation6], 1
    %4027 = vsyncpa [#allocation4], 1
    %s4028 = scalar_lea.sflag [#allocation4], 1
    %4029 = vsyncpa %s4028, 1

</llo_original>
